<compile_context>
chip_gen: v5e
topology: v5e:2x2
jax: 0.10.0
libtpu: 0.0.40
codegen_flags: <defaults>
</compile_context>

<pallas_src>
import jax
import jax.numpy as jnp
from jax.experimental import pallas as pl
from jax.experimental.pallas import tpu as pltpu

_NEG_SLOPE = 0.01  # PyTorch LeakyReLU default
_BN_EPS = 1e-5


def _leaky(y):
    return jnp.where(y >= 0, y, _NEG_SLOPE * y)


def _round_up(x, m):
    return (x + m - 1) // m * m


def _pad_and_tile(n, align, max_tile):
    """Return (padded_extent, tile) with tile | padded_extent, tile % align == 0."""
    p = _round_up(n, align)
    if p <= max_tile:
        return p, p
    p = _round_up(n, max_tile)
    return p, max_tile


def _pad2(a, rows, cols):
    r, c = a.shape
    if r == rows and c == cols:
        return a
    return jnp.pad(a, ((0, rows - r), (0, cols - c)))


def _pad_row(v, n, fill):
    v = v.reshape(-1).astype(jnp.float32)
    if v.shape[0] < n:
        v = jnp.concatenate(
            [v, jnp.full((n - v.shape[0],), fill, jnp.float32)])
    return v.reshape(1, n)


def _bn_scale_shift(bn):
    inv = 1.0 / jnp.sqrt(bn["var"] + _BN_EPS)
    scale = bn["gamma"] * inv
    shift = bn["beta"] - bn["mean"] * scale
    return scale, shift


# ----------------------------------------------------------------------------
# Fused matmul kernel: prologue(BN+leaky on LHS) @ W -> epilogue(bias/BN/act/res)
# ----------------------------------------------------------------------------
def _make_fused_matmul_kernel(has_in_bn, has_bias, has_out_bn, out_act,
                              has_residual, res_coeff, use_bf16):
    def kernel(*refs):
        idx = 0
        lhs_ref = refs[idx]; idx += 1
        rhs_ref = refs[idx]; idx += 1
        if has_in_bn:
            in_scale_ref = refs[idx]; in_shift_ref = refs[idx + 1]; idx += 2
        if has_bias:
            bias_ref = refs[idx]; idx += 1
        if has_out_bn:
            out_scale_ref = refs[idx]; out_shift_ref = refs[idx + 1]; idx += 2
        if has_residual:
            res_ref = refs[idx]; idx += 1
        out_ref = refs[idx]
        acc_ref = refs[idx + 1]

        k = pl.program_id(2)

        @pl.when(k == 0)
        def _init():
            acc_ref[...] = jnp.zeros_like(acc_ref)

        x = lhs_ref[...]
        if has_in_bn:
            x = _leaky(x * in_scale_ref[...] + in_shift_ref[...])
        w = rhs_ref[...]
        if use_bf16:
            x = x.astype(jnp.bfloat16)
            w = w.astype(jnp.bfloat16)
        acc_ref[...] += jnp.dot(x, w, preferred_element_type=jnp.float32)

        @pl.when(k == pl.num_programs(2) - 1)
        def _finalize():
            y = acc_ref[...]
            if has_bias:
                y = y + bias_ref[...]
            if has_out_bn:
                y = y * out_scale_ref[...] + out_shift_ref[...]
            if out_act:
                y = _leaky(y)
            if has_residual:
                y = y + res_coeff * res_ref[...]
            out_ref[...] = y.astype(out_ref.dtype)

    return kernel


def fused_matmul(x, w, *, in_bn=None, bias=None, out_bn=None, out_act=False,
                 residual=None, res_coeff=1.0, use_bf16=True):
    """y = epilogue(prologue(x) @ w).  x:(M,K) w:(K,N); returns (M,N) float32."""
    M, K = x.shape
    K2, N = w.shape
    assert K == K2

    Mp, TM = _pad_and_tile(M, 8, 256)
    Kp, TK = _pad_and_tile(K, 128, 512)
    Np, TN = _pad_and_tile(N, 128, 256)

    args = [_pad2(x.astype(jnp.float32), Mp, Kp),
            _pad2(w.astype(jnp.float32), Kp, Np)]
    in_specs = [
        pl.BlockSpec((TM, TK), lambda i, j, k: (i, k)),
        pl.BlockSpec((TK, TN), lambda i, j, k: (k, j)),
    ]
    if in_bn is not None:
        s, t = in_bn
        args += [_pad_row(s, Kp, 1.0), _pad_row(t, Kp, 0.0)]
        in_specs += [pl.BlockSpec((1, TK), lambda i, j, k: (0, k)),
                     pl.BlockSpec((1, TK), lambda i, j, k: (0, k))]
    if bias is not None:
        args.append(_pad_row(bias, Np, 0.0))
        in_specs.append(pl.BlockSpec((1, TN), lambda i, j, k: (0, j)))
    if out_bn is not None:
        s, t = out_bn
        args += [_pad_row(s, Np, 1.0), _pad_row(t, Np, 0.0)]
        in_specs += [pl.BlockSpec((1, TN), lambda i, j, k: (0, j)),
                     pl.BlockSpec((1, TN), lambda i, j, k: (0, j))]
    if residual is not None:
        args.append(_pad2(residual.astype(jnp.float32), Mp, Np))
        in_specs.append(pl.BlockSpec((TM, TN), lambda i, j, k: (i, j)))

    kernel = _make_fused_matmul_kernel(
        in_bn is not None, bias is not None, out_bn is not None, out_act,
        residual is not None, float(res_coeff), use_bf16)

    out = pl.pallas_call(
        kernel,
        out_shape=jax.ShapeDtypeStruct((Mp, Np), jnp.float32),
        grid_spec=pltpu.PrefetchScalarGridSpec(
            num_scalar_prefetch=0,
            grid=(Mp // TM, Np // TN, Kp // TK),
            in_specs=in_specs,
            out_specs=pl.BlockSpec((TM, TN), lambda i, j, k: (i, j)),
            scratch_shapes=[pltpu.VMEM((TM, TN), jnp.float32)]),
        compiler_params=pltpu.CompilerParams(
            dimension_semantics=("parallel", "parallel", "arbitrary"),
            vmem_limit_bytes=32 * 1024 * 1024),
        cost_estimate=pl.CostEstimate(
            flops=2 * Mp * Np * Kp,
            transcendentals=0,
            bytes_accessed=4 * (Mp * Kp + Kp * Np + Mp * Np)),
    )(*args)
    return out[:M, :N]


# ----------------------------------------------------------------------------
# Standalone fused BatchNorm(eval) + LeakyReLU (lane-dense (N*H, W*C) view).
# Only used where the activation must be materialized (fan-out > 1 before a
# padded spatial conv).
# ----------------------------------------------------------------------------
def _bn_lrelu_kernel(x_ref, scale_ref, shift_ref, o_ref):
    o_ref[...] = _leaky(x_ref[...] * scale_ref[...] + shift_ref[...])


def _row_tile(rows, max_tile=1024):
    if rows <= max_tile:
        return rows
    for t in range(max_tile, 7, -8):
        if rows % t == 0:
            return t
    return rows


def bn_lrelu(x, bn):
    N, H, W, C = x.shape
    scale, shift = _bn_scale_shift(bn)
    rows, cols = N * H, W * C
    x2 = x.reshape(rows, cols)
    scale2 = jnp.tile(scale, W).reshape(1, cols)
    shift2 = jnp.tile(shift, W).reshape(1, cols)
    TR = _row_tile(rows)
    out = pl.pallas_call(
        _bn_lrelu_kernel,
        out_shape=jax.ShapeDtypeStruct((rows, cols), jnp.float32),
        grid_spec=pltpu.PrefetchScalarGridSpec(
            num_scalar_prefetch=0,
            grid=(rows // TR,),
            in_specs=[pl.BlockSpec((TR, cols), lambda i: (i, 0)),
                      pl.BlockSpec((1, cols), lambda i: (0, 0)),
                      pl.BlockSpec((1, cols), lambda i: (0, 0))],
            out_specs=pl.BlockSpec((TR, cols), lambda i: (i, 0))),
        compiler_params=pltpu.CompilerParams(
            dimension_semantics=("parallel",)),
    )(x2, scale2, shift2)
    return out.reshape(N, H, W, C)


# ----------------------------------------------------------------------------
# Conv wrappers (NHWC, stride 1, "same" padding)
# ----------------------------------------------------------------------------
def conv1x1(x, w, *, in_bn=None, bias=None, out_act=False,
            residual=None, res_coeff=1.0):
    """1x1 conv = matmul; optional fused input BN+LeakyReLU prologue (exact)."""
    N, H, W, Cin = x.shape
    Cout = w.shape[-1]
    x2 = x.reshape(N * H * W, Cin)
    w2 = w.reshape(Cin, Cout)
    res2 = residual.reshape(N * H * W, Cout) if residual is not None else None
    y = fused_matmul(x2, w2, in_bn=in_bn, bias=bias, out_act=out_act,
                     residual=res2, res_coeff=res_coeff)
    return y.reshape(N, H, W, Cout)


def conv2d_spatial(x, w, *, bias=None, out_bn=None, out_act=False,
                   residual=None, res_coeff=1.0):
    """KxK conv (odd K), stride 1, same padding.  `x` must already be post-
    activation (or raw network input), so zero padding is exact.
    TODO(synk): eliminate materialized im2col by reading shifted windows of the
    padded input directly inside the kernel (per-tap K-axis accumulation)."""
    N, H, W, Cin = x.shape
    KH, KW, _, Cout = w.shape
    assert KH % 2 == 1 and KW % 2 == 1
    ph, pw = KH // 2, KW // 2
    xp = jnp.pad(x, ((0, 0), (ph, ph), (pw, pw), (0, 0)))
    patches = [xp[:, i:i + H, j:j + W, :] for i in range(KH) for j in range(KW)]
    cols = jnp.concatenate(patches, axis=-1).reshape(N * H * W, KH * KW * Cin)
    w2 = w.reshape(KH * KW * Cin, Cout)
    res2 = residual.reshape(N * H * W, Cout) if residual is not None else None
    y = fused_matmul(cols, w2, bias=bias, out_bn=out_bn, out_act=out_act,
                     residual=res2, res_coeff=res_coeff)
    return y.reshape(N, H, W, Cout)


# ----------------------------------------------------------------------------
# Model blocks
# ----------------------------------------------------------------------------
def residual_conv_block_fused(x, p, res_coeff):
    """conv2(leaky(bn2(conv1(leaky(bn1(x)))))) + res_coeff * x
    (res_coeff=2.0 folds the ZhuGo-level extra residual add)."""
    a1 = bn_lrelu(x, p["bn1"])
    h = conv2d_spatial(a1, p["conv1"],
                       out_bn=_bn_scale_shift(p["bn2"]), out_act=True)
    return conv2d_spatial(h, p["conv2"], residual=x, res_coeff=res_coeff)


def zhugo_residual_block(x, p):
    out0 = conv1x1(x, p["enc_w"], in_bn=_bn_scale_shift(p["enc_bn"]))
    out1 = residual_conv_block_fused(out0, p["rb1"], 2.0)
    out2 = residual_conv_block_fused(out1, p["rb2"], 2.0)
    return conv1x1(out2, p["dec_w"], in_bn=_bn_scale_shift(p["dec_bn"]))


def zhugo_forward(params, x_nchw):
    x = jnp.transpose(x_nchw, (0, 2, 3, 1)).astype(jnp.float32)  # NCHW -> NHWC

    # --- shared trunk ---
    sh = params["shared"]
    h = conv2d_spatial(x, sh["stem_w"])
    last_bn = None
    for stage in sh["stages"]:
        for blk in stage["blocks"]:
            h = zhugo_residual_block(h, blk)
        if stage["down_w"] is not None:
            a = bn_lrelu(h, stage["bn"])
            # TODO(synk): Dropout2d(0.1) is eval-mode identity here.
            h = conv2d_spatial(a, stage["down_w"])
        else:
            last_bn = stage["bn"]   # fused into the bottleneck conv prologue
    h = conv1x1(h, sh["bottleneck_w"], in_bn=_bn_scale_shift(last_bn))

    # --- policy head ---
    po = params["policy"]
    p = h
    for blk in po["blocks"]:
        p = zhugo_residual_block(p, blk)
    p = conv1x1(p, po["final_w"], in_bn=_bn_scale_shift(po["bn"]),
                bias=po["final_b"])                 # (N,H,W,1)
    policy = p[..., 0]                              # == squeeze(1) in NCHW

    # --- value head ---
    va = params["value"]
    v = zhugo_residual_block(h, va["block"])
    v = conv1x1(v, va["conv_w"], in_bn=_bn_scale_shift(va["bn1"]))  # (N,H,W,1)
    Nb, H, W, _ = v.shape
    v2 = v.reshape(Nb, H * W)                       # Flatten (same order as NCHW)
    # BatchNorm2d(1)+LeakyReLU fused as a (broadcast) prologue of FC1.
    s2, t2 = _bn_scale_shift(va["bn2"])
    in_scale = jnp.full((H * W,), s2[0], jnp.float32)
    in_shift = jnp.full((H * W,), t2[0], jnp.float32)
    v3 = fused_matmul(v2, va["fc1_w"], in_bn=(in_scale, in_shift),
                      bias=va["fc1_b"], out_act=True)
    # TODO(synk): Dropout(0.5) is eval-mode identity here.
    value = fused_matmul(v3, va["fc2_w"], bias=va["fc2_b"], use_bf16=False)
    return policy, value


# ----------------------------------------------------------------------------
# Deterministic parameter initialization (mirrors shapes in the torch __init__)
# ----------------------------------------------------------------------------
class KeyGen:
    def __init__(self, key):
        self._key = key

    def __call__(self):
        self._key, sub = jax.random.split(self._key)
        return sub


def kaiming_conv(key, kh, kw, cin, cout):
    fan_in = kh * kw * cin
    std = (2.0 / fan_in) ** 0.5
    return std * jax.random.normal(key, (kh, kw, cin, cout), jnp.float32)


def xavier_conv(key, kh, kw, cin, cout):
    fan_in, fan_out = kh * kw * cin, kh * kw * cout
    std = (2.0 / (fan_in + fan_out)) ** 0.5
    return std * jax.random.normal(key, (kh, kw, cin, cout), jnp.float32)


def kaiming_linear(key, fin, fout):
    std = (2.0 / fin) ** 0.5
    return std * jax.random.normal(key, (fin, fout), jnp.float32)


def xavier_linear(key, fin, fout):
    std = (2.0 / (fin + fout)) ** 0.5
    return std * jax.random.normal(key, (fin, fout), jnp.float32)


def uniform_bias(key, fan_in, n):
    bound = 1.0 / (fan_in ** 0.5)
    return jax.random.uniform(key, (n,), jnp.float32, -bound, bound)


def init_bn(c):
    return dict(
        gamma=jnp.ones((c,), jnp.float32),
        beta=jnp.zeros((c,), jnp.float32),
        mean=jnp.zeros((c,), jnp.float32),
        var=jnp.ones((c,), jnp.float32),
    )


def init_residual_conv_block(kg, c):
    return dict(
        bn1=init_bn(c),
        conv1=kaiming_conv(kg(), 3, 3, c, c),
        bn2=init_bn(c),
        conv2=kaiming_conv(kg(), 3, 3, c, c),
    )


def init_zhugo_block(kg, c):
    inner = c // 2
    return dict(
        enc_bn=init_bn(c),
        enc_w=kaiming_conv(kg(), 1, 1, c, inner),
        rb1=init_residual_conv_block(kg, inner),
        rb2=init_residual_conv_block(kg, inner),
        dec_bn=init_bn(inner),
        dec_w=kaiming_conv(kg(), 1, 1, inner, c),
    )


def init_params(kg, cfg):
    rc, rd = cfg["residual_channels"], cfg["residual_depths"]
    assert len(rc) == len(rd) and len(rd) > 0

    stages = []
    for idx, (ch, depth) in enumerate(zip(rc, rd)):
        blocks = [init_zhugo_block(kg, ch) for _ in range(depth)]
        down_w = None
        if idx < len(rc) - 1:
            down_w = kaiming_conv(kg(), 3, 3, ch, rc[idx + 1])
        stages.append(dict(blocks=blocks, bn=init_bn(ch), down_w=down_w))

    shared = dict(
        stem_w=kaiming_conv(kg(), 5, 5, cfg["input_channels"], rc[0]),
        stages=stages,
        bottleneck_w=kaiming_conv(kg(), 1, 1, rc[-1], cfg["bottleneck_channels"]),
    )

    bc = cfg["bottleneck_channels"]
    HW = cfg["board_size"][0] * cfg["board_size"][1]
    mid = cfg["value_middle_width"]

    policy = dict(
        blocks=[init_zhugo_block(kg, bc) for _ in range(cfg["policy_residual_depth"])],
        bn=init_bn(bc),
        final_w=xavier_conv(kg(), 1, 1, bc, 1),
        final_b=uniform_bias(kg(), bc, 1),
    )

    value = dict(
        block=init_zhugo_block(kg, bc),
        bn1=init_bn(bc),
        conv_w=kaiming_conv(kg(), 1, 1, bc, 1),
        bn2=init_bn(1),
        fc1_w=kaiming_linear(kg(), HW, mid),
        fc1_b=uniform_bias(kg(), HW, mid),
        fc2_w=xavier_linear(kg(), mid, 1),
        fc2_b=uniform_bias(kg(), mid, 1),
    )

    return dict(shared=shared, policy=policy, value=value)


# ----------------------------------------------------------------------------
# Main
# ----------------------------------------------------------------------------
if __name__ == "__main__":
    cfg = dict(
        board_size=(8, 8),
        input_channels=4,
        residual_channels=(16, 32),
        residual_depths=(1, 1),
        bottleneck_channels=16,
        policy_residual_depth=1,
        value_middle_width=32,
    )

    kg = KeyGen(jax.random.PRNGKey(0))
    params = init_params(kg, cfg)

    batch = 2
    H, W = cfg["board_size"]
    x = jax.random.normal(kg(), (batch, cfg["input_channels"], H, W), jnp.float32)  # NCHW

    forward = jax.jit(zhugo_forward)
    policy, value = forward(params, x)
    jax.block_until_ready((policy, value))

    assert policy.shape == (batch, H, W), policy.shape
    assert value.shape == (batch, 1), value.shape
    assert jnp.all(jnp.isfinite(policy)) and jnp.all(jnp.isfinite(value))

    print("KERNEL_OK")
</pallas_src>

<mosaic_0001>
module attributes {stable_mosaic.version = 11 : i64} {
  func.func @kernel(%arg0: i32, %arg1: i32, %arg2: i32, %arg3: memref<128x128xf32, #tpu.memory_space<vmem>>, %arg4: memref<128x128xf32, #tpu.memory_space<vmem>>, %arg5: memref<128x128xf32, #tpu.memory_space<vmem>>, %arg6: memref<128x128xf32, #tpu.memory_space<vmem>>) attributes {dimension_semantics = [#tpu.dimension_semantics<parallel>, #tpu.dimension_semantics<parallel>, #tpu.dimension_semantics<arbitrary>], iteration_bounds = array<i64: 1, 1, 1>, scalar_prefetch = 0 : i64, scratch_operands = 1 : i64, tpu.core_type = #tpu.core_type<tc>, window_params = [{transform_indices = @transform_0, window_bounds = array<i64: 128, 128>}, {transform_indices = @transform_1, window_bounds = array<i64: 128, 128>}, {transform_indices = @transform_2, window_bounds = array<i64: 128, 128>}]} {
    %c0_i32 = arith.constant 0 : i32
    %0 = arith.cmpi eq, %arg2, %c0_i32 : i32
    %1 = arith.extui %0 : i1 to i32
    %c0_i32_0 = arith.constant 0 : i32
    %2 = arith.cmpi ne, %1, %c0_i32_0 : i32
    scf.if %2 {
      %cst_10 = arith.constant 0.000000e+00 : f32
      %14 = vector.broadcast %cst_10 : f32 to vector<128x128xf32>
      %c0_11 = arith.constant 0 : index
      %c0_12 = arith.constant 0 : index
      %15 = vector.load %arg6[%c0_11, %c0_12] : memref<128x128xf32, #tpu.memory_space<vmem>>, vector<128x128xf32>
      tpu.vector_store %arg6[%c0_11, %c0_12], %14 {strides = array<i32>} : memref<128x128xf32, #tpu.memory_space<vmem>>, vector<128x128xf32>,
    } else {
    }
    %c0 = arith.constant 0 : index
    %c0_1 = arith.constant 0 : index
    %3 = vector.load %arg3[%c0, %c0_1] : memref<128x128xf32, #tpu.memory_space<vmem>>, vector<128x128xf32>
    %c0_2 = arith.constant 0 : index
    %c0_3 = arith.constant 0 : index
    %4 = vector.load %arg4[%c0_2, %c0_3] : memref<128x128xf32, #tpu.memory_space<vmem>>, vector<128x128xf32>
    %5 = arith.truncf %3 : vector<128x128xf32> to vector<128x128xbf16>
    %6 = arith.truncf %4 : vector<128x128xf32> to vector<128x128xbf16>
    %c0_4 = arith.constant 0 : index
    %c0_5 = arith.constant 0 : index
    %7 = vector.load %arg6[%c0_4, %c0_5] : memref<128x128xf32, #tpu.memory_space<vmem>>, vector<128x128xf32>
    %cst = arith.constant dense<0.000000e+00> : vector<128x128xf32>
    %8 = tpu.matmul %5, %6, %cst {dimension_numbers = #tpu.dot_dimension_numbers<[1], [0], [0], [1], [0, 0, 1, 1], [], []>} : vector<128x128xbf16>, vector<128x128xbf16>, vector<128x128xf32> -> vector<128x128xf32>
    %9 = arith.addf %7, %8 : vector<128x128xf32>
    %c0_6 = arith.constant 0 : index
    %c0_7 = arith.constant 0 : index
    %10 = vector.load %arg6[%c0_6, %c0_7] : memref<128x128xf32, #tpu.memory_space<vmem>>, vector<128x128xf32>
    tpu.vector_store %arg6[%c0_6, %c0_7], %9 {strides = array<i32>} : memref<128x128xf32, #tpu.memory_space<vmem>>, vector<128x128xf32>,
    %c0_i32_8 = arith.constant 0 : i32
    %11 = arith.cmpi eq, %arg2, %c0_i32_8 : i32
    %12 = arith.extui %11 : i1 to i32
    %c0_i32_9 = arith.constant 0 : i32
    %13 = arith.cmpi ne, %12, %c0_i32_9 : i32
    scf.if %13 {
      %c0_10 = arith.constant 0 : index
      %c0_11 = arith.constant 0 : index
      %14 = vector.load %arg6[%c0_10, %c0_11] : memref<128x128xf32, #tpu.memory_space<vmem>>, vector<128x128xf32>
      %c0_12 = arith.constant 0 : index
      %c0_13 = arith.constant 0 : index
      %15 = vector.load %arg5[%c0_12, %c0_13] : memref<128x128xf32, #tpu.memory_space<vmem>>, vector<128x128xf32>
      tpu.vector_store %arg5[%c0_12, %c0_13], %14 {strides = array<i32>} : memref<128x128xf32, #tpu.memory_space<vmem>>, vector<128x128xf32>,
    } else {
    }
    return
  }
  func.func @transform_0(%arg0: i32, %arg1: i32, %arg2: i32) -> (i32, i32) {
    %c0_i32 = arith.constant 0 : i32
    return %arg0, %arg2 : i32, i32
  }
  func.func @transform_1(%arg0: i32, %arg1: i32, %arg2: i32) -> (i32, i32) {
    %c0_i32 = arith.constant 0 : i32
    return %arg2, %arg1 : i32, i32
  }
  func.func @transform_2(%arg0: i32, %arg1: i32, %arg2: i32) -> (i32, i32) {
    %c0_i32 = arith.constant 0 : i32
    return %arg0, %arg1 : i32, i32
  }
}

module attributes {stable_mosaic.version = 11 : i64} {
  func.func @_bn_lrelu_kernel(%arg0: i32, %arg1: memref<16x64xf32, #tpu.memory_space<vmem>>, %arg2: memref<1x64xf32, #tpu.memory_space<vmem>>, %arg3: memref<1x64xf32, #tpu.memory_space<vmem>>, %arg4: memref<16x64xf32, #tpu.memory_space<vmem>>) attributes {dimension_semantics = [#tpu.dimension_semantics<parallel>], iteration_bounds = array<i64: 1>, scalar_prefetch = 0 : i64, scratch_operands = 0 : i64, tpu.core_type = #tpu.core_type<tc>, window_params = [{transform_indices = @transform_0, window_bounds = array<i64: 16, 64>}, {pipeline_mode = #tpu.pipeline_mode<synchronous>, transform_indices = @transform_1, window_bounds = array<i64: 1, 64>}, {pipeline_mode = #tpu.pipeline_mode<synchronous>, transform_indices = @transform_2, window_bounds = array<i64: 1, 64>}, {transform_indices = @transform_3, window_bounds = array<i64: 16, 64>}]} {
    %c0 = arith.constant 0 : index
    %c0_0 = arith.constant 0 : index
    %0 = vector.load %arg1[%c0, %c0_0] : memref<16x64xf32, #tpu.memory_space<vmem>>, vector<16x64xf32>
    %c0_1 = arith.constant 0 : index
    %c0_2 = arith.constant 0 : index
    %1 = vector.load %arg2[%c0_1, %c0_2] : memref<1x64xf32, #tpu.memory_space<vmem>>, vector<1x64xf32>
    %2 = vector.broadcast %1 : vector<1x64xf32> to vector<16x64xf32>
    %3 = arith.mulf %0, %2 : vector<16x64xf32>
    %c0_3 = arith.constant 0 : index
    %c0_4 = arith.constant 0 : index
    %4 = vector.load %arg3[%c0_3, %c0_4] : memref<1x64xf32, #tpu.memory_space<vmem>>, vector<1x64xf32>
    %5 = vector.broadcast %4 : vector<1x64xf32> to vector<16x64xf32>
    %6 = arith.addf %3, %5 : vector<16x64xf32>
    %cst = arith.constant 0.000000e+00 : f32
    %7 = vector.broadcast %cst : f32 to vector<16x64xf32>
    %8 = arith.cmpf oge, %6, %7 : vector<16x64xf32>
    %cst_5 = arith.constant 0.00999999977 : f32
    %9 = vector.broadcast %cst_5 : f32 to vector<16x64xf32>
    %10 = arith.mulf %9, %6 : vector<16x64xf32>
    %11 = arith.select %8, %6, %10 : vector<16x64xi1>, vector<16x64xf32>
    %c0_6 = arith.constant 0 : index
    %c0_7 = arith.constant 0 : index
    %12 = vector.load %arg4[%c0_6, %c0_7] : memref<16x64xf32, #tpu.memory_space<vmem>>, vector<16x64xf32>
    tpu.vector_store %arg4[%c0_6, %c0_7], %11 {strides = array<i32>} : memref<16x64xf32, #tpu.memory_space<vmem>>, vector<16x64xf32>,
    return
  }
  func.func @transform_0(%arg0: i32) -> (i32, i32) {
    %c0_i32 = arith.constant 0 : i32
    %c0_i32_0 = arith.constant 0 : i32
    return %arg0, %c0_i32 : i32, i32
  }
  func.func @transform_1(%arg0: i32) -> (i32, i32) {
    %c0_i32 = arith.constant 0 : i32
    %c0_i32_0 = arith.constant 0 : i32
    %c0_i32_1 = arith.constant 0 : i32
    return %c0_i32, %c0_i32_0 : i32, i32
  }
  func.func @transform_2(%arg0: i32) -> (i32, i32) {
    %c0_i32 = arith.constant 0 : i32
    %c0_i32_0 = arith.constant 0 : i32
    %c0_i32_1 = arith.constant 0 : i32
    return %c0_i32, %c0_i32_0 : i32, i32
  }
  func.func @transform_3(%arg0: i32) -> (i32, i32) {
    %c0_i32 = arith.constant 0 : i32
    %c0_i32_0 = arith.constant 0 : i32
    return %arg0, %c0_i32 : i32, i32
  }
}

module attributes {stable_mosaic.version = 11 : i64} {
  func.func @kernel(%arg0: i32, %arg1: i32, %arg2: i32, %arg3: memref<128x128xf32, #tpu.memory_space<vmem>>, %arg4: memref<128x128xf32, #tpu.memory_space<vmem>>, %arg5: memref<1x128xf32, #tpu.memory_space<vmem>>, %arg6: memref<1x128xf32, #tpu.memory_space<vmem>>, %arg7: memref<128x128xf32, #tpu.memory_space<vmem>>, %arg8: memref<128x128xf32, #tpu.memory_space<vmem>>) attributes {dimension_semantics = [#tpu.dimension_semantics<parallel>, #tpu.dimension_semantics<parallel>, #tpu.dimension_semantics<arbitrary>], iteration_bounds = array<i64: 1, 1, 1>, scalar_prefetch = 0 : i64, scratch_operands = 1 : i64, tpu.core_type = #tpu.core_type<tc>, window_params = [{transform_indices = @transform_0, window_bounds = array<i64: 128, 128>}, {transform_indices = @transform_1, window_bounds = array<i64: 128, 128>}, {transform_indices = @transform_2, window_bounds = array<i64: 1, 128>}, {transform_indices = @transform_3, window_bounds = array<i64: 1, 128>}, {transform_indices = @transform_4, window_bounds = array<i64: 128, 128>}]} {
    %c0_i32 = arith.constant 0 : i32
    %0 = arith.cmpi eq, %arg2, %c0_i32 : i32
    %1 = arith.extui %0 : i1 to i32
    %c0_i32_0 = arith.constant 0 : i32
    %2 = arith.cmpi ne, %1, %c0_i32_0 : i32
    scf.if %2 {
      %cst_16 = arith.constant 0.000000e+00 : f32
      %25 = vector.broadcast %cst_16 : f32 to vector<128x128xf32>
      %c0_17 = arith.constant 0 : index
      %c0_18 = arith.constant 0 : index
      %26 = vector.load %arg8[%c0_17, %c0_18] : memref<128x128xf32, #tpu.memory_space<vmem>>, vector<128x128xf32>
      tpu.vector_store %arg8[%c0_17, %c0_18], %25 {strides = array<i32>} : memref<128x128xf32, #tpu.memory_space<vmem>>, vector<128x128xf32>,
    } else {
    }
    %c0 = arith.constant 0 : index
    %c0_1 = arith.constant 0 : index
    %3 = vector.load %arg3[%c0, %c0_1] : memref<128x128xf32, #tpu.memory_space<vmem>>, vector<128x128xf32>
    %c0_2 = arith.constant 0 : index
    %c0_3 = arith.constant 0 : index
    %4 = vector.load %arg5[%c0_2, %c0_3] : memref<1x128xf32, #tpu.memory_space<vmem>>, vector<1x128xf32>
    %5 = vector.broadcast %4 : vector<1x128xf32> to vector<128x128xf32>
    %6 = arith.mulf %3, %5 : vector<128x128xf32>
    %c0_4 = arith.constant 0 : index
    %c0_5 = arith.constant 0 : index
    %7 = vector.load %arg6[%c0_4, %c0_5] : memref<1x128xf32, #tpu.memory_space<vmem>>, vector<1x128xf32>
    %8 = vector.broadcast %7 : vector<1x128xf32> to vector<128x128xf32>
    %9 = arith.addf %6, %8 : vector<128x128xf32>
    %cst = arith.constant 0.000000e+00 : f32
    %10 = vector.broadcast %cst : f32 to vector<128x128xf32>
    %11 = arith.cmpf oge, %9, %10 : vector<128x128xf32>
    %cst_6 = arith.constant 0.00999999977 : f32
    %12 = vector.broadcast %cst_6 : f32 to vector<128x128xf32>
    %13 = arith.mulf %12, %9 : vector<128x128xf32>
    %14 = arith.select %11, %9, %13 : vector<128x128xi1>, vector<128x128xf32>
    %c0_7 = arith.constant 0 : index
    %c0_8 = arith.constant 0 : index
    %15 = vector.load %arg4[%c0_7, %c0_8] : memref<128x128xf32, #tpu.memory_space<vmem>>, vector<128x128xf32>
    %16 = arith.truncf %14 : vector<128x128xf32> to vector<128x128xbf16>
    %17 = arith.truncf %15 : vector<128x128xf32> to vector<128x128xbf16>
    %c0_9 = arith.constant 0 : index
    %c0_10 = arith.constant 0 : index
    %18 = vector.load %arg8[%c0_9, %c0_10] : memref<128x128xf32, #tpu.memory_space<vmem>>, vector<128x128xf32>
    %cst_11 = arith.constant dense<0.000000e+00> : vector<128x128xf32>
    %19 = tpu.matmul %16, %17, %cst_11 {dimension_numbers = #tpu.dot_dimension_numbers<[1], [0], [0], [1], [0, 0, 1, 1], [], []>} : vector<128x128xbf16>, vector<128x128xbf16>, vector<128x128xf32> -> vector<128x128xf32>
    %20 = arith.addf %18, %19 : vector<128x128xf32>
    %c0_12 = arith.constant 0 : index
    %c0_13 = arith.constant 0 : index
    %21 = vector.load %arg8[%c0_12, %c0_13] : memref<128x128xf32, #tpu.memory_space<vmem>>, vector<128x128xf32>
    tpu.vector_store %arg8[%c0_12, %c0_13], %20 {strides = array<i32>} : memref<128x128xf32, #tpu.memory_space<vmem>>, vector<128x128xf32>,
    %c0_i32_14 = arith.constant 0 : i32
    %22 = arith.cmpi eq, %arg2, %c0_i32_14 : i32
    %23 = arith.extui %22 : i1 to i32
    %c0_i32_15 = arith.constant 0 : i32
    %24 = arith.cmpi ne, %23, %c0_i32_15 : i32
    scf.if %24 {
      %c0_16 = arith.constant 0 : index
      %c0_17 = arith.constant 0 : index
      %25 = vector.load %arg8[%c0_16, %c0_17] : memref<128x128xf32, #tpu.memory_space<vmem>>, vector<128x128xf32>
      %c0_18 = arith.constant 0 : index
      %c0_19 = arith.constant 0 : index
      %26 = vector.load %arg7[%c0_18, %c0_19] : memref<128x128xf32, #tpu.memory_space<vmem>>, vector<128x128xf32>
      tpu.vector_store %arg7[%c0_18, %c0_19], %25 {strides = array<i32>} : memref<128x128xf32, #tpu.memory_space<vmem>>, vector<128x128xf32>,
    } else {
    }
    return
  }
  func.func @transform_0(%arg0: i32, %arg1: i32, %arg2: i32) -> (i32, i32) {
    %c0_i32 = arith.constant 0 : i32
    return %arg0, %arg2 : i32, i32
  }
  func.func @transform_1(%arg0: i32, %arg1: i32, %arg2: i32) -> (i32, i32) {
    %c0_i32 = arith.constant 0 : i32
    return %arg2, %arg1 : i32, i32
  }
  func.func @transform_2(%arg0: i32, %arg1: i32, %arg2: i32) -> (i32, i32) {
    %c0_i32 = arith.constant 0 : i32
    %c0_i32_0 = arith.constant 0 : i32
    return %c0_i32, %arg2 : i32, i32
  }
  func.func @transform_3(%arg0: i32, %arg1: i32, %arg2: i32) -> (i32, i32) {
    %c0_i32 = arith.constant 0 : i32
    %c0_i32_0 = arith.constant 0 : i32
    return %c0_i32, %arg2 : i32, i32
  }
  func.func @transform_4(%arg0: i32, %arg1: i32, %arg2: i32) -> (i32, i32) {
    %c0_i32 = arith.constant 0 : i32
    return %arg0, %arg1 : i32, i32
  }
}

module attributes {stable_mosaic.version = 11 : i64} {
  func.func @kernel(%arg0: i32, %arg1: i32, %arg2: i32, %arg3: memref<128x128xf32, #tpu.memory_space<vmem>>, %arg4: memref<128x128xf32, #tpu.memory_space<vmem>>, %arg5: memref<1x128xf32, #tpu.memory_space<vmem>>, %arg6: memref<1x128xf32, #tpu.memory_space<vmem>>, %arg7: memref<128x128xf32, #tpu.memory_space<vmem>>, %arg8: memref<128x128xf32, #tpu.memory_space<vmem>>) attributes {dimension_semantics = [#tpu.dimension_semantics<parallel>, #tpu.dimension_semantics<parallel>, #tpu.dimension_semantics<arbitrary>], iteration_bounds = array<i64: 1, 1, 1>, scalar_prefetch = 0 : i64, scratch_operands = 1 : i64, tpu.core_type = #tpu.core_type<tc>, window_params = [{transform_indices = @transform_0, window_bounds = array<i64: 128, 128>}, {transform_indices = @transform_1, window_bounds = array<i64: 128, 128>}, {transform_indices = @transform_2, window_bounds = array<i64: 1, 128>}, {transform_indices = @transform_3, window_bounds = array<i64: 1, 128>}, {transform_indices = @transform_4, window_bounds = array<i64: 128, 128>}]} {
    %c0_i32 = arith.constant 0 : i32
    %0 = arith.cmpi eq, %arg2, %c0_i32 : i32
    %1 = arith.extui %0 : i1 to i32
    %c0_i32_0 = arith.constant 0 : i32
    %2 = arith.cmpi ne, %1, %c0_i32_0 : i32
    scf.if %2 {
      %cst_10 = arith.constant 0.000000e+00 : f32
      %14 = vector.broadcast %cst_10 : f32 to vector<128x128xf32>
      %c0_11 = arith.constant 0 : index
      %c0_12 = arith.constant 0 : index
      %15 = vector.load %arg8[%c0_11, %c0_12] : memref<128x128xf32, #tpu.memory_space<vmem>>, vector<128x128xf32>
      tpu.vector_store %arg8[%c0_11, %c0_12], %14 {strides = array<i32>} : memref<128x128xf32, #tpu.memory_space<vmem>>, vector<128x128xf32>,
    } else {
    }
    %c0 = arith.constant 0 : index
    %c0_1 = arith.constant 0 : index
    %3 = vector.load %arg3[%c0, %c0_1] : memref<128x128xf32, #tpu.memory_space<vmem>>, vector<128x128xf32>
    %c0_2 = arith.constant 0 : index
    %c0_3 = arith.constant 0 : index
    %4 = vector.load %arg4[%c0_2, %c0_3] : memref<128x128xf32, #tpu.memory_space<vmem>>, vector<128x128xf32>
    %5 = arith.truncf %3 : vector<128x128xf32> to vector<128x128xbf16>
    %6 = arith.truncf %4 : vector<128x128xf32> to vector<128x128xbf16>
    %c0_4 = arith.constant 0 : index
    %c0_5 = arith.constant 0 : index
    %7 = vector.load %arg8[%c0_4, %c0_5] : memref<128x128xf32, #tpu.memory_space<vmem>>, vector<128x128xf32>
    %cst = arith.constant dense<0.000000e+00> : vector<128x128xf32>
    %8 = tpu.matmul %5, %6, %cst {dimension_numbers = #tpu.dot_dimension_numbers<[1], [0], [0], [1], [0, 0, 1, 1], [], []>} : vector<128x128xbf16>, vector<128x128xbf16>, vector<128x128xf32> -> vector<128x128xf32>
    %9 = arith.addf %7, %8 : vector<128x128xf32>
    %c0_6 = arith.constant 0 : index
    %c0_7 = arith.constant 0 : index
    %10 = vector.load %arg8[%c0_6, %c0_7] : memref<128x128xf32, #tpu.memory_space<vmem>>, vector<128x128xf32>
    tpu.vector_store %arg8[%c0_6, %c0_7], %9 {strides = array<i32>} : memref<128x128xf32, #tpu.memory_space<vmem>>, vector<128x128xf32>,
    %c0_i32_8 = arith.constant 0 : i32
    %11 = arith.cmpi eq, %arg2, %c0_i32_8 : i32
    %12 = arith.extui %11 : i1 to i32
    %c0_i32_9 = arith.constant 0 : i32
    %13 = arith.cmpi ne, %12, %c0_i32_9 : i32
    scf.if %13 {
      %c0_10 = arith.constant 0 : index
      %c0_11 = arith.constant 0 : index
      %14 = vector.load %arg8[%c0_10, %c0_11] : memref<128x128xf32, #tpu.memory_space<vmem>>, vector<128x128xf32>
      %c0_12 = arith.constant 0 : index
      %c0_13 = arith.constant 0 : index
      %15 = vector.load %arg5[%c0_12, %c0_13] : memref<1x128xf32, #tpu.memory_space<vmem>>, vector<1x128xf32>
      %16 = vector.broadcast %15 : vector<1x128xf32> to vector<128x128xf32>
      %17 = arith.mulf %14, %16 : vector<128x128xf32>
      %c0_14 = arith.constant 0 : index
      %c0_15 = arith.constant 0 : index
      %18 = vector.load %arg6[%c0_14, %c0_15] : memref<1x128xf32, #tpu.memory_space<vmem>>, vector<1x128xf32>
      %19 = vector.broadcast %18 : vector<1x128xf32> to vector<128x128xf32>
      %20 = arith.addf %17, %19 : vector<128x128xf32>
      %cst_16 = arith.constant 0.000000e+00 : f32
      %21 = vector.broadcast %cst_16 : f32 to vector<128x128xf32>
      %22 = arith.cmpf oge, %20, %21 : vector<128x128xf32>
      %cst_17 = arith.constant 0.00999999977 : f32
      %23 = vector.broadcast %cst_17 : f32 to vector<128x128xf32>
      %24 = arith.mulf %23, %20 : vector<128x128xf32>
      %25 = arith.select %22, %20, %24 : vector<128x128xi1>, vector<128x128xf32>
      %c0_18 = arith.constant 0 : index
      %c0_19 = arith.constant 0 : index
      %26 = vector.load %arg7[%c0_18, %c0_19] : memref<128x128xf32, #tpu.memory_space<vmem>>, vector<128x128xf32>
      tpu.vector_store %arg7[%c0_18, %c0_19], %25 {strides = array<i32>} : memref<128x128xf32, #tpu.memory_space<vmem>>, vector<128x128xf32>,
    } else {
    }
    return
  }
  func.func @transform_0(%arg0: i32, %arg1: i32, %arg2: i32) -> (i32, i32) {
    %c0_i32 = arith.constant 0 : i32
    return %arg0, %arg2 : i32, i32
  }
  func.func @transform_1(%arg0: i32, %arg1: i32, %arg2: i32) -> (i32, i32) {
    %c0_i32 = arith.constant 0 : i32
    return %arg2, %arg1 : i32, i32
  }
  func.func @transform_2(%arg0: i32, %arg1: i32, %arg2: i32) -> (i32, i32) {
    %c0_i32 = arith.constant 0 : i32
    %c0_i32_0 = arith.constant 0 : i32
    return %c0_i32, %arg1 : i32, i32
  }
  func.func @transform_3(%arg0: i32, %arg1: i32, %arg2: i32) -> (i32, i32) {
    %c0_i32 = arith.constant 0 : i32
    %c0_i32_0 = arith.constant 0 : i32
    return %c0_i32, %arg1 : i32, i32
  }
  func.func @transform_4(%arg0: i32, %arg1: i32, %arg2: i32) -> (i32, i32) {
    %c0_i32 = arith.constant 0 : i32
    return %arg0, %arg1 : i32, i32
  }
}

module attributes {stable_mosaic.version = 11 : i64} {
  func.func @kernel(%arg0: i32, %arg1: i32, %arg2: i32, %arg3: memref<128x128xf32, #tpu.memory_space<vmem>>, %arg4: memref<128x128xf32, #tpu.memory_space<vmem>>, %arg5: memref<128x128xf32, #tpu.memory_space<vmem>>, %arg6: memref<128x128xf32, #tpu.memory_space<vmem>>, %arg7: memref<128x128xf32, #tpu.memory_space<vmem>>) attributes {dimension_semantics = [#tpu.dimension_semantics<parallel>, #tpu.dimension_semantics<parallel>, #tpu.dimension_semantics<arbitrary>], iteration_bounds = array<i64: 1, 1, 1>, scalar_prefetch = 0 : i64, scratch_operands = 1 : i64, tpu.core_type = #tpu.core_type<tc>, window_params = [{transform_indices = @transform_0, window_bounds = array<i64: 128, 128>}, {transform_indices = @transform_1, window_bounds = array<i64: 128, 128>}, {transform_indices = @transform_2, window_bounds = array<i64: 128, 128>}, {transform_indices = @transform_3, window_bounds = array<i64: 128, 128>}]} {
    %c0_i32 = arith.constant 0 : i32
    %0 = arith.cmpi eq, %arg2, %c0_i32 : i32
    %1 = arith.extui %0 : i1 to i32
    %c0_i32_0 = arith.constant 0 : i32
    %2 = arith.cmpi ne, %1, %c0_i32_0 : i32
    scf.if %2 {
      %cst_10 = arith.constant 0.000000e+00 : f32
      %14 = vector.broadcast %cst_10 : f32 to vector<128x128xf32>
      %c0_11 = arith.constant 0 : index
      %c0_12 = arith.constant 0 : index
      %15 = vector.load %arg7[%c0_11, %c0_12] : memref<128x128xf32, #tpu.memory_space<vmem>>, vector<128x128xf32>
      tpu.vector_store %arg7[%c0_11, %c0_12], %14 {strides = array<i32>} : memref<128x128xf32, #tpu.memory_space<vmem>>, vector<128x128xf32>,
    } else {
    }
    %c0 = arith.constant 0 : index
    %c0_1 = arith.constant 0 : index
    %3 = vector.load %arg3[%c0, %c0_1] : memref<128x128xf32, #tpu.memory_space<vmem>>, vector<128x128xf32>
    %c0_2 = arith.constant 0 : index
    %c0_3 = arith.constant 0 : index
    %4 = vector.load %arg4[%c0_2, %c0_3] : memref<128x128xf32, #tpu.memory_space<vmem>>, vector<128x128xf32>
    %5 = arith.truncf %3 : vector<128x128xf32> to vector<128x128xbf16>
    %6 = arith.truncf %4 : vector<128x128xf32> to vector<128x128xbf16>
    %c0_4 = arith.constant 0 : index
    %c0_5 = arith.constant 0 : index
    %7 = vector.load %arg7[%c0_4, %c0_5] : memref<128x128xf32, #tpu.memory_space<vmem>>, vector<128x128xf32>
    %cst = arith.constant dense<0.000000e+00> : vector<128x128xf32>
    %8 = tpu.matmul %5, %6, %cst {dimension_numbers = #tpu.dot_dimension_numbers<[1], [0], [0], [1], [0, 0, 1, 1], [], []>} : vector<128x128xbf16>, vector<128x128xbf16>, vector<128x128xf32> -> vector<128x128xf32>
    %9 = arith.addf %7, %8 : vector<128x128xf32>
    %c0_6 = arith.constant 0 : index
    %c0_7 = arith.constant 0 : index
    %10 = vector.load %arg7[%c0_6, %c0_7] : memref<128x128xf32, #tpu.memory_space<vmem>>, vector<128x128xf32>
    tpu.vector_store %arg7[%c0_6, %c0_7], %9 {strides = array<i32>} : memref<128x128xf32, #tpu.memory_space<vmem>>, vector<128x128xf32>,
    %c0_i32_8 = arith.constant 0 : i32
    %11 = arith.cmpi eq, %arg2, %c0_i32_8 : i32
    %12 = arith.extui %11 : i1 to i32
    %c0_i32_9 = arith.constant 0 : i32
    %13 = arith.cmpi ne, %12, %c0_i32_9 : i32
    scf.if %13 {
      %c0_10 = arith.constant 0 : index
      %c0_11 = arith.constant 0 : index
      %14 = vector.load %arg7[%c0_10, %c0_11] : memref<128x128xf32, #tpu.memory_space<vmem>>, vector<128x128xf32>
      %c0_12 = arith.constant 0 : index
      %c0_13 = arith.constant 0 : index
      %15 = vector.load %arg5[%c0_12, %c0_13] : memref<128x128xf32, #tpu.memory_space<vmem>>, vector<128x128xf32>
      %cst_14 = arith.constant 2.000000e+00 : f32
      %16 = vector.broadcast %cst_14 : f32 to vector<128x128xf32>
      %17 = arith.mulf %16, %15 : vector<128x128xf32>
      %18 = arith.addf %14, %17 : vector<128x128xf32>
      %c0_15 = arith.constant 0 : index
      %c0_16 = arith.constant 0 : index
      %19 = vector.load %arg6[%c0_15, %c0_16] : memref<128x128xf32, #tpu.memory_space<vmem>>, vector<128x128xf32>
      tpu.vector_store %arg6[%c0_15, %c0_16], %18 {strides = array<i32>} : memref<128x128xf32, #tpu.memory_space<vmem>>, vector<128x128xf32>,
    } else {
    }
    return
  }
  func.func @transform_0(%arg0: i32, %arg1: i32, %arg2: i32) -> (i32, i32) {
    %c0_i32 = arith.constant 0 : i32
    return %arg0, %arg2 : i32, i32
  }
  func.func @transform_1(%arg0: i32, %arg1: i32, %arg2: i32) -> (i32, i32) {
    %c0_i32 = arith.constant 0 : i32
    return %arg2, %arg1 : i32, i32
  }
  func.func @transform_2(%arg0: i32, %arg1: i32, %arg2: i32) -> (i32, i32) {
    %c0_i32 = arith.constant 0 : i32
    return %arg0, %arg1 : i32, i32
  }
  func.func @transform_3(%arg0: i32, %arg1: i32, %arg2: i32) -> (i32, i32) {
    %c0_i32 = arith.constant 0 : i32
    return %arg0, %arg1 : i32, i32
  }
}

module attributes {stable_mosaic.version = 11 : i64} {
  func.func @_bn_lrelu_kernel(%arg0: i32, %arg1: memref<16x128xf32, #tpu.memory_space<vmem>>, %arg2: memref<1x128xf32, #tpu.memory_space<vmem>>, %arg3: memref<1x128xf32, #tpu.memory_space<vmem>>, %arg4: memref<16x128xf32, #tpu.memory_space<vmem>>) attributes {dimension_semantics = [#tpu.dimension_semantics<parallel>], iteration_bounds = array<i64: 1>, scalar_prefetch = 0 : i64, scratch_operands = 0 : i64, tpu.core_type = #tpu.core_type<tc>, window_params = [{transform_indices = @transform_0, window_bounds = array<i64: 16, 128>}, {pipeline_mode = #tpu.pipeline_mode<synchronous>, transform_indices = @transform_1, window_bounds = array<i64: 1, 128>}, {pipeline_mode = #tpu.pipeline_mode<synchronous>, transform_indices = @transform_2, window_bounds = array<i64: 1, 128>}, {transform_indices = @transform_3, window_bounds = array<i64: 16, 128>}]} {
    %c0 = arith.constant 0 : index
    %c0_0 = arith.constant 0 : index
    %0 = vector.load %arg1[%c0, %c0_0] : memref<16x128xf32, #tpu.memory_space<vmem>>, vector<16x128xf32>
    %c0_1 = arith.constant 0 : index
    %c0_2 = arith.constant 0 : index
    %1 = vector.load %arg2[%c0_1, %c0_2] : memref<1x128xf32, #tpu.memory_space<vmem>>, vector<1x128xf32>
    %2 = vector.broadcast %1 : vector<1x128xf32> to vector<16x128xf32>
    %3 = arith.mulf %0, %2 : vector<16x128xf32>
    %c0_3 = arith.constant 0 : index
    %c0_4 = arith.constant 0 : index
    %4 = vector.load %arg3[%c0_3, %c0_4] : memref<1x128xf32, #tpu.memory_space<vmem>>, vector<1x128xf32>
    %5 = vector.broadcast %4 : vector<1x128xf32> to vector<16x128xf32>
    %6 = arith.addf %3, %5 : vector<16x128xf32>
    %cst = arith.constant 0.000000e+00 : f32
    %7 = vector.broadcast %cst : f32 to vector<16x128xf32>
    %8 = arith.cmpf oge, %6, %7 : vector<16x128xf32>
    %cst_5 = arith.constant 0.00999999977 : f32
    %9 = vector.broadcast %cst_5 : f32 to vector<16x128xf32>
    %10 = arith.mulf %9, %6 : vector<16x128xf32>
    %11 = arith.select %8, %6, %10 : vector<16x128xi1>, vector<16x128xf32>
    %c0_6 = arith.constant 0 : index
    %c0_7 = arith.constant 0 : index
    %12 = vector.load %arg4[%c0_6, %c0_7] : memref<16x128xf32, #tpu.memory_space<vmem>>, vector<16x128xf32>
    tpu.vector_store %arg4[%c0_6, %c0_7], %11 {strides = array<i32>} : memref<16x128xf32, #tpu.memory_space<vmem>>, vector<16x128xf32>,
    return
  }
  func.func @transform_0(%arg0: i32) -> (i32, i32) {
    %c0_i32 = arith.constant 0 : i32
    %c0_i32_0 = arith.constant 0 : i32
    return %arg0, %c0_i32 : i32, i32
  }
  func.func @transform_1(%arg0: i32) -> (i32, i32) {
    %c0_i32 = arith.constant 0 : i32
    %c0_i32_0 = arith.constant 0 : i32
    %c0_i32_1 = arith.constant 0 : i32
    return %c0_i32, %c0_i32_0 : i32, i32
  }
  func.func @transform_2(%arg0: i32) -> (i32, i32) {
    %c0_i32 = arith.constant 0 : i32
    %c0_i32_0 = arith.constant 0 : i32
    %c0_i32_1 = arith.constant 0 : i32
    return %c0_i32, %c0_i32_0 : i32, i32
  }
  func.func @transform_3(%arg0: i32) -> (i32, i32) {
    %c0_i32 = arith.constant 0 : i32
    %c0_i32_0 = arith.constant 0 : i32
    return %arg0, %c0_i32 : i32, i32
  }
}

module attributes {stable_mosaic.version = 11 : i64} {
  func.func @kernel(%arg0: i32, %arg1: i32, %arg2: i32, %arg3: memref<128x256xf32, #tpu.memory_space<vmem>>, %arg4: memref<256x128xf32, #tpu.memory_space<vmem>>, %arg5: memref<128x128xf32, #tpu.memory_space<vmem>>, %arg6: memref<128x128xf32, #tpu.memory_space<vmem>>) attributes {dimension_semantics = [#tpu.dimension_semantics<parallel>, #tpu.dimension_semantics<parallel>, #tpu.dimension_semantics<arbitrary>], iteration_bounds = array<i64: 1, 1, 1>, scalar_prefetch = 0 : i64, scratch_operands = 1 : i64, tpu.core_type = #tpu.core_type<tc>, window_params = [{transform_indices = @transform_0, window_bounds = array<i64: 128, 256>}, {transform_indices = @transform_1, window_bounds = array<i64: 256, 128>}, {transform_indices = @transform_2, window_bounds = array<i64: 128, 128>}]} {
    %c0_i32 = arith.constant 0 : i32
    %0 = arith.cmpi eq, %arg2, %c0_i32 : i32
    %1 = arith.extui %0 : i1 to i32
    %c0_i32_0 = arith.constant 0 : i32
    %2 = arith.cmpi ne, %1, %c0_i32_0 : i32
    scf.if %2 {
      %cst_10 = arith.constant 0.000000e+00 : f32
      %14 = vector.broadcast %cst_10 : f32 to vector<128x128xf32>
      %c0_11 = arith.constant 0 : index
      %c0_12 = arith.constant 0 : index
      %15 = vector.load %arg6[%c0_11, %c0_12] : memref<128x128xf32, #tpu.memory_space<vmem>>, vector<128x128xf32>
      tpu.vector_store %arg6[%c0_11, %c0_12], %14 {strides = array<i32>} : memref<128x128xf32, #tpu.memory_space<vmem>>, vector<128x128xf32>,
    } else {
    }
    %c0 = arith.constant 0 : index
    %c0_1 = arith.constant 0 : index
    %3 = vector.load %arg3[%c0, %c0_1] : memref<128x256xf32, #tpu.memory_space<vmem>>, vector<128x256xf32>
    %c0_2 = arith.constant 0 : index
    %c0_3 = arith.constant 0 : index
    %4 = vector.load %arg4[%c0_2, %c0_3] : memref<256x128xf32, #tpu.memory_space<vmem>>, vector<256x128xf32>
    %5 = arith.truncf %3 : vector<128x256xf32> to vector<128x256xbf16>
    %6 = arith.truncf %4 : vector<256x128xf32> to vector<256x128xbf16>
    %c0_4 = arith.constant 0 : index
    %c0_5 = arith.constant 0 : index
    %7 = vector.load %arg6[%c0_4, %c0_5] : memref<128x128xf32, #tpu.memory_space<vmem>>, vector<128x128xf32>
    %cst = arith.constant dense<0.000000e+00> : vector<128x128xf32>
    %8 = tpu.matmul %5, %6, %cst {dimension_numbers = #tpu.dot_dimension_numbers<[1], [0], [0], [1], [0, 0, 1, 1], [], []>} : vector<128x256xbf16>, vector<256x128xbf16>, vector<128x128xf32> -> vector<128x128xf32>
    %9 = arith.addf %7, %8 : vector<128x128xf32>
    %c0_6 = arith.constant 0 : index
    %c0_7 = arith.constant 0 : index
    %10 = vector.load %arg6[%c0_6, %c0_7] : memref<128x128xf32, #tpu.memory_space<vmem>>, vector<128x128xf32>
    tpu.vector_store %arg6[%c0_6, %c0_7], %9 {strides = array<i32>} : memref<128x128xf32, #tpu.memory_space<vmem>>, vector<128x128xf32>,
    %c0_i32_8 = arith.constant 0 : i32
    %11 = arith.cmpi eq, %arg2, %c0_i32_8 : i32
    %12 = arith.extui %11 : i1 to i32
    %c0_i32_9 = arith.constant 0 : i32
    %13 = arith.cmpi ne, %12, %c0_i32_9 : i32
    scf.if %13 {
      %c0_10 = arith.constant 0 : index
      %c0_11 = arith.constant 0 : index
      %14 = vector.load %arg6[%c0_10, %c0_11] : memref<128x128xf32, #tpu.memory_space<vmem>>, vector<128x128xf32>
      %c0_12 = arith.constant 0 : index
      %c0_13 = arith.constant 0 : index
      %15 = vector.load %arg5[%c0_12, %c0_13] : memref<128x128xf32, #tpu.memory_space<vmem>>, vector<128x128xf32>
      tpu.vector_store %arg5[%c0_12, %c0_13], %14 {strides = array<i32>} : memref<128x128xf32, #tpu.memory_space<vmem>>, vector<128x128xf32>,
    } else {
    }
    return
  }
  func.func @transform_0(%arg0: i32, %arg1: i32, %arg2: i32) -> (i32, i32) {
    %c0_i32 = arith.constant 0 : i32
    return %arg0, %arg2 : i32, i32
  }
  func.func @transform_1(%arg0: i32, %arg1: i32, %arg2: i32) -> (i32, i32) {
    %c0_i32 = arith.constant 0 : i32
    return %arg2, %arg1 : i32, i32
  }
  func.func @transform_2(%arg0: i32, %arg1: i32, %arg2: i32) -> (i32, i32) {
    %c0_i32 = arith.constant 0 : i32
    return %arg0, %arg1 : i32, i32
  }
}

module attributes {stable_mosaic.version = 11 : i64} {
  func.func @kernel(%arg0: i32, %arg1: i32, %arg2: i32, %arg3: memref<128x256xf32, #tpu.memory_space<vmem>>, %arg4: memref<256x128xf32, #tpu.memory_space<vmem>>, %arg5: memref<128x128xf32, #tpu.memory_space<vmem>>, %arg6: memref<128x128xf32, #tpu.memory_space<vmem>>, %arg7: memref<128x128xf32, #tpu.memory_space<vmem>>) attributes {dimension_semantics = [#tpu.dimension_semantics<parallel>, #tpu.dimension_semantics<parallel>, #tpu.dimension_semantics<arbitrary>], iteration_bounds = array<i64: 1, 1, 1>, scalar_prefetch = 0 : i64, scratch_operands = 1 : i64, tpu.core_type = #tpu.core_type<tc>, window_params = [{transform_indices = @transform_0, window_bounds = array<i64: 128, 256>}, {transform_indices = @transform_1, window_bounds = array<i64: 256, 128>}, {transform_indices = @transform_2, window_bounds = array<i64: 128, 128>}, {transform_indices = @transform_3, window_bounds = array<i64: 128, 128>}]} {
    %c0_i32 = arith.constant 0 : i32
    %0 = arith.cmpi eq, %arg2, %c0_i32 : i32
    %1 = arith.extui %0 : i1 to i32
    %c0_i32_0 = arith.constant 0 : i32
    %2 = arith.cmpi ne, %1, %c0_i32_0 : i32
    scf.if %2 {
      %cst_10 = arith.constant 0.000000e+00 : f32
      %14 = vector.broadcast %cst_10 : f32 to vector<128x128xf32>
      %c0_11 = arith.constant 0 : index
      %c0_12 = arith.constant 0 : index
      %15 = vector.load %arg7[%c0_11, %c0_12] : memref<128x128xf32, #tpu.memory_space<vmem>>, vector<128x128xf32>
      tpu.vector_store %arg7[%c0_11, %c0_12], %14 {strides = array<i32>} : memref<128x128xf32, #tpu.memory_space<vmem>>, vector<128x128xf32>,
    } else {
    }
    %c0 = arith.constant 0 : index
    %c0_1 = arith.constant 0 : index
    %3 = vector.load %arg3[%c0, %c0_1] : memref<128x256xf32, #tpu.memory_space<vmem>>, vector<128x256xf32>
    %c0_2 = arith.constant 0 : index
    %c0_3 = arith.constant 0 : index
    %4 = vector.load %arg4[%c0_2, %c0_3] : memref<256x128xf32, #tpu.memory_space<vmem>>, vector<256x128xf32>
    %5 = arith.truncf %3 : vector<128x256xf32> to vector<128x256xbf16>
    %6 = arith.truncf %4 : vector<256x128xf32> to vector<256x128xbf16>
    %c0_4 = arith.constant 0 : index
    %c0_5 = arith.constant 0 : index
    %7 = vector.load %arg7[%c0_4, %c0_5] : memref<128x128xf32, #tpu.memory_space<vmem>>, vector<128x128xf32>
    %cst = arith.constant dense<0.000000e+00> : vector<128x128xf32>
    %8 = tpu.matmul %5, %6, %cst {dimension_numbers = #tpu.dot_dimension_numbers<[1], [0], [0], [1], [0, 0, 1, 1], [], []>} : vector<128x256xbf16>, vector<256x128xbf16>, vector<128x128xf32> -> vector<128x128xf32>
    %9 = arith.addf %7, %8 : vector<128x128xf32>
    %c0_6 = arith.constant 0 : index
    %c0_7 = arith.constant 0 : index
    %10 = vector.load %arg7[%c0_6, %c0_7] : memref<128x128xf32, #tpu.memory_space<vmem>>, vector<128x128xf32>
    tpu.vector_store %arg7[%c0_6, %c0_7], %9 {strides = array<i32>} : memref<128x128xf32, #tpu.memory_space<vmem>>, vector<128x128xf32>,
    %c0_i32_8 = arith.constant 0 : i32
    %11 = arith.cmpi eq, %arg2, %c0_i32_8 : i32
    %12 = arith.extui %11 : i1 to i32
    %c0_i32_9 = arith.constant 0 : i32
    %13 = arith.cmpi ne, %12, %c0_i32_9 : i32
    scf.if %13 {
      %c0_10 = arith.constant 0 : index
      %c0_11 = arith.constant 0 : index
      %14 = vector.load %arg7[%c0_10, %c0_11] : memref<128x128xf32, #tpu.memory_space<vmem>>, vector<128x128xf32>
      %c0_12 = arith.constant 0 : index
      %c0_13 = arith.constant 0 : index
      %15 = vector.load %arg5[%c0_12, %c0_13] : memref<128x128xf32, #tpu.memory_space<vmem>>, vector<128x128xf32>
      %cst_14 = arith.constant 2.000000e+00 : f32
      %16 = vector.broadcast %cst_14 : f32 to vector<128x128xf32>
      %17 = arith.mulf %16, %15 : vector<128x128xf32>
      %18 = arith.addf %14, %17 : vector<128x128xf32>
      %c0_15 = arith.constant 0 : index
      %c0_16 = arith.constant 0 : index
      %19 = vector.load %arg6[%c0_15, %c0_16] : memref<128x128xf32, #tpu.memory_space<vmem>>, vector<128x128xf32>
      tpu.vector_store %arg6[%c0_15, %c0_16], %18 {strides = array<i32>} : memref<128x128xf32, #tpu.memory_space<vmem>>, vector<128x128xf32>,
    } else {
    }
    return
  }
  func.func @transform_0(%arg0: i32, %arg1: i32, %arg2: i32) -> (i32, i32) {
    %c0_i32 = arith.constant 0 : i32
    return %arg0, %arg2 : i32, i32
  }
  func.func @transform_1(%arg0: i32, %arg1: i32, %arg2: i32) -> (i32, i32) {
    %c0_i32 = arith.constant 0 : i32
    return %arg2, %arg1 : i32, i32
  }
  func.func @transform_2(%arg0: i32, %arg1: i32, %arg2: i32) -> (i32, i32) {
    %c0_i32 = arith.constant 0 : i32
    return %arg0, %arg1 : i32, i32
  }
  func.func @transform_3(%arg0: i32, %arg1: i32, %arg2: i32) -> (i32, i32) {
    %c0_i32 = arith.constant 0 : i32
    return %arg0, %arg1 : i32, i32
  }
}

module attributes {stable_mosaic.version = 11 : i64} {
  func.func @kernel(%arg0: i32, %arg1: i32, %arg2: i32, %arg3: memref<128x256xf32, #tpu.memory_space<vmem>>, %arg4: memref<256x128xf32, #tpu.memory_space<vmem>>, %arg5: memref<1x128xf32, #tpu.memory_space<vmem>>, %arg6: memref<1x128xf32, #tpu.memory_space<vmem>>, %arg7: memref<128x128xf32, #tpu.memory_space<vmem>>, %arg8: memref<128x128xf32, #tpu.memory_space<vmem>>) attributes {dimension_semantics = [#tpu.dimension_semantics<parallel>, #tpu.dimension_semantics<parallel>, #tpu.dimension_semantics<arbitrary>], iteration_bounds = array<i64: 1, 1, 1>, scalar_prefetch = 0 : i64, scratch_operands = 1 : i64, tpu.core_type = #tpu.core_type<tc>, window_params = [{transform_indices = @transform_0, window_bounds = array<i64: 128, 256>}, {transform_indices = @transform_1, window_bounds = array<i64: 256, 128>}, {transform_indices = @transform_2, window_bounds = array<i64: 1, 128>}, {transform_indices = @transform_3, window_bounds = array<i64: 1, 128>}, {transform_indices = @transform_4, window_bounds = array<i64: 128, 128>}]} {
    %c0_i32 = arith.constant 0 : i32
    %0 = arith.cmpi eq, %arg2, %c0_i32 : i32
    %1 = arith.extui %0 : i1 to i32
    %c0_i32_0 = arith.constant 0 : i32
    %2 = arith.cmpi ne, %1, %c0_i32_0 : i32
    scf.if %2 {
      %cst_10 = arith.constant 0.000000e+00 : f32
      %14 = vector.broadcast %cst_10 : f32 to vector<128x128xf32>
      %c0_11 = arith.constant 0 : index
      %c0_12 = arith.constant 0 : index
      %15 = vector.load %arg8[%c0_11, %c0_12] : memref<128x128xf32, #tpu.memory_space<vmem>>, vector<128x128xf32>
      tpu.vector_store %arg8[%c0_11, %c0_12], %14 {strides = array<i32>} : memref<128x128xf32, #tpu.memory_space<vmem>>, vector<128x128xf32>,
    } else {
    }
    %c0 = arith.constant 0 : index
    %c0_1 = arith.constant 0 : index
    %3 = vector.load %arg3[%c0, %c0_1] : memref<128x256xf32, #tpu.memory_space<vmem>>, vector<128x256xf32>
    %c0_2 = arith.constant 0 : index
    %c0_3 = arith.constant 0 : index
    %4 = vector.load %arg4[%c0_2, %c0_3] : memref<256x128xf32, #tpu.memory_space<vmem>>, vector<256x128xf32>
    %5 = arith.truncf %3 : vector<128x256xf32> to vector<128x256xbf16>
    %6 = arith.truncf %4 : vector<256x128xf32> to vector<256x128xbf16>
    %c0_4 = arith.constant 0 : index
    %c0_5 = arith.constant 0 : index
    %7 = vector.load %arg8[%c0_4, %c0_5] : memref<128x128xf32, #tpu.memory_space<vmem>>, vector<128x128xf32>
    %cst = arith.constant dense<0.000000e+00> : vector<128x128xf32>
    %8 = tpu.matmul %5, %6, %cst {dimension_numbers = #tpu.dot_dimension_numbers<[1], [0], [0], [1], [0, 0, 1, 1], [], []>} : vector<128x256xbf16>, vector<256x128xbf16>, vector<128x128xf32> -> vector<128x128xf32>
    %9 = arith.addf %7, %8 : vector<128x128xf32>
    %c0_6 = arith.constant 0 : index
    %c0_7 = arith.constant 0 : index
    %10 = vector.load %arg8[%c0_6, %c0_7] : memref<128x128xf32, #tpu.memory_space<vmem>>, vector<128x128xf32>
    tpu.vector_store %arg8[%c0_6, %c0_7], %9 {strides = array<i32>} : memref<128x128xf32, #tpu.memory_space<vmem>>, vector<128x128xf32>,
    %c0_i32_8 = arith.constant 0 : i32
    %11 = arith.cmpi eq, %arg2, %c0_i32_8 : i32
    %12 = arith.extui %11 : i1 to i32
    %c0_i32_9 = arith.constant 0 : i32
    %13 = arith.cmpi ne, %12, %c0_i32_9 : i32
    scf.if %13 {
      %c0_10 = arith.constant 0 : index
      %c0_11 = arith.constant 0 : index
      %14 = vector.load %arg8[%c0_10, %c0_11] : memref<128x128xf32, #tpu.memory_space<vmem>>, vector<128x128xf32>
      %c0_12 = arith.constant 0 : index
      %c0_13 = arith.constant 0 : index
      %15 = vector.load %arg5[%c0_12, %c0_13] : memref<1x128xf32, #tpu.memory_space<vmem>>, vector<1x128xf32>
      %16 = vector.broadcast %15 : vector<1x128xf32> to vector<128x128xf32>
      %17 = arith.mulf %14, %16 : vector<128x128xf32>
      %c0_14 = arith.constant 0 : index
      %c0_15 = arith.constant 0 : index
      %18 = vector.load %arg6[%c0_14, %c0_15] : memref<1x128xf32, #tpu.memory_space<vmem>>, vector<1x128xf32>
      %19 = vector.broadcast %18 : vector<1x128xf32> to vector<128x128xf32>
      %20 = arith.addf %17, %19 : vector<128x128xf32>
      %cst_16 = arith.constant 0.000000e+00 : f32
      %21 = vector.broadcast %cst_16 : f32 to vector<128x128xf32>
      %22 = arith.cmpf oge, %20, %21 : vector<128x128xf32>
      %cst_17 = arith.constant 0.00999999977 : f32
      %23 = vector.broadcast %cst_17 : f32 to vector<128x128xf32>
      %24 = arith.mulf %23, %20 : vector<128x128xf32>
      %25 = arith.select %22, %20, %24 : vector<128x128xi1>, vector<128x128xf32>
      %c0_18 = arith.constant 0 : index
      %c0_19 = arith.constant 0 : index
      %26 = vector.load %arg7[%c0_18, %c0_19] : memref<128x128xf32, #tpu.memory_space<vmem>>, vector<128x128xf32>
      tpu.vector_store %arg7[%c0_18, %c0_19], %25 {strides = array<i32>} : memref<128x128xf32, #tpu.memory_space<vmem>>, vector<128x128xf32>,
    } else {
    }
    return
  }
  func.func @transform_0(%arg0: i32, %arg1: i32, %arg2: i32) -> (i32, i32) {
    %c0_i32 = arith.constant 0 : i32
    return %arg0, %arg2 : i32, i32
  }
  func.func @transform_1(%arg0: i32, %arg1: i32, %arg2: i32) -> (i32, i32) {
    %c0_i32 = arith.constant 0 : i32
    return %arg2, %arg1 : i32, i32
  }
  func.func @transform_2(%arg0: i32, %arg1: i32, %arg2: i32) -> (i32, i32) {
    %c0_i32 = arith.constant 0 : i32
    %c0_i32_0 = arith.constant 0 : i32
    return %c0_i32, %arg1 : i32, i32
  }
  func.func @transform_3(%arg0: i32, %arg1: i32, %arg2: i32) -> (i32, i32) {
    %c0_i32 = arith.constant 0 : i32
    %c0_i32_0 = arith.constant 0 : i32
    return %c0_i32, %arg1 : i32, i32
  }
  func.func @transform_4(%arg0: i32, %arg1: i32, %arg2: i32) -> (i32, i32) {
    %c0_i32 = arith.constant 0 : i32
    return %arg0, %arg1 : i32, i32
  }
}

module attributes {stable_mosaic.version = 11 : i64} {
  func.func @kernel(%arg0: i32, %arg1: i32, %arg2: i32, %arg3: memref<8x128xf32, #tpu.memory_space<vmem>>, %arg4: memref<128x128xf32, #tpu.memory_space<vmem>>, %arg5: memref<1x128xf32, #tpu.memory_space<vmem>>, %arg6: memref<1x128xf32, #tpu.memory_space<vmem>>, %arg7: memref<1x128xf32, #tpu.memory_space<vmem>>, %arg8: memref<8x128xf32, #tpu.memory_space<vmem>>, %arg9: memref<8x128xf32, #tpu.memory_space<vmem>>) attributes {dimension_semantics = [#tpu.dimension_semantics<parallel>, #tpu.dimension_semantics<parallel>, #tpu.dimension_semantics<arbitrary>], iteration_bounds = array<i64: 1, 1, 1>, scalar_prefetch = 0 : i64, scratch_operands = 1 : i64, tpu.core_type = #tpu.core_type<tc>, window_params = [{transform_indices = @transform_0, window_bounds = array<i64: 8, 128>}, {transform_indices = @transform_1, window_bounds = array<i64: 128, 128>}, {transform_indices = @transform_2, window_bounds = array<i64: 1, 128>}, {transform_indices = @transform_3, window_bounds = array<i64: 1, 128>}, {transform_indices = @transform_4, window_bounds = array<i64: 1, 128>}, {transform_indices = @transform_5, window_bounds = array<i64: 8, 128>}]} {
    %c0_i32 = arith.constant 0 : i32
    %0 = arith.cmpi eq, %arg2, %c0_i32 : i32
    %1 = arith.extui %0 : i1 to i32
    %c0_i32_0 = arith.constant 0 : i32
    %2 = arith.cmpi ne, %1, %c0_i32_0 : i32
    scf.if %2 {
      %cst_16 = arith.constant 0.000000e+00 : f32
      %25 = vector.broadcast %cst_16 : f32 to vector<8x128xf32>
      %c0_17 = arith.constant 0 : index
      %c0_18 = arith.constant 0 : index
      %26 = vector.load %arg9[%c0_17, %c0_18] : memref<8x128xf32, #tpu.memory_space<vmem>>, vector<8x128xf32>
      tpu.vector_store %arg9[%c0_17, %c0_18], %25 {strides = array<i32>} : memref<8x128xf32, #tpu.memory_space<vmem>>, vector<8x128xf32>,
    } else {
    }
    %c0 = arith.constant 0 : index
    %c0_1 = arith.constant 0 : index
    %3 = vector.load %arg3[%c0, %c0_1] : memref<8x128xf32, #tpu.memory_space<vmem>>, vector<8x128xf32>
    %c0_2 = arith.constant 0 : index
    %c0_3 = arith.constant 0 : index
    %4 = vector.load %arg5[%c0_2, %c0_3] : memref<1x128xf32, #tpu.memory_space<vmem>>, vector<1x128xf32>
    %5 = vector.broadcast %4 : vector<1x128xf32> to vector<8x128xf32>
    %6 = arith.mulf %3, %5 : vector<8x128xf32>
    %c0_4 = arith.constant 0 : index
    %c0_5 = arith.constant 0 : index
    %7 = vector.load %arg6[%c0_4, %c0_5] : memref<1x128xf32, #tpu.memory_space<vmem>>, vector<1x128xf32>
    %8 = vector.broadcast %7 : vector<1x128xf32> to vector<8x128xf32>
    %9 = arith.addf %6, %8 : vector<8x128xf32>
    %cst = arith.constant 0.000000e+00 : f32
    %10 = vector.broadcast %cst : f32 to vector<8x128xf32>
    %11 = arith.cmpf oge, %9, %10 : vector<8x128xf32>
    %cst_6 = arith.constant 0.00999999977 : f32
    %12 = vector.broadcast %cst_6 : f32 to vector<8x128xf32>
    %13 = arith.mulf %12, %9 : vector<8x128xf32>
    %14 = arith.select %11, %9, %13 : vector<8x128xi1>, vector<8x128xf32>
    %c0_7 = arith.constant 0 : index
    %c0_8 = arith.constant 0 : index
    %15 = vector.load %arg4[%c0_7, %c0_8] : memref<128x128xf32, #tpu.memory_space<vmem>>, vector<128x128xf32>
    %16 = arith.truncf %14 : vector<8x128xf32> to vector<8x128xbf16>
    %17 = arith.truncf %15 : vector<128x128xf32> to vector<128x128xbf16>
    %c0_9 = arith.constant 0 : index
    %c0_10 = arith.constant 0 : index
    %18 = vector.load %arg9[%c0_9, %c0_10] : memref<8x128xf32, #tpu.memory_space<vmem>>, vector<8x128xf32>
    %cst_11 = arith.constant dense<0.000000e+00> : vector<8x128xf32>
    %19 = tpu.matmul %16, %17, %cst_11 {dimension_numbers = #tpu.dot_dimension_numbers<[1], [0], [0], [1], [0, 0, 1, 1], [], []>} : vector<8x128xbf16>, vector<128x128xbf16>, vector<8x128xf32> -> vector<8x128xf32>
    %20 = arith.addf %18, %19 : vector<8x128xf32>
    %c0_12 = arith.constant 0 : index
    %c0_13 = arith.constant 0 : index
    %21 = vector.load %arg9[%c0_12, %c0_13] : memref<8x128xf32, #tpu.memory_space<vmem>>, vector<8x128xf32>
    tpu.vector_store %arg9[%c0_12, %c0_13], %20 {strides = array<i32>} : memref<8x128xf32, #tpu.memory_space<vmem>>, vector<8x128xf32>,
    %c0_i32_14 = arith.constant 0 : i32
    %22 = arith.cmpi eq, %arg2, %c0_i32_14 : i32
    %23 = arith.extui %22 : i1 to i32
    %c0_i32_15 = arith.constant 0 : i32
    %24 = arith.cmpi ne, %23, %c0_i32_15 : i32
    scf.if %24 {
      %c0_16 = arith.constant 0 : index
      %c0_17 = arith.constant 0 : index
      %25 = vector.load %arg9[%c0_16, %c0_17] : memref<8x128xf32, #tpu.memory_space<vmem>>, vector<8x128xf32>
      %c0_18 = arith.constant 0 : index
      %c0_19 = arith.constant 0 : index
      %26 = vector.load %arg7[%c0_18, %c0_19] : memref<1x128xf32, #tpu.memory_space<vmem>>, vector<1x128xf32>
      %27 = vector.broadcast %26 : vector<1x128xf32> to vector<8x128xf32>
      %28 = arith.addf %25, %27 : vector<8x128xf32>
      %cst_20 = arith.constant 0.000000e+00 : f32
      %29 = vector.broadcast %cst_20 : f32 to vector<8x128xf32>
      %30 = arith.cmpf oge, %28, %29 : vector<8x128xf32>
      %cst_21 = arith.constant 0.00999999977 : f32
      %31 = vector.broadcast %cst_21 : f32 to vector<8x128xf32>
      %32 = arith.mulf %31, %28 : vector<8x128xf32>
      %33 = arith.select %30, %28, %32 : vector<8x128xi1>, vector<8x128xf32>
      %c0_22 = arith.constant 0 : index
      %c0_23 = arith.constant 0 : index
      %34 = vector.load %arg8[%c0_22, %c0_23] : memref<8x128xf32, #tpu.memory_space<vmem>>, vector<8x128xf32>
      tpu.vector_store %arg8[%c0_22, %c0_23], %33 {strides = array<i32>} : memref<8x128xf32, #tpu.memory_space<vmem>>, vector<8x128xf32>,
    } else {
    }
    return
  }
  func.func @transform_0(%arg0: i32, %arg1: i32, %arg2: i32) -> (i32, i32) {
    %c0_i32 = arith.constant 0 : i32
    return %arg0, %arg2 : i32, i32
  }
  func.func @transform_1(%arg0: i32, %arg1: i32, %arg2: i32) -> (i32, i32) {
    %c0_i32 = arith.constant 0 : i32
    return %arg2, %arg1 : i32, i32
  }
  func.func @transform_2(%arg0: i32, %arg1: i32, %arg2: i32) -> (i32, i32) {
    %c0_i32 = arith.constant 0 : i32
    %c0_i32_0 = arith.constant 0 : i32
    return %c0_i32, %arg2 : i32, i32
  }
  func.func @transform_3(%arg0: i32, %arg1: i32, %arg2: i32) -> (i32, i32) {
    %c0_i32 = arith.constant 0 : i32
    %c0_i32_0 = arith.constant 0 : i32
    return %c0_i32, %arg2 : i32, i32
  }
  func.func @transform_4(%arg0: i32, %arg1: i32, %arg2: i32) -> (i32, i32) {
    %c0_i32 = arith.constant 0 : i32
    %c0_i32_0 = arith.constant 0 : i32
    return %c0_i32, %arg1 : i32, i32
  }
  func.func @transform_5(%arg0: i32, %arg1: i32, %arg2: i32) -> (i32, i32) {
    %c0_i32 = arith.constant 0 : i32
    return %arg0, %arg1 : i32, i32
  }
}

module attributes {stable_mosaic.version = 11 : i64} {
  func.func @kernel(%arg0: i32, %arg1: i32, %arg2: i32, %arg3: memref<8x128xf32, #tpu.memory_space<vmem>>, %arg4: memref<128x128xf32, #tpu.memory_space<vmem>>, %arg5: memref<1x128xf32, #tpu.memory_space<vmem>>, %arg6: memref<8x128xf32, #tpu.memory_space<vmem>>, %arg7: memref<8x128xf32, #tpu.memory_space<vmem>>) attributes {dimension_semantics = [#tpu.dimension_semantics<parallel>, #tpu.dimension_semantics<parallel>, #tpu.dimension_semantics<arbitrary>], iteration_bounds = array<i64: 1, 1, 1>, scalar_prefetch = 0 : i64, scratch_operands = 1 : i64, tpu.core_type = #tpu.core_type<tc>, window_params = [{transform_indices = @transform_0, window_bounds = array<i64: 8, 128>}, {transform_indices = @transform_1, window_bounds = array<i64: 128, 128>}, {transform_indices = @transform_2, window_bounds = array<i64: 1, 128>}, {transform_indices = @transform_3, window_bounds = array<i64: 8, 128>}]} {
    %c0_i32 = arith.constant 0 : i32
    %0 = arith.cmpi eq, %arg2, %c0_i32 : i32
    %1 = arith.extui %0 : i1 to i32
    %c0_i32_0 = arith.constant 0 : i32
    %2 = arith.cmpi ne, %1, %c0_i32_0 : i32
    scf.if %2 {
      %cst_10 = arith.constant 0.000000e+00 : f32
      %12 = vector.broadcast %cst_10 : f32 to vector<8x128xf32>
      %c0_11 = arith.constant 0 : index
      %c0_12 = arith.constant 0 : index
      %13 = vector.load %arg7[%c0_11, %c0_12] : memref<8x128xf32, #tpu.memory_space<vmem>>, vector<8x128xf32>
      tpu.vector_store %arg7[%c0_11, %c0_12], %12 {strides = array<i32>} : memref<8x128xf32, #tpu.memory_space<vmem>>, vector<8x128xf32>,
    } else {
    }
    %c0 = arith.constant 0 : index
    %c0_1 = arith.constant 0 : index
    %3 = vector.load %arg3[%c0, %c0_1] : memref<8x128xf32, #tpu.memory_space<vmem>>, vector<8x128xf32>
    %c0_2 = arith.constant 0 : index
    %c0_3 = arith.constant 0 : index
    %4 = vector.load %arg4[%c0_2, %c0_3] : memref<128x128xf32, #tpu.memory_space<vmem>>, vector<128x128xf32>
    %c0_4 = arith.constant 0 : index
    %c0_5 = arith.constant 0 : index
    %5 = vector.load %arg7[%c0_4, %c0_5] : memref<8x128xf32, #tpu.memory_space<vmem>>, vector<8x128xf32>
    %cst = arith.constant dense<0.000000e+00> : vector<8x128xf32>
    %6 = tpu.matmul %3, %4, %cst {dimension_numbers = #tpu.dot_dimension_numbers<[1], [0], [0], [1], [0, 0, 1, 1], [], []>} : vector<8x128xf32>, vector<128x128xf32>, vector<8x128xf32> -> vector<8x128xf32>
    %7 = arith.addf %5, %6 : vector<8x128xf32>
    %c0_6 = arith.constant 0 : index
    %c0_7 = arith.constant 0 : index
    %8 = vector.load %arg7[%c0_6, %c0_7] : memref<8x128xf32, #tpu.memory_space<vmem>>, vector<8x128xf32>
    tpu.vector_store %arg7[%c0_6, %c0_7], %7 {strides = array<i32>} : memref<8x128xf32, #tpu.memory_space<vmem>>, vector<8x128xf32>,
    %c0_i32_8 = arith.constant 0 : i32
    %9 = arith.cmpi eq, %arg2, %c0_i32_8 : i32
    %10 = arith.extui %9 : i1 to i32
    %c0_i32_9 = arith.constant 0 : i32
    %11 = arith.cmpi ne, %10, %c0_i32_9 : i32
    scf.if %11 {
      %c0_10 = arith.constant 0 : index
      %c0_11 = arith.constant 0 : index
      %12 = vector.load %arg7[%c0_10, %c0_11] : memref<8x128xf32, #tpu.memory_space<vmem>>, vector<8x128xf32>
      %c0_12 = arith.constant 0 : index
      %c0_13 = arith.constant 0 : index
      %13 = vector.load %arg5[%c0_12, %c0_13] : memref<1x128xf32, #tpu.memory_space<vmem>>, vector<1x128xf32>
      %14 = vector.broadcast %13 : vector<1x128xf32> to vector<8x128xf32>
      %15 = arith.addf %12, %14 : vector<8x128xf32>
      %c0_14 = arith.constant 0 : index
      %c0_15 = arith.constant 0 : index
      %16 = vector.load %arg6[%c0_14, %c0_15] : memref<8x128xf32, #tpu.memory_space<vmem>>, vector<8x128xf32>
      tpu.vector_store %arg6[%c0_14, %c0_15], %15 {strides = array<i32>} : memref<8x128xf32, #tpu.memory_space<vmem>>, vector<8x128xf32>,
    } else {
    }
    return
  }
  func.func @transform_0(%arg0: i32, %arg1: i32, %arg2: i32) -> (i32, i32) {
    %c0_i32 = arith.constant 0 : i32
    return %arg0, %arg2 : i32, i32
  }
  func.func @transform_1(%arg0: i32, %arg1: i32, %arg2: i32) -> (i32, i32) {
    %c0_i32 = arith.constant 0 : i32
    return %arg2, %arg1 : i32, i32
  }
  func.func @transform_2(%arg0: i32, %arg1: i32, %arg2: i32) -> (i32, i32) {
    %c0_i32 = arith.constant 0 : i32
    %c0_i32_0 = arith.constant 0 : i32
    return %c0_i32, %arg1 : i32, i32
  }
  func.func @transform_3(%arg0: i32, %arg1: i32, %arg2: i32) -> (i32, i32) {
    %c0_i32 = arith.constant 0 : i32
    return %arg0, %arg1 : i32, i32
  }
}

module attributes {stable_mosaic.version = 11 : i64} {
  func.func @kernel(%arg0: i32, %arg1: i32, %arg2: i32, %arg3: memref<128x128xf32, #tpu.memory_space<vmem>>, %arg4: memref<128x128xf32, #tpu.memory_space<vmem>>, %arg5: memref<1x128xf32, #tpu.memory_space<vmem>>, %arg6: memref<1x128xf32, #tpu.memory_space<vmem>>, %arg7: memref<1x128xf32, #tpu.memory_space<vmem>>, %arg8: memref<128x128xf32, #tpu.memory_space<vmem>>, %arg9: memref<128x128xf32, #tpu.memory_space<vmem>>) attributes {dimension_semantics = [#tpu.dimension_semantics<parallel>, #tpu.dimension_semantics<parallel>, #tpu.dimension_semantics<arbitrary>], iteration_bounds = array<i64: 1, 1, 1>, scalar_prefetch = 0 : i64, scratch_operands = 1 : i64, tpu.core_type = #tpu.core_type<tc>, window_params = [{transform_indices = @transform_0, window_bounds = array<i64: 128, 128>}, {transform_indices = @transform_1, window_bounds = array<i64: 128, 128>}, {transform_indices = @transform_2, window_bounds = array<i64: 1, 128>}, {transform_indices = @transform_3, window_bounds = array<i64: 1, 128>}, {transform_indices = @transform_4, window_bounds = array<i64: 1, 128>}, {transform_indices = @transform_5, window_bounds = array<i64: 128, 128>}]} {
    %c0_i32 = arith.constant 0 : i32
    %0 = arith.cmpi eq, %arg2, %c0_i32 : i32
    %1 = arith.extui %0 : i1 to i32
    %c0_i32_0 = arith.constant 0 : i32
    %2 = arith.cmpi ne, %1, %c0_i32_0 : i32
    scf.if %2 {
      %cst_16 = arith.constant 0.000000e+00 : f32
      %25 = vector.broadcast %cst_16 : f32 to vector<128x128xf32>
      %c0_17 = arith.constant 0 : index
      %c0_18 = arith.constant 0 : index
      %26 = vector.load %arg9[%c0_17, %c0_18] : memref<128x128xf32, #tpu.memory_space<vmem>>, vector<128x128xf32>
      tpu.vector_store %arg9[%c0_17, %c0_18], %25 {strides = array<i32>} : memref<128x128xf32, #tpu.memory_space<vmem>>, vector<128x128xf32>,
    } else {
    }
    %c0 = arith.constant 0 : index
    %c0_1 = arith.constant 0 : index
    %3 = vector.load %arg3[%c0, %c0_1] : memref<128x128xf32, #tpu.memory_space<vmem>>, vector<128x128xf32>
    %c0_2 = arith.constant 0 : index
    %c0_3 = arith.constant 0 : index
    %4 = vector.load %arg5[%c0_2, %c0_3] : memref<1x128xf32, #tpu.memory_space<vmem>>, vector<1x128xf32>
    %5 = vector.broadcast %4 : vector<1x128xf32> to vector<128x128xf32>
    %6 = arith.mulf %3, %5 : vector<128x128xf32>
    %c0_4 = arith.constant 0 : index
    %c0_5 = arith.constant 0 : index
    %7 = vector.load %arg6[%c0_4, %c0_5] : memref<1x128xf32, #tpu.memory_space<vmem>>, vector<1x128xf32>
    %8 = vector.broadcast %7 : vector<1x128xf32> to vector<128x128xf32>
    %9 = arith.addf %6, %8 : vector<128x128xf32>
    %cst = arith.constant 0.000000e+00 : f32
    %10 = vector.broadcast %cst : f32 to vector<128x128xf32>
    %11 = arith.cmpf oge, %9, %10 : vector<128x128xf32>
    %cst_6 = arith.constant 0.00999999977 : f32
    %12 = vector.broadcast %cst_6 : f32 to vector<128x128xf32>
    %13 = arith.mulf %12, %9 : vector<128x128xf32>
    %14 = arith.select %11, %9, %13 : vector<128x128xi1>, vector<128x128xf32>
    %c0_7 = arith.constant 0 : index
    %c0_8 = arith.constant 0 : index
    %15 = vector.load %arg4[%c0_7, %c0_8] : memref<128x128xf32, #tpu.memory_space<vmem>>, vector<128x128xf32>
    %16 = arith.truncf %14 : vector<128x128xf32> to vector<128x128xbf16>
    %17 = arith.truncf %15 : vector<128x128xf32> to vector<128x128xbf16>
    %c0_9 = arith.constant 0 : index
    %c0_10 = arith.constant 0 : index
    %18 = vector.load %arg9[%c0_9, %c0_10] : memref<128x128xf32, #tpu.memory_space<vmem>>, vector<128x128xf32>
    %cst_11 = arith.constant dense<0.000000e+00> : vector<128x128xf32>
    %19 = tpu.matmul %16, %17, %cst_11 {dimension_numbers = #tpu.dot_dimension_numbers<[1], [0], [0], [1], [0, 0, 1, 1], [], []>} : vector<128x128xbf16>, vector<128x128xbf16>, vector<128x128xf32> -> vector<128x128xf32>
    %20 = arith.addf %18, %19 : vector<128x128xf32>
    %c0_12 = arith.constant 0 : index
    %c0_13 = arith.constant 0 : index
    %21 = vector.load %arg9[%c0_12, %c0_13] : memref<128x128xf32, #tpu.memory_space<vmem>>, vector<128x128xf32>
    tpu.vector_store %arg9[%c0_12, %c0_13], %20 {strides = array<i32>} : memref<128x128xf32, #tpu.memory_space<vmem>>, vector<128x128xf32>,
    %c0_i32_14 = arith.constant 0 : i32
    %22 = arith.cmpi eq, %arg2, %c0_i32_14 : i32
    %23 = arith.extui %22 : i1 to i32
    %c0_i32_15 = arith.constant 0 : i32
    %24 = arith.cmpi ne, %23, %c0_i32_15 : i32
    scf.if %24 {
      %c0_16 = arith.constant 0 : index
      %c0_17 = arith.constant 0 : index
      %25 = vector.load %arg9[%c0_16, %c0_17] : memref<128x128xf32, #tpu.memory_space<vmem>>, vector<128x128xf32>
      %c0_18 = arith.constant 0 : index
      %c0_19 = arith.constant 0 : index
      %26 = vector.load %arg7[%c0_18, %c0_19] : memref<1x128xf32, #tpu.memory_space<vmem>>, vector<1x128xf32>
      %27 = vector.broadcast %26 : vector<1x128xf32> to vector<128x128xf32>
      %28 = arith.addf %25, %27 : vector<128x128xf32>
      %c0_20 = arith.constant 0 : index
      %c0_21 = arith.constant 0 : index
      %29 = vector.load %arg8[%c0_20, %c0_21] : memref<128x128xf32, #tpu.memory_space<vmem>>, vector<128x128xf32>
      tpu.vector_store %arg8[%c0_20, %c0_21], %28 {strides = array<i32>} : memref<128x128xf32, #tpu.memory_space<vmem>>, vector<128x128xf32>,
    } else {
    }
    return
  }
  func.func @transform_0(%arg0: i32, %arg1: i32, %arg2: i32) -> (i32, i32) {
    %c0_i32 = arith.constant 0 : i32
    return %arg0, %arg2 : i32, i32
  }
  func.func @transform_1(%arg0: i32, %arg1: i32, %arg2: i32) -> (i32, i32) {
    %c0_i32 = arith.constant 0 : i32
    return %arg2, %arg1 : i32, i32
  }
  func.func @transform_2(%arg0: i32, %arg1: i32, %arg2: i32) -> (i32, i32) {
    %c0_i32 = arith.constant 0 : i32
    %c0_i32_0 = arith.constant 0 : i32
    return %c0_i32, %arg2 : i32, i32
  }
  func.func @transform_3(%arg0: i32, %arg1: i32, %arg2: i32) -> (i32, i32) {
    %c0_i32 = arith.constant 0 : i32
    %c0_i32_0 = arith.constant 0 : i32
    return %c0_i32, %arg2 : i32, i32
  }
  func.func @transform_4(%arg0: i32, %arg1: i32, %arg2: i32) -> (i32, i32) {
    %c0_i32 = arith.constant 0 : i32
    %c0_i32_0 = arith.constant 0 : i32
    return %c0_i32, %arg1 : i32, i32
  }
  func.func @transform_5(%arg0: i32, %arg1: i32, %arg2: i32) -> (i32, i32) {
    %c0_i32 = arith.constant 0 : i32
    return %arg0, %arg1 : i32, i32
  }
}

</mosaic_0001>

<llo_original>
// kernel: tile.93
$region0: #{tile.93}
  #allocation0 [shape = 's32[1]{0}', space=sflag, size = 0x4, scoped, tag = 'scoped memory for tile.93']
  %s0 = inlined_call_operand.vmem [shape: f32[8], index: 0, kind: input, shape index: {}]
  %s1 = inlined_call_operand.vmem [shape: f32[8,8], index: 1, kind: output, shape index: {}]
  // Predicated region
  $region2: #{tile.93} parent=0 // pred_check
    _
  $region3: #{tile.93} parent=0 // pred_check_branch
    %3 = sbr.rel (0) target = $region5
  $region4: #{tile.93} parent=0 // pred_region
    _
  $region5: #{tile.93} parent=0 // pred_fallthru
    _
  %v4 = vld [vmem:[%s0] ss:$0 sm:$0xff]
  %5 = vst [vmem:[%s1] sm:$0xff] %v4

// kernel: tile.94
$region0: #{tile.94}
  %s0 = inlined_call_operand.vmem [shape: f32[8,8], index: 0, kind: input, shape index: {}]
  %s1 = inlined_call_operand.vmem [shape: f32[1,64], index: 1, kind: output, shape index: {}]
  $region1: #{tile.94} parent=0
    #allocation0 [shape = 'u8[4096]{0}', space=vmem, size = 0x1000, scoped, tag = 'scoped mem for output reshape']
    %v2 = vld [vmem:[%s0] sm:$0x1]
    %vm3 = vcmask 64512
    %4 = vst.msk [vmem:[#allocation0] sm:$0x1] %vm3, %v2
    %s5 = scalar_lea.vmem %s0, 7
    %v6 = vld [vmem:[%s5] sm:$0x1]
    %7 = vrot.lane.b32.xlu0 %v6, 56
    %v8 = vpop.permute.xlu0 %7
    %vm9 = vcmask 523712
    %10 = vst.msk [vmem:[#allocation0] sm:$0x1] %vm9, %v8
    %s11 = scalar_lea.vmem %s0, 6
    %v12 = vld [vmem:[%s11] sm:$0x1]
    %13 = vrot.lane.b32.xlu0 %v12, 48
    %v14 = vpop.permute.xlu0 %13
    %vm15 = vcmask 458112
    %16 = vst.msk [vmem:[#allocation0] sm:$0x1] %vm15, %v14
    %s17 = scalar_lea.vmem %s0, 5
    %v18 = vld [vmem:[%s17] sm:$0x1]
    %19 = vrot.lane.b32.xlu0 %v18, 40
    %v20 = vpop.permute.xlu0 %19
    %vm21 = vcmask 392512
    %22 = vst.msk [vmem:[#allocation0] sm:$0x1] %vm21, %v20
    %s23 = scalar_lea.vmem %s0, 4
    %v24 = vld [vmem:[%s23] sm:$0x1]
    %25 = vrot.lane.b32.xlu0 %v24, 32
    %v26 = vpop.permute.xlu0 %25
    %vm27 = vcmask 326912
    %28 = vst.msk [vmem:[#allocation0] sm:$0x1] %vm27, %v26
    %s29 = scalar_lea.vmem %s0, 3
    %v30 = vld [vmem:[%s29] sm:$0x1]
    %31 = vrot.lane.b32.xlu0 %v30, 24
    %v32 = vpop.permute.xlu0 %31
    %vm33 = vcmask 261312
    %34 = vst.msk [vmem:[#allocation0] sm:$0x1] %vm33, %v32
    %s35 = scalar_lea.vmem %s0, 2
    %v36 = vld [vmem:[%s35] sm:$0x1]
    %37 = vrot.lane.b32.xlu0 %v36, 16
    %v38 = vpop.permute.xlu0 %37
    %vm39 = vcmask 195712
    %40 = vst.msk [vmem:[#allocation0] sm:$0x1] %vm39, %v38
    %s41 = scalar_lea.vmem %s0, 1
    %v42 = vld [vmem:[%s41] sm:$0x1]
    %43 = vrot.lane.b32.xlu0 %v42, 8
    %v44 = vpop.permute.xlu0 %43
    %vm45 = vcmask 130112
    %46 = vst.msk [vmem:[#allocation0] sm:$0x1] %vm45, %v44
    %s48 = ssub.s32 2, 1
    %v49 = vld [vmem:[#allocation0] sm:%s48]
    %s51 = ssub.s32 2, 1
    %52 = vst [vmem:[%s1] sm:%s51] %v49

// kernel: zhugo_forward.42
$region0: #{zhugo_forward.42}
  #allocation0 [shape = 'u32[]', space=smem, size = 0x4, offset = 0x4, fixed_abs, tag = 'smem constant byte address 0x4 - core index']
  #allocation1 [shape = 'u32[72,128]{1,0:T(1,128)}', space=vmem, size = 0x9000, scoped, tag = 'internal scratch']
  %s0 = inlined_call_operand.vmem [shape: f32[16,64], index: 0, kind: input, shape index: {}]
  %s1 = inlined_call_operand.vmem [shape: f32[1,64], index: 1, kind: input, shape index: {}]
  %s2 = inlined_call_operand.vmem [shape: f32[1,64], index: 2, kind: input, shape index: {}]
  %s3 = inlined_call_operand.vmem [shape: f32[16,64], index: 3, kind: output, shape index: {}]
  %s4 = sld [smem:[#allocation0]]
  $region22: #{zhugo_forward.42} parent=0
    _
  %s6 = ssub.s32 1, %s4
  %s7 = scalar_select 0, %s6, %s4
  // Predicated region
  $region2: #{zhugo_forward.42} parent=0 // pred_check
    _
  $region3: #{zhugo_forward.42} parent=0 // pred_check_branch
    %9 = sbr.rel (0) target = $region5
  $region4: #{zhugo_forward.42} parent=0 // pred_region
    _
  $region5: #{zhugo_forward.42} parent=0 // pred_fallthru
    _
  // Predicated region
  $region6: #{zhugo_forward.42} parent=0 // pred_check
    _
  $region7: #{zhugo_forward.42} parent=0 // pred_check_branch
    %11 = sbr.rel (0) target = $region9
  $region8: #{zhugo_forward.42} parent=0 // pred_region
    _
  $region9: #{zhugo_forward.42} parent=0 // pred_fallthru
    _
  // Predicated region
  $region10: #{zhugo_forward.42} parent=0 // pred_check
    _
  $region11: #{zhugo_forward.42} parent=0 // pred_check_branch
    %13 = sbr.rel (0) target = $region13
  $region12: #{zhugo_forward.42} parent=0 // pred_region
    _
  $region13: #{zhugo_forward.42} parent=0 // pred_fallthru
    _
  %v14 = vld [vmem:[%s0] sm:$0xff]
  %v15 = vld [vmem:[%s0 + $0x8] sm:$0xff]
  %v16 = vld [vmem:[%s1] sm:$0x1]
  %v18 = vperm.slane %v16, 0
  %v20 = vmul.f32 %v14, %v18
  %v21 = vmul.f32 %v15, %v18
  %v22 = vld [vmem:[%s2] sm:$0x1]
  %v24 = vperm.slane %v22, 0
  %v26 = vadd.f32 %v20, %v24
  %v27 = vadd.f32 %v21, %v24
  %vm28 = vcmp.ge.f32.partialorder %v26, 0.0
  %vm29 = vcmp.ge.f32.partialorder %v27, 0.0
  %v30 = vmul.f32 %v26, 0.01
  %v31 = vmul.f32 %v27, 0.01
  %v32 = vsel %vm28, %v26, %v30
  %v33 = vsel %vm29, %v27, %v31
  %vm34 = vcmask 523264
  %35 = vst.msk [vmem:[%s3] sm:$0xff] %vm34, %v32
  %36 = vst.msk [vmem:[%s3 + $0x8] sm:$0xff] %vm34, %v33
  // Predicated region
  $region14: #{zhugo_forward.42} parent=0 // pred_check
    _
  $region15: #{zhugo_forward.42} parent=0 // pred_check_branch
    %38 = sbr.rel (0) target = $region17
  $region16: #{zhugo_forward.42} parent=0 // pred_region
    _
  $region17: #{zhugo_forward.42} parent=0 // pred_fallthru
    _
  // Predicated region
  $region18: #{zhugo_forward.42} parent=0 // pred_check
    _
  $region19: #{zhugo_forward.42} parent=0 // pred_check_branch
    %40 = sbr.rel (0) target = $region21
  $region20: #{zhugo_forward.42} parent=0 // pred_region
    _
  $region21: #{zhugo_forward.42} parent=0 // pred_fallthru
    _

// kernel: zhugo_forward.40
$region0: #{zhugo_forward.40}
  #allocation0 [shape = 'u32[]', space=smem, size = 0x4, offset = 0x4, fixed_abs, tag = 'smem constant byte address 0x4 - core index']
  #allocation1 [shape = 'u32[72,128]{1,0:T(1,128)}', space=vmem, size = 0x9000, scoped, tag = 'internal scratch']
  #allocation2 [shape = 'f32[128,128]{1,0:T(8,128)}', space=vmem, size = 0x10000, scoped, tag = 'scratch operand']
  %s0 = inlined_call_operand.vmem [shape: f32[128,128], index: 0, kind: input, shape index: {}]
  %s1 = inlined_call_operand.vmem [shape: f32[128,128], index: 1, kind: input, shape index: {}]
  %s2 = inlined_call_operand.vmem [shape: f32[128,128], index: 2, kind: output, shape index: {}]
  %s3 = sld [smem:[#allocation0]]
  $region26: #{zhugo_forward.40} parent=0
    _
  %s5 = ssub.s32 1, %s3
  %s6 = scalar_select 0, %s5, %s3
  // Predicated region
  $region2: #{zhugo_forward.40} parent=0 // pred_check
    _
  $region3: #{zhugo_forward.40} parent=0 // pred_check_branch
    %8 = sbr.rel (0) target = $region5
  $region4: #{zhugo_forward.40} parent=0 // pred_region
    _
  $region5: #{zhugo_forward.40} parent=0 // pred_fallthru
    _
  // Predicated region
  $region6: #{zhugo_forward.40} parent=0 // pred_check
    _
  $region7: #{zhugo_forward.40} parent=0 // pred_check_branch
    %10 = sbr.rel (0) target = $region9
  $region8: #{zhugo_forward.40} parent=0 // pred_region
    _
  $region9: #{zhugo_forward.40} parent=0 // pred_fallthru
    _
  %p11 = scmp.eq.s32.totalorder 0, 0
  // Predicated region
  $region10: #{zhugo_forward.40} parent=0 // pred_check
    %p12 = pneg %p11
  $region11: #{zhugo_forward.40} parent=0 // pred_check_branch
    %14 = sbr.rel (%p12) target = $region13
  $region12: #{zhugo_forward.40} parent=0 // pred_region
    %15 = vst [vmem:[#allocation2] sm:$0xff] 0.0
    %16 = vst [vmem:[#allocation2 + $0x8] sm:$0xff] 0.0
    %17 = vst [vmem:[#allocation2 + $0x10] sm:$0xff] 0.0
    %18 = vst [vmem:[#allocation2 + $0x18] sm:$0xff] 0.0
    %19 = vst [vmem:[#allocation2 + $0x20] sm:$0xff] 0.0
    %20 = vst [vmem:[#allocation2 + $0x28] sm:$0xff] 0.0
    %21 = vst [vmem:[#allocation2 + $0x30] sm:$0xff] 0.0
    %22 = vst [vmem:[#allocation2 + $0x38] sm:$0xff] 0.0
    %23 = vst [vmem:[#allocation2 + $0x40] sm:$0xff] 0.0
    %24 = vst [vmem:[#allocation2 + $0x48] sm:$0xff] 0.0
    %25 = vst [vmem:[#allocation2 + $0x50] sm:$0xff] 0.0
    %26 = vst [vmem:[#allocation2 + $0x58] sm:$0xff] 0.0
    %27 = vst [vmem:[#allocation2 + $0x60] sm:$0xff] 0.0
    %28 = vst [vmem:[#allocation2 + $0x68] sm:$0xff] 0.0
    %29 = vst [vmem:[#allocation2 + $0x70] sm:$0xff] 0.0
    %30 = vst [vmem:[#allocation2 + $0x78] sm:$0xff] 0.0
  $region13: #{zhugo_forward.40} parent=0 // pred_fallthru
    _
  %v31 = vld [vmem:[%s0] sm:$0xff]
  %v32 = vld [vmem:[%s0 + $0x8] sm:$0xff]
  %v33 = vld [vmem:[%s0 + $0x10] sm:$0xff]
  %v34 = vld [vmem:[%s0 + $0x18] sm:$0xff]
  %v35 = vld [vmem:[%s0 + $0x20] sm:$0xff]
  %v36 = vld [vmem:[%s0 + $0x28] sm:$0xff]
  %v37 = vld [vmem:[%s0 + $0x30] sm:$0xff]
  %v38 = vld [vmem:[%s0 + $0x38] sm:$0xff]
  %v39 = vld [vmem:[%s0 + $0x40] sm:$0xff]
  %v40 = vld [vmem:[%s0 + $0x48] sm:$0xff]
  %v41 = vld [vmem:[%s0 + $0x50] sm:$0xff]
  %v42 = vld [vmem:[%s0 + $0x58] sm:$0xff]
  %v43 = vld [vmem:[%s0 + $0x60] sm:$0xff]
  %v44 = vld [vmem:[%s0 + $0x68] sm:$0xff]
  %v45 = vld [vmem:[%s0 + $0x70] sm:$0xff]
  %v46 = vld [vmem:[%s0 + $0x78] sm:$0xff]
  %v47 = vld [vmem:[%s1] sm:$0xff]
  %v48 = vld [vmem:[%s1 + $0x8] sm:$0xff]
  %v49 = vld [vmem:[%s1 + $0x10] sm:$0xff]
  %v50 = vld [vmem:[%s1 + $0x18] sm:$0xff]
  %v51 = vld [vmem:[%s1 + $0x20] sm:$0xff]
  %v52 = vld [vmem:[%s1 + $0x28] sm:$0xff]
  %v53 = vld [vmem:[%s1 + $0x30] sm:$0xff]
  %v54 = vld [vmem:[%s1 + $0x38] sm:$0xff]
  %v55 = vld [vmem:[%s1 + $0x40] sm:$0xff]
  %v56 = vld [vmem:[%s1 + $0x48] sm:$0xff]
  %v57 = vld [vmem:[%s1 + $0x50] sm:$0xff]
  %v58 = vld [vmem:[%s1 + $0x58] sm:$0xff]
  %v59 = vld [vmem:[%s1 + $0x60] sm:$0xff]
  %v60 = vld [vmem:[%s1 + $0x68] sm:$0xff]
  %v61 = vld [vmem:[%s1 + $0x70] sm:$0xff]
  %v62 = vld [vmem:[%s1 + $0x78] sm:$0xff]
  %v63 = vpack.c.bf16 %v32, %v31
  %v64 = vpack.c.bf16 %v34, %v33
  %v65 = vpack.c.bf16 %v36, %v35
  %v66 = vpack.c.bf16 %v38, %v37
  %v67 = vpack.c.bf16 %v40, %v39
  %v68 = vpack.c.bf16 %v42, %v41
  %v69 = vpack.c.bf16 %v44, %v43
  %v70 = vpack.c.bf16 %v46, %v45
  %v71 = vpack.c.bf16 %v48, %v47
  %v72 = vpack.c.bf16 %v50, %v49
  %v73 = vpack.c.bf16 %v52, %v51
  %v74 = vpack.c.bf16 %v54, %v53
  %v75 = vpack.c.bf16 %v56, %v55
  %v76 = vpack.c.bf16 %v58, %v57
  %v77 = vpack.c.bf16 %v60, %v59
  %v78 = vpack.c.bf16 %v62, %v61
  %v79 = vld [vmem:[#allocation2] sm:$0xff]
  %v80 = vld [vmem:[#allocation2 + $0x8] sm:$0xff]
  %v81 = vld [vmem:[#allocation2 + $0x10] sm:$0xff]
  %v82 = vld [vmem:[#allocation2 + $0x18] sm:$0xff]
  %v83 = vld [vmem:[#allocation2 + $0x20] sm:$0xff]
  %v84 = vld [vmem:[#allocation2 + $0x28] sm:$0xff]
  %v85 = vld [vmem:[#allocation2 + $0x30] sm:$0xff]
  %v86 = vld [vmem:[#allocation2 + $0x38] sm:$0xff]
  %v87 = vld [vmem:[#allocation2 + $0x40] sm:$0xff]
  %v88 = vld [vmem:[#allocation2 + $0x48] sm:$0xff]
  %v89 = vld [vmem:[#allocation2 + $0x50] sm:$0xff]
  %v90 = vld [vmem:[#allocation2 + $0x58] sm:$0xff]
  %v91 = vld [vmem:[#allocation2 + $0x60] sm:$0xff]
  %v92 = vld [vmem:[#allocation2 + $0x68] sm:$0xff]
  %v93 = vld [vmem:[#allocation2 + $0x70] sm:$0xff]
  %v94 = vld [vmem:[#allocation2 + $0x78] sm:$0xff]
  %95 = vmatpush.bf16.msra.mxu0 %v78
  %96 = vmatpush.bf16.msra.mxu0 %v77
  %97 = vmatpush.bf16.msra.mxu0 %v76
  %98 = vmatpush.bf16.msra.mxu0 %v75
  %99 = vmatpush.bf16.msra.mxu0 %v74
  %100 = vmatpush.bf16.msra.mxu0 %v73
  %101 = vmatpush.bf16.msra.mxu0 %v72
  %102 = vmatpush.bf16.msra.mxu0 %v71
  %103 = vmatmul.bf16.gmra.mxu0 %v63
  %v104 = vpop.f32.mrf.mxu0
  %v105 = vadd.f32 0.0, %v104
  %v106 = vpop.f32.mrf.mxu0
  %v107 = vadd.f32 0.0, %v106
  %108 = vmatmul.bf16.gmra.mxu0 %v64
  %v109 = vpop.f32.mrf.mxu0
  %v110 = vadd.f32 0.0, %v109
  %v111 = vpop.f32.mrf.mxu0
  %v112 = vadd.f32 0.0, %v111
  %113 = vmatmul.bf16.gmra.mxu0 %v65
  %v114 = vpop.f32.mrf.mxu0
  %v115 = vadd.f32 0.0, %v114
  %v116 = vpop.f32.mrf.mxu0
  %v117 = vadd.f32 0.0, %v116
  %118 = vmatmul.bf16.gmra.mxu0 %v66
  %v119 = vpop.f32.mrf.mxu0
  %v120 = vadd.f32 0.0, %v119
  %v121 = vpop.f32.mrf.mxu0
  %v122 = vadd.f32 0.0, %v121
  %123 = vmatmul.bf16.gmra.mxu0 %v67
  %v124 = vpop.f32.mrf.mxu0
  %v125 = vadd.f32 0.0, %v124
  %v126 = vpop.f32.mrf.mxu0
  %v127 = vadd.f32 0.0, %v126
  %128 = vmatmul.bf16.gmra.mxu0 %v68
  %v129 = vpop.f32.mrf.mxu0
  %v130 = vadd.f32 0.0, %v129
  %v131 = vpop.f32.mrf.mxu0
  %v132 = vadd.f32 0.0, %v131
  %133 = vmatmul.bf16.gmra.mxu0 %v69
  %v134 = vpop.f32.mrf.mxu0
  %v135 = vadd.f32 0.0, %v134
  %v136 = vpop.f32.mrf.mxu0
  %v137 = vadd.f32 0.0, %v136
  %138 = vmatmul.bf16.gmra.mxu0 %v70
  %v139 = vpop.f32.mrf.mxu0
  %v140 = vadd.f32 0.0, %v139
  %v141 = vpop.f32.mrf.mxu0
  %v142 = vadd.f32 0.0, %v141
  %143 = vdwg.mxu0
  %v144 = vadd.f32 %v79, %v105
  %v145 = vadd.f32 %v80, %v107
  %v146 = vadd.f32 %v81, %v110
  %v147 = vadd.f32 %v82, %v112
  %v148 = vadd.f32 %v83, %v115
  %v149 = vadd.f32 %v84, %v117
  %v150 = vadd.f32 %v85, %v120
  %v151 = vadd.f32 %v86, %v122
  %v152 = vadd.f32 %v87, %v125
  %v153 = vadd.f32 %v88, %v127
  %v154 = vadd.f32 %v89, %v130
  %v155 = vadd.f32 %v90, %v132
  %v156 = vadd.f32 %v91, %v135
  %v157 = vadd.f32 %v92, %v137
  %v158 = vadd.f32 %v93, %v140
  %v159 = vadd.f32 %v94, %v142
  %160 = vst [vmem:[#allocation2] sm:$0xff] %v144
  %161 = vst [vmem:[#allocation2 + $0x8] sm:$0xff] %v145
  %162 = vst [vmem:[#allocation2 + $0x10] sm:$0xff] %v146
  %163 = vst [vmem:[#allocation2 + $0x18] sm:$0xff] %v147
  %164 = vst [vmem:[#allocation2 + $0x20] sm:$0xff] %v148
  %165 = vst [vmem:[#allocation2 + $0x28] sm:$0xff] %v149
  %166 = vst [vmem:[#allocation2 + $0x30] sm:$0xff] %v150
  %167 = vst [vmem:[#allocation2 + $0x38] sm:$0xff] %v151
  %168 = vst [vmem:[#allocation2 + $0x40] sm:$0xff] %v152
  %169 = vst [vmem:[#allocation2 + $0x48] sm:$0xff] %v153
  %170 = vst [vmem:[#allocation2 + $0x50] sm:$0xff] %v154
  %171 = vst [vmem:[#allocation2 + $0x58] sm:$0xff] %v155
  %172 = vst [vmem:[#allocation2 + $0x60] sm:$0xff] %v156
  %173 = vst [vmem:[#allocation2 + $0x68] sm:$0xff] %v157
  %174 = vst [vmem:[#allocation2 + $0x70] sm:$0xff] %v158
  %175 = vst [vmem:[#allocation2 + $0x78] sm:$0xff] %v159
  // Predicated region
  $region14: #{zhugo_forward.40} parent=0 // pred_check
    %p176 = pneg %p11
  $region15: #{zhugo_forward.40} parent=0 // pred_check_branch
    %178 = sbr.rel (%p176) target = $region17
  $region16: #{zhugo_forward.40} parent=0 // pred_region
    %v179 = vld [vmem:[#allocation2] sm:$0xff]
    %v180 = vld [vmem:[#allocation2 + $0x8] sm:$0xff]
    %v181 = vld [vmem:[#allocation2 + $0x10] sm:$0xff]
    %v182 = vld [vmem:[#allocation2 + $0x18] sm:$0xff]
    %v183 = vld [vmem:[#allocation2 + $0x20] sm:$0xff]
    %v184 = vld [vmem:[#allocation2 + $0x28] sm:$0xff]
    %v185 = vld [vmem:[#allocation2 + $0x30] sm:$0xff]
    %v186 = vld [vmem:[#allocation2 + $0x38] sm:$0xff]
    %v187 = vld [vmem:[#allocation2 + $0x40] sm:$0xff]
    %v188 = vld [vmem:[#allocation2 + $0x48] sm:$0xff]
    %v189 = vld [vmem:[#allocation2 + $0x50] sm:$0xff]
    %v190 = vld [vmem:[#allocation2 + $0x58] sm:$0xff]
    %v191 = vld [vmem:[#allocation2 + $0x60] sm:$0xff]
    %v192 = vld [vmem:[#allocation2 + $0x68] sm:$0xff]
    %v193 = vld [vmem:[#allocation2 + $0x70] sm:$0xff]
    %v194 = vld [vmem:[#allocation2 + $0x78] sm:$0xff]
    %195 = vst [vmem:[%s2] sm:$0xff] %v179
    %196 = vst [vmem:[%s2 + $0x8] sm:$0xff] %v180
    %197 = vst [vmem:[%s2 + $0x10] sm:$0xff] %v181
    %198 = vst [vmem:[%s2 + $0x18] sm:$0xff] %v182
    %199 = vst [vmem:[%s2 + $0x20] sm:$0xff] %v183
    %200 = vst [vmem:[%s2 + $0x28] sm:$0xff] %v184
    %201 = vst [vmem:[%s2 + $0x30] sm:$0xff] %v185
    %202 = vst [vmem:[%s2 + $0x38] sm:$0xff] %v186
    %203 = vst [vmem:[%s2 + $0x40] sm:$0xff] %v187
    %204 = vst [vmem:[%s2 + $0x48] sm:$0xff] %v188
    %205 = vst [vmem:[%s2 + $0x50] sm:$0xff] %v189
    %206 = vst [vmem:[%s2 + $0x58] sm:$0xff] %v190
    %207 = vst [vmem:[%s2 + $0x60] sm:$0xff] %v191
    %208 = vst [vmem:[%s2 + $0x68] sm:$0xff] %v192
    %209 = vst [vmem:[%s2 + $0x70] sm:$0xff] %v193
    %210 = vst [vmem:[%s2 + $0x78] sm:$0xff] %v194
  $region17: #{zhugo_forward.40} parent=0 // pred_fallthru
    _
  // Predicated region
  $region18: #{zhugo_forward.40} parent=0 // pred_check
    _
  $region19: #{zhugo_forward.40} parent=0 // pred_check_branch
    %212 = sbr.rel (0) target = $region21
  $region20: #{zhugo_forward.40} parent=0 // pred_region
    _
  $region21: #{zhugo_forward.40} parent=0 // pred_fallthru
    _
  // Predicated region
  $region22: #{zhugo_forward.40} parent=0 // pred_check
    _
  $region23: #{zhugo_forward.40} parent=0 // pred_check_branch
    %214 = sbr.rel (0) target = $region25
  $region24: #{zhugo_forward.40} parent=0 // pred_region
    _
  $region25: #{zhugo_forward.40} parent=0 // pred_fallthru
    _

// kernel: zhugo_forward.41
$region0: #{zhugo_forward.41}
  #allocation0 [shape = 'u32[]', space=smem, size = 0x4, offset = 0x4, fixed_abs, tag = 'smem constant byte address 0x4 - core index']
  #allocation1 [shape = 'u32[72,128]{1,0:T(1,128)}', space=vmem, size = 0x9000, scoped, tag = 'internal scratch']
  #allocation2 [shape = 'f32[128,128]{1,0:T(8,128)}', space=vmem, size = 0x10000, scoped, tag = 'scratch operand']
  %s0 = inlined_call_operand.vmem [shape: f32[128,128], index: 0, kind: input, shape index: {}]
  %s1 = inlined_call_operand.vmem [shape: f32[128,128], index: 1, kind: input, shape index: {}]
  %s2 = inlined_call_operand.vmem [shape: f32[1,128], index: 2, kind: input, shape index: {}]
  %s3 = inlined_call_operand.vmem [shape: f32[1,128], index: 3, kind: input, shape index: {}]
  %s4 = inlined_call_operand.vmem [shape: f32[128,128], index: 4, kind: output, shape index: {}]
  %s5 = sld [smem:[#allocation0]]
  $region34: #{zhugo_forward.41} parent=0
    _
  %s7 = ssub.s32 1, %s5
  %s8 = scalar_select 0, %s7, %s5
  // Predicated region
  $region2: #{zhugo_forward.41} parent=0 // pred_check
    _
  $region3: #{zhugo_forward.41} parent=0 // pred_check_branch
    %10 = sbr.rel (0) target = $region5
  $region4: #{zhugo_forward.41} parent=0 // pred_region
    _
  $region5: #{zhugo_forward.41} parent=0 // pred_fallthru
    _
  // Predicated region
  $region6: #{zhugo_forward.41} parent=0 // pred_check
    _
  $region7: #{zhugo_forward.41} parent=0 // pred_check_branch
    %12 = sbr.rel (0) target = $region9
  $region8: #{zhugo_forward.41} parent=0 // pred_region
    _
  $region9: #{zhugo_forward.41} parent=0 // pred_fallthru
    _
  // Predicated region
  $region10: #{zhugo_forward.41} parent=0 // pred_check
    _
  $region11: #{zhugo_forward.41} parent=0 // pred_check_branch
    %14 = sbr.rel (0) target = $region13
  $region12: #{zhugo_forward.41} parent=0 // pred_region
    _
  $region13: #{zhugo_forward.41} parent=0 // pred_fallthru
    _
  // Predicated region
  $region14: #{zhugo_forward.41} parent=0 // pred_check
    _
  $region15: #{zhugo_forward.41} parent=0 // pred_check_branch
    %16 = sbr.rel (0) target = $region17
  $region16: #{zhugo_forward.41} parent=0 // pred_region
    _
  $region17: #{zhugo_forward.41} parent=0 // pred_fallthru
    _
  %p17 = scmp.eq.s32.totalorder 0, 0
  // Predicated region
  $region18: #{zhugo_forward.41} parent=0 // pred_check
    %p18 = pneg %p17
  $region19: #{zhugo_forward.41} parent=0 // pred_check_branch
    %20 = sbr.rel (%p18) target = $region21
  $region20: #{zhugo_forward.41} parent=0 // pred_region
    %21 = vst [vmem:[#allocation2] sm:$0xff] 0.0
    %22 = vst [vmem:[#allocation2 + $0x8] sm:$0xff] 0.0
    %23 = vst [vmem:[#allocation2 + $0x10] sm:$0xff] 0.0
    %24 = vst [vmem:[#allocation2 + $0x18] sm:$0xff] 0.0
    %25 = vst [vmem:[#allocation2 + $0x20] sm:$0xff] 0.0
    %26 = vst [vmem:[#allocation2 + $0x28] sm:$0xff] 0.0
    %27 = vst [vmem:[#allocation2 + $0x30] sm:$0xff] 0.0
    %28 = vst [vmem:[#allocation2 + $0x38] sm:$0xff] 0.0
    %29 = vst [vmem:[#allocation2 + $0x40] sm:$0xff] 0.0
    %30 = vst [vmem:[#allocation2 + $0x48] sm:$0xff] 0.0
    %31 = vst [vmem:[#allocation2 + $0x50] sm:$0xff] 0.0
    %32 = vst [vmem:[#allocation2 + $0x58] sm:$0xff] 0.0
    %33 = vst [vmem:[#allocation2 + $0x60] sm:$0xff] 0.0
    %34 = vst [vmem:[#allocation2 + $0x68] sm:$0xff] 0.0
    %35 = vst [vmem:[#allocation2 + $0x70] sm:$0xff] 0.0
    %36 = vst [vmem:[#allocation2 + $0x78] sm:$0xff] 0.0
  $region21: #{zhugo_forward.41} parent=0 // pred_fallthru
    _
  %v37 = vld [vmem:[%s0] sm:$0xff]
  %v38 = vld [vmem:[%s0 + $0x8] sm:$0xff]
  %v39 = vld [vmem:[%s0 + $0x10] sm:$0xff]
  %v40 = vld [vmem:[%s0 + $0x18] sm:$0xff]
  %v41 = vld [vmem:[%s0 + $0x20] sm:$0xff]
  %v42 = vld [vmem:[%s0 + $0x28] sm:$0xff]
  %v43 = vld [vmem:[%s0 + $0x30] sm:$0xff]
  %v44 = vld [vmem:[%s0 + $0x38] sm:$0xff]
  %v45 = vld [vmem:[%s0 + $0x40] sm:$0xff]
  %v46 = vld [vmem:[%s0 + $0x48] sm:$0xff]
  %v47 = vld [vmem:[%s0 + $0x50] sm:$0xff]
  %v48 = vld [vmem:[%s0 + $0x58] sm:$0xff]
  %v49 = vld [vmem:[%s0 + $0x60] sm:$0xff]
  %v50 = vld [vmem:[%s0 + $0x68] sm:$0xff]
  %v51 = vld [vmem:[%s0 + $0x70] sm:$0xff]
  %v52 = vld [vmem:[%s0 + $0x78] sm:$0xff]
  %v53 = vld [vmem:[%s2] sm:$0x1]
  %v55 = vperm.slane %v53, 0
  %v57 = vmul.f32 %v37, %v55
  %v58 = vmul.f32 %v38, %v55
  %v59 = vmul.f32 %v39, %v55
  %v60 = vmul.f32 %v40, %v55
  %v61 = vmul.f32 %v41, %v55
  %v62 = vmul.f32 %v42, %v55
  %v63 = vmul.f32 %v43, %v55
  %v64 = vmul.f32 %v44, %v55
  %v65 = vmul.f32 %v45, %v55
  %v66 = vmul.f32 %v46, %v55
  %v67 = vmul.f32 %v47, %v55
  %v68 = vmul.f32 %v48, %v55
  %v69 = vmul.f32 %v49, %v55
  %v70 = vmul.f32 %v50, %v55
  %v71 = vmul.f32 %v51, %v55
  %v72 = vmul.f32 %v52, %v55
  %v73 = vld [vmem:[%s3] sm:$0x1]
  %v75 = vperm.slane %v73, 0
  %v77 = vadd.f32 %v57, %v75
  %v78 = vadd.f32 %v58, %v75
  %v79 = vadd.f32 %v59, %v75
  %v80 = vadd.f32 %v60, %v75
  %v81 = vadd.f32 %v61, %v75
  %v82 = vadd.f32 %v62, %v75
  %v83 = vadd.f32 %v63, %v75
  %v84 = vadd.f32 %v64, %v75
  %v85 = vadd.f32 %v65, %v75
  %v86 = vadd.f32 %v66, %v75
  %v87 = vadd.f32 %v67, %v75
  %v88 = vadd.f32 %v68, %v75
  %v89 = vadd.f32 %v69, %v75
  %v90 = vadd.f32 %v70, %v75
  %v91 = vadd.f32 %v71, %v75
  %v92 = vadd.f32 %v72, %v75
  %vm93 = vcmp.ge.f32.partialorder %v77, 0.0
  %vm94 = vcmp.ge.f32.partialorder %v78, 0.0
  %vm95 = vcmp.ge.f32.partialorder %v79, 0.0
  %vm96 = vcmp.ge.f32.partialorder %v80, 0.0
  %vm97 = vcmp.ge.f32.partialorder %v81, 0.0
  %vm98 = vcmp.ge.f32.partialorder %v82, 0.0
  %vm99 = vcmp.ge.f32.partialorder %v83, 0.0
  %vm100 = vcmp.ge.f32.partialorder %v84, 0.0
  %vm101 = vcmp.ge.f32.partialorder %v85, 0.0
  %vm102 = vcmp.ge.f32.partialorder %v86, 0.0
  %vm103 = vcmp.ge.f32.partialorder %v87, 0.0
  %vm104 = vcmp.ge.f32.partialorder %v88, 0.0
  %vm105 = vcmp.ge.f32.partialorder %v89, 0.0
  %vm106 = vcmp.ge.f32.partialorder %v90, 0.0
  %vm107 = vcmp.ge.f32.partialorder %v91, 0.0
  %vm108 = vcmp.ge.f32.partialorder %v92, 0.0
  %v109 = vmul.f32 %v77, 0.01
  %v110 = vmul.f32 %v78, 0.01
  %v111 = vmul.f32 %v79, 0.01
  %v112 = vmul.f32 %v80, 0.01
  %v113 = vmul.f32 %v81, 0.01
  %v114 = vmul.f32 %v82, 0.01
  %v115 = vmul.f32 %v83, 0.01
  %v116 = vmul.f32 %v84, 0.01
  %v117 = vmul.f32 %v85, 0.01
  %v118 = vmul.f32 %v86, 0.01
  %v119 = vmul.f32 %v87, 0.01
  %v120 = vmul.f32 %v88, 0.01
  %v121 = vmul.f32 %v89, 0.01
  %v122 = vmul.f32 %v90, 0.01
  %v123 = vmul.f32 %v91, 0.01
  %v124 = vmul.f32 %v92, 0.01
  %v125 = vsel %vm93, %v77, %v109
  %v126 = vsel %vm94, %v78, %v110
  %v127 = vsel %vm95, %v79, %v111
  %v128 = vsel %vm96, %v80, %v112
  %v129 = vsel %vm97, %v81, %v113
  %v130 = vsel %vm98, %v82, %v114
  %v131 = vsel %vm99, %v83, %v115
  %v132 = vsel %vm100, %v84, %v116
  %v133 = vsel %vm101, %v85, %v117
  %v134 = vsel %vm102, %v86, %v118
  %v135 = vsel %vm103, %v87, %v119
  %v136 = vsel %vm104, %v88, %v120
  %v137 = vsel %vm105, %v89, %v121
  %v138 = vsel %vm106, %v90, %v122
  %v139 = vsel %vm107, %v91, %v123
  %v140 = vsel %vm108, %v92, %v124
  %v141 = vld [vmem:[%s1] sm:$0xff]
  %v142 = vld [vmem:[%s1 + $0x8] sm:$0xff]
  %v143 = vld [vmem:[%s1 + $0x10] sm:$0xff]
  %v144 = vld [vmem:[%s1 + $0x18] sm:$0xff]
  %v145 = vld [vmem:[%s1 + $0x20] sm:$0xff]
  %v146 = vld [vmem:[%s1 + $0x28] sm:$0xff]
  %v147 = vld [vmem:[%s1 + $0x30] sm:$0xff]
  %v148 = vld [vmem:[%s1 + $0x38] sm:$0xff]
  %v149 = vld [vmem:[%s1 + $0x40] sm:$0xff]
  %v150 = vld [vmem:[%s1 + $0x48] sm:$0xff]
  %v151 = vld [vmem:[%s1 + $0x50] sm:$0xff]
  %v152 = vld [vmem:[%s1 + $0x58] sm:$0xff]
  %v153 = vld [vmem:[%s1 + $0x60] sm:$0xff]
  %v154 = vld [vmem:[%s1 + $0x68] sm:$0xff]
  %v155 = vld [vmem:[%s1 + $0x70] sm:$0xff]
  %v156 = vld [vmem:[%s1 + $0x78] sm:$0xff]
  %v157 = vpack.c.bf16 %v126, %v125
  %v158 = vpack.c.bf16 %v128, %v127
  %v159 = vpack.c.bf16 %v130, %v129
  %v160 = vpack.c.bf16 %v132, %v131
  %v161 = vpack.c.bf16 %v134, %v133
  %v162 = vpack.c.bf16 %v136, %v135
  %v163 = vpack.c.bf16 %v138, %v137
  %v164 = vpack.c.bf16 %v140, %v139
  %v165 = vpack.c.bf16 %v142, %v141
  %v166 = vpack.c.bf16 %v144, %v143
  %v167 = vpack.c.bf16 %v146, %v145
  %v168 = vpack.c.bf16 %v148, %v147
  %v169 = vpack.c.bf16 %v150, %v149
  %v170 = vpack.c.bf16 %v152, %v151
  %v171 = vpack.c.bf16 %v154, %v153
  %v172 = vpack.c.bf16 %v156, %v155
  %v173 = vld [vmem:[#allocation2] sm:$0xff]
  %v174 = vld [vmem:[#allocation2 + $0x8] sm:$0xff]
  %v175 = vld [vmem:[#allocation2 + $0x10] sm:$0xff]
  %v176 = vld [vmem:[#allocation2 + $0x18] sm:$0xff]
  %v177 = vld [vmem:[#allocation2 + $0x20] sm:$0xff]
  %v178 = vld [vmem:[#allocation2 + $0x28] sm:$0xff]
  %v179 = vld [vmem:[#allocation2 + $0x30] sm:$0xff]
  %v180 = vld [vmem:[#allocation2 + $0x38] sm:$0xff]
  %v181 = vld [vmem:[#allocation2 + $0x40] sm:$0xff]
  %v182 = vld [vmem:[#allocation2 + $0x48] sm:$0xff]
  %v183 = vld [vmem:[#allocation2 + $0x50] sm:$0xff]
  %v184 = vld [vmem:[#allocation2 + $0x58] sm:$0xff]
  %v185 = vld [vmem:[#allocation2 + $0x60] sm:$0xff]
  %v186 = vld [vmem:[#allocation2 + $0x68] sm:$0xff]
  %v187 = vld [vmem:[#allocation2 + $0x70] sm:$0xff]
  %v188 = vld [vmem:[#allocation2 + $0x78] sm:$0xff]
  %189 = vmatpush.bf16.msra.mxu0 %v172
  %190 = vmatpush.bf16.msra.mxu0 %v171
  %191 = vmatpush.bf16.msra.mxu0 %v170
  %192 = vmatpush.bf16.msra.mxu0 %v169
  %193 = vmatpush.bf16.msra.mxu0 %v168
  %194 = vmatpush.bf16.msra.mxu0 %v167
  %195 = vmatpush.bf16.msra.mxu0 %v166
  %196 = vmatpush.bf16.msra.mxu0 %v165
  %197 = vmatmul.bf16.gmra.mxu0 %v157
  %v198 = vpop.f32.mrf.mxu0
  %v199 = vadd.f32 0.0, %v198
  %v200 = vpop.f32.mrf.mxu0
  %v201 = vadd.f32 0.0, %v200
  %202 = vmatmul.bf16.gmra.mxu0 %v158
  %v203 = vpop.f32.mrf.mxu0
  %v204 = vadd.f32 0.0, %v203
  %v205 = vpop.f32.mrf.mxu0
  %v206 = vadd.f32 0.0, %v205
  %207 = vmatmul.bf16.gmra.mxu0 %v159
  %v208 = vpop.f32.mrf.mxu0
  %v209 = vadd.f32 0.0, %v208
  %v210 = vpop.f32.mrf.mxu0
  %v211 = vadd.f32 0.0, %v210
  %212 = vmatmul.bf16.gmra.mxu0 %v160
  %v213 = vpop.f32.mrf.mxu0
  %v214 = vadd.f32 0.0, %v213
  %v215 = vpop.f32.mrf.mxu0
  %v216 = vadd.f32 0.0, %v215
  %217 = vmatmul.bf16.gmra.mxu0 %v161
  %v218 = vpop.f32.mrf.mxu0
  %v219 = vadd.f32 0.0, %v218
  %v220 = vpop.f32.mrf.mxu0
  %v221 = vadd.f32 0.0, %v220
  %222 = vmatmul.bf16.gmra.mxu0 %v162
  %v223 = vpop.f32.mrf.mxu0
  %v224 = vadd.f32 0.0, %v223
  %v225 = vpop.f32.mrf.mxu0
  %v226 = vadd.f32 0.0, %v225
  %227 = vmatmul.bf16.gmra.mxu0 %v163
  %v228 = vpop.f32.mrf.mxu0
  %v229 = vadd.f32 0.0, %v228
  %v230 = vpop.f32.mrf.mxu0
  %v231 = vadd.f32 0.0, %v230
  %232 = vmatmul.bf16.gmra.mxu0 %v164
  %v233 = vpop.f32.mrf.mxu0
  %v234 = vadd.f32 0.0, %v233
  %v235 = vpop.f32.mrf.mxu0
  %v236 = vadd.f32 0.0, %v235
  %237 = vdwg.mxu0
  %v238 = vadd.f32 %v173, %v199
  %v239 = vadd.f32 %v174, %v201
  %v240 = vadd.f32 %v175, %v204
  %v241 = vadd.f32 %v176, %v206
  %v242 = vadd.f32 %v177, %v209
  %v243 = vadd.f32 %v178, %v211
  %v244 = vadd.f32 %v179, %v214
  %v245 = vadd.f32 %v180, %v216
  %v246 = vadd.f32 %v181, %v219
  %v247 = vadd.f32 %v182, %v221
  %v248 = vadd.f32 %v183, %v224
  %v249 = vadd.f32 %v184, %v226
  %v250 = vadd.f32 %v185, %v229
  %v251 = vadd.f32 %v186, %v231
  %v252 = vadd.f32 %v187, %v234
  %v253 = vadd.f32 %v188, %v236
  %254 = vst [vmem:[#allocation2] sm:$0xff] %v238
  %255 = vst [vmem:[#allocation2 + $0x8] sm:$0xff] %v239
  %256 = vst [vmem:[#allocation2 + $0x10] sm:$0xff] %v240
  %257 = vst [vmem:[#allocation2 + $0x18] sm:$0xff] %v241
  %258 = vst [vmem:[#allocation2 + $0x20] sm:$0xff] %v242
  %259 = vst [vmem:[#allocation2 + $0x28] sm:$0xff] %v243
  %260 = vst [vmem:[#allocation2 + $0x30] sm:$0xff] %v244
  %261 = vst [vmem:[#allocation2 + $0x38] sm:$0xff] %v245
  %262 = vst [vmem:[#allocation2 + $0x40] sm:$0xff] %v246
  %263 = vst [vmem:[#allocation2 + $0x48] sm:$0xff] %v247
  %264 = vst [vmem:[#allocation2 + $0x50] sm:$0xff] %v248
  %265 = vst [vmem:[#allocation2 + $0x58] sm:$0xff] %v249
  %266 = vst [vmem:[#allocation2 + $0x60] sm:$0xff] %v250
  %267 = vst [vmem:[#allocation2 + $0x68] sm:$0xff] %v251
  %268 = vst [vmem:[#allocation2 + $0x70] sm:$0xff] %v252
  %269 = vst [vmem:[#allocation2 + $0x78] sm:$0xff] %v253
  // Predicated region
  $region22: #{zhugo_forward.41} parent=0 // pred_check
    %p270 = pneg %p17
  $region23: #{zhugo_forward.41} parent=0 // pred_check_branch
    %272 = sbr.rel (%p270) target = $region25
  $region24: #{zhugo_forward.41} parent=0 // pred_region
    %v273 = vld [vmem:[#allocation2] sm:$0xff]
    %v274 = vld [vmem:[#allocation2 + $0x8] sm:$0xff]
    %v275 = vld [vmem:[#allocation2 + $0x10] sm:$0xff]
    %v276 = vld [vmem:[#allocation2 + $0x18] sm:$0xff]
    %v277 = vld [vmem:[#allocation2 + $0x20] sm:$0xff]
    %v278 = vld [vmem:[#allocation2 + $0x28] sm:$0xff]
    %v279 = vld [vmem:[#allocation2 + $0x30] sm:$0xff]
    %v280 = vld [vmem:[#allocation2 + $0x38] sm:$0xff]
    %v281 = vld [vmem:[#allocation2 + $0x40] sm:$0xff]
    %v282 = vld [vmem:[#allocation2 + $0x48] sm:$0xff]
    %v283 = vld [vmem:[#allocation2 + $0x50] sm:$0xff]
    %v284 = vld [vmem:[#allocation2 + $0x58] sm:$0xff]
    %v285 = vld [vmem:[#allocation2 + $0x60] sm:$0xff]
    %v286 = vld [vmem:[#allocation2 + $0x68] sm:$0xff]
    %v287 = vld [vmem:[#allocation2 + $0x70] sm:$0xff]
    %v288 = vld [vmem:[#allocation2 + $0x78] sm:$0xff]
    %289 = vst [vmem:[%s4] sm:$0xff] %v273
    %290 = vst [vmem:[%s4 + $0x8] sm:$0xff] %v274
    %291 = vst [vmem:[%s4 + $0x10] sm:$0xff] %v275
    %292 = vst [vmem:[%s4 + $0x18] sm:$0xff] %v276
    %293 = vst [vmem:[%s4 + $0x20] sm:$0xff] %v277
    %294 = vst [vmem:[%s4 + $0x28] sm:$0xff] %v278
    %295 = vst [vmem:[%s4 + $0x30] sm:$0xff] %v279
    %296 = vst [vmem:[%s4 + $0x38] sm:$0xff] %v280
    %297 = vst [vmem:[%s4 + $0x40] sm:$0xff] %v281
    %298 = vst [vmem:[%s4 + $0x48] sm:$0xff] %v282
    %299 = vst [vmem:[%s4 + $0x50] sm:$0xff] %v283
    %300 = vst [vmem:[%s4 + $0x58] sm:$0xff] %v284
    %301 = vst [vmem:[%s4 + $0x60] sm:$0xff] %v285
    %302 = vst [vmem:[%s4 + $0x68] sm:$0xff] %v286
    %303 = vst [vmem:[%s4 + $0x70] sm:$0xff] %v287
    %304 = vst [vmem:[%s4 + $0x78] sm:$0xff] %v288
  $region25: #{zhugo_forward.41} parent=0 // pred_fallthru
    _
  // Predicated region
  $region26: #{zhugo_forward.41} parent=0 // pred_check
    _
  $region27: #{zhugo_forward.41} parent=0 // pred_check_branch
    %306 = sbr.rel (0) target = $region29
  $region28: #{zhugo_forward.41} parent=0 // pred_region
    _
  $region29: #{zhugo_forward.41} parent=0 // pred_fallthru
    _
  // Predicated region
  $region30: #{zhugo_forward.41} parent=0 // pred_check
    _
  $region31: #{zhugo_forward.41} parent=0 // pred_check_branch
    %308 = sbr.rel (0) target = $region33
  $region32: #{zhugo_forward.41} parent=0 // pred_region
    _
  $region33: #{zhugo_forward.41} parent=0 // pred_fallthru
    _

// kernel: tile.113
$region0: #{tile.113}
  #allocation0 [shape = 's32[1]{0}', space=sflag, size = 0x4, scoped, tag = 'scoped memory for tile.113']
  %s0 = inlined_call_operand.vmem [shape: f32[16], index: 0, kind: input, shape index: {}]
  %s1 = inlined_call_operand.vmem [shape: f32[8,16], index: 1, kind: output, shape index: {}]
  // Predicated region
  $region2: #{tile.113} parent=0 // pred_check
    _
  $region3: #{tile.113} parent=0 // pred_check_branch
    %3 = sbr.rel (0) target = $region5
  $region4: #{tile.113} parent=0 // pred_region
    _
  $region5: #{tile.113} parent=0 // pred_fallthru
    _
  %v4 = vld [vmem:[%s0] ss:$0 sm:$0xff]
  %5 = vst [vmem:[%s1] sm:$0xff] %v4

// kernel: tile.114
$region0: #{tile.114}
  %s0 = inlined_call_operand.vmem [shape: f32[8,16], index: 0, kind: input, shape index: {}]
  %s1 = inlined_call_operand.vmem [shape: f32[1,128], index: 1, kind: output, shape index: {}]
  $region1: #{tile.114} parent=0
    #allocation0 [shape = 'u8[4096]{0}', space=vmem, size = 0x1000, scoped, tag = 'scoped mem for output reshape']
    %v2 = vld [vmem:[%s0] sm:$0x1]
    %vm3 = vcmask 130048
    %4 = vst.msk [vmem:[#allocation0] sm:$0x1] %vm3, %v2
    %s5 = scalar_lea.vmem %s0, 7
    %v6 = vld [vmem:[%s5] sm:$0x1]
    %7 = vrot.lane.b32.xlu0 %v6, 112
    %v8 = vpop.permute.xlu0 %7
    %vm9 = vcmask 1048448
    %10 = vst.msk [vmem:[#allocation0] sm:$0x1] %vm9, %v8
    %s11 = scalar_lea.vmem %s0, 6
    %v12 = vld [vmem:[%s11] sm:$0x1]
    %13 = vrot.lane.b32.xlu0 %v12, 96
    %v14 = vpop.permute.xlu0 %13
    %vm15 = vcmask 917248
    %16 = vst.msk [vmem:[#allocation0] sm:$0x1] %vm15, %v14
    %s17 = scalar_lea.vmem %s0, 5
    %v18 = vld [vmem:[%s17] sm:$0x1]
    %19 = vrot.lane.b32.xlu0 %v18, 80
    %v20 = vpop.permute.xlu0 %19
    %vm21 = vcmask 786048
    %22 = vst.msk [vmem:[#allocation0] sm:$0x1] %vm21, %v20
    %s23 = scalar_lea.vmem %s0, 4
    %v24 = vld [vmem:[%s23] sm:$0x1]
    %25 = vrot.lane.b32.xlu0 %v24, 64
    %v26 = vpop.permute.xlu0 %25
    %vm27 = vcmask 654848
    %28 = vst.msk [vmem:[#allocation0] sm:$0x1] %vm27, %v26
    %s29 = scalar_lea.vmem %s0, 3
    %v30 = vld [vmem:[%s29] sm:$0x1]
    %31 = vrot.lane.b32.xlu0 %v30, 48
    %v32 = vpop.permute.xlu0 %31
    %vm33 = vcmask 523648
    %34 = vst.msk [vmem:[#allocation0] sm:$0x1] %vm33, %v32
    %s35 = scalar_lea.vmem %s0, 2
    %v36 = vld [vmem:[%s35] sm:$0x1]
    %37 = vrot.lane.b32.xlu0 %v36, 32
    %v38 = vpop.permute.xlu0 %37
    %vm39 = vcmask 392448
    %40 = vst.msk [vmem:[#allocation0] sm:$0x1] %vm39, %v38
    %s41 = scalar_lea.vmem %s0, 1
    %v42 = vld [vmem:[%s41] sm:$0x1]
    %43 = vrot.lane.b32.xlu0 %v42, 16
    %v44 = vpop.permute.xlu0 %43
    %vm45 = vcmask 261248
    %46 = vst.msk [vmem:[#allocation0] sm:$0x1] %vm45, %v44
    %s48 = ssub.s32 2, 1
    %v49 = vld [vmem:[#allocation0] sm:%s48]
    %s51 = ssub.s32 2, 1
    %52 = vst [vmem:[%s1] sm:%s51] %v49

// kernel: zhugo_forward.43
$region0: #{zhugo_forward.43}
  #allocation0 [shape = 'u32[]', space=smem, size = 0x4, offset = 0x4, fixed_abs, tag = 'smem constant byte address 0x4 - core index']
  #allocation1 [shape = 'u32[72,128]{1,0:T(1,128)}', space=vmem, size = 0x9000, scoped, tag = 'internal scratch']
  #allocation2 [shape = 'f32[128,128]{1,0:T(8,128)}', space=vmem, size = 0x10000, scoped, tag = 'scratch operand']
  %s0 = inlined_call_operand.vmem [shape: f32[128,128], index: 0, kind: input, shape index: {}]
  %s1 = inlined_call_operand.vmem [shape: f32[128,128], index: 1, kind: input, shape index: {}]
  %s2 = inlined_call_operand.vmem [shape: f32[1,128], index: 2, kind: input, shape index: {}]
  %s3 = inlined_call_operand.vmem [shape: f32[1,128], index: 3, kind: input, shape index: {}]
  %s4 = inlined_call_operand.vmem [shape: f32[128,128], index: 4, kind: output, shape index: {}]
  %s5 = sld [smem:[#allocation0]]
  $region34: #{zhugo_forward.43} parent=0
    _
  %s7 = ssub.s32 1, %s5
  %s8 = scalar_select 0, %s7, %s5
  // Predicated region
  $region2: #{zhugo_forward.43} parent=0 // pred_check
    _
  $region3: #{zhugo_forward.43} parent=0 // pred_check_branch
    %10 = sbr.rel (0) target = $region5
  $region4: #{zhugo_forward.43} parent=0 // pred_region
    _
  $region5: #{zhugo_forward.43} parent=0 // pred_fallthru
    _
  // Predicated region
  $region6: #{zhugo_forward.43} parent=0 // pred_check
    _
  $region7: #{zhugo_forward.43} parent=0 // pred_check_branch
    %12 = sbr.rel (0) target = $region9
  $region8: #{zhugo_forward.43} parent=0 // pred_region
    _
  $region9: #{zhugo_forward.43} parent=0 // pred_fallthru
    _
  // Predicated region
  $region10: #{zhugo_forward.43} parent=0 // pred_check
    _
  $region11: #{zhugo_forward.43} parent=0 // pred_check_branch
    %14 = sbr.rel (0) target = $region13
  $region12: #{zhugo_forward.43} parent=0 // pred_region
    _
  $region13: #{zhugo_forward.43} parent=0 // pred_fallthru
    _
  // Predicated region
  $region14: #{zhugo_forward.43} parent=0 // pred_check
    _
  $region15: #{zhugo_forward.43} parent=0 // pred_check_branch
    %16 = sbr.rel (0) target = $region17
  $region16: #{zhugo_forward.43} parent=0 // pred_region
    _
  $region17: #{zhugo_forward.43} parent=0 // pred_fallthru
    _
  %p17 = scmp.eq.s32.totalorder 0, 0
  // Predicated region
  $region18: #{zhugo_forward.43} parent=0 // pred_check
    %p18 = pneg %p17
  $region19: #{zhugo_forward.43} parent=0 // pred_check_branch
    %20 = sbr.rel (%p18) target = $region21
  $region20: #{zhugo_forward.43} parent=0 // pred_region
    %21 = vst [vmem:[#allocation2] sm:$0xff] 0.0
    %22 = vst [vmem:[#allocation2 + $0x8] sm:$0xff] 0.0
    %23 = vst [vmem:[#allocation2 + $0x10] sm:$0xff] 0.0
    %24 = vst [vmem:[#allocation2 + $0x18] sm:$0xff] 0.0
    %25 = vst [vmem:[#allocation2 + $0x20] sm:$0xff] 0.0
    %26 = vst [vmem:[#allocation2 + $0x28] sm:$0xff] 0.0
    %27 = vst [vmem:[#allocation2 + $0x30] sm:$0xff] 0.0
    %28 = vst [vmem:[#allocation2 + $0x38] sm:$0xff] 0.0
    %29 = vst [vmem:[#allocation2 + $0x40] sm:$0xff] 0.0
    %30 = vst [vmem:[#allocation2 + $0x48] sm:$0xff] 0.0
    %31 = vst [vmem:[#allocation2 + $0x50] sm:$0xff] 0.0
    %32 = vst [vmem:[#allocation2 + $0x58] sm:$0xff] 0.0
    %33 = vst [vmem:[#allocation2 + $0x60] sm:$0xff] 0.0
    %34 = vst [vmem:[#allocation2 + $0x68] sm:$0xff] 0.0
    %35 = vst [vmem:[#allocation2 + $0x70] sm:$0xff] 0.0
    %36 = vst [vmem:[#allocation2 + $0x78] sm:$0xff] 0.0
  $region21: #{zhugo_forward.43} parent=0 // pred_fallthru
    _
  %v37 = vld [vmem:[%s0] sm:$0xff]
  %v38 = vld [vmem:[%s0 + $0x8] sm:$0xff]
  %v39 = vld [vmem:[%s0 + $0x10] sm:$0xff]
  %v40 = vld [vmem:[%s0 + $0x18] sm:$0xff]
  %v41 = vld [vmem:[%s0 + $0x20] sm:$0xff]
  %v42 = vld [vmem:[%s0 + $0x28] sm:$0xff]
  %v43 = vld [vmem:[%s0 + $0x30] sm:$0xff]
  %v44 = vld [vmem:[%s0 + $0x38] sm:$0xff]
  %v45 = vld [vmem:[%s0 + $0x40] sm:$0xff]
  %v46 = vld [vmem:[%s0 + $0x48] sm:$0xff]
  %v47 = vld [vmem:[%s0 + $0x50] sm:$0xff]
  %v48 = vld [vmem:[%s0 + $0x58] sm:$0xff]
  %v49 = vld [vmem:[%s0 + $0x60] sm:$0xff]
  %v50 = vld [vmem:[%s0 + $0x68] sm:$0xff]
  %v51 = vld [vmem:[%s0 + $0x70] sm:$0xff]
  %v52 = vld [vmem:[%s0 + $0x78] sm:$0xff]
  %v53 = vld [vmem:[%s1] sm:$0xff]
  %v54 = vld [vmem:[%s1 + $0x8] sm:$0xff]
  %v55 = vld [vmem:[%s1 + $0x10] sm:$0xff]
  %v56 = vld [vmem:[%s1 + $0x18] sm:$0xff]
  %v57 = vld [vmem:[%s1 + $0x20] sm:$0xff]
  %v58 = vld [vmem:[%s1 + $0x28] sm:$0xff]
  %v59 = vld [vmem:[%s1 + $0x30] sm:$0xff]
  %v60 = vld [vmem:[%s1 + $0x38] sm:$0xff]
  %v61 = vld [vmem:[%s1 + $0x40] sm:$0xff]
  %v62 = vld [vmem:[%s1 + $0x48] sm:$0xff]
  %v63 = vld [vmem:[%s1 + $0x50] sm:$0xff]
  %v64 = vld [vmem:[%s1 + $0x58] sm:$0xff]
  %v65 = vld [vmem:[%s1 + $0x60] sm:$0xff]
  %v66 = vld [vmem:[%s1 + $0x68] sm:$0xff]
  %v67 = vld [vmem:[%s1 + $0x70] sm:$0xff]
  %v68 = vld [vmem:[%s1 + $0x78] sm:$0xff]
  %v69 = vpack.c.bf16 %v38, %v37
  %v70 = vpack.c.bf16 %v40, %v39
  %v71 = vpack.c.bf16 %v42, %v41
  %v72 = vpack.c.bf16 %v44, %v43
  %v73 = vpack.c.bf16 %v46, %v45
  %v74 = vpack.c.bf16 %v48, %v47
  %v75 = vpack.c.bf16 %v50, %v49
  %v76 = vpack.c.bf16 %v52, %v51
  %v77 = vpack.c.bf16 %v54, %v53
  %v78 = vpack.c.bf16 %v56, %v55
  %v79 = vpack.c.bf16 %v58, %v57
  %v80 = vpack.c.bf16 %v60, %v59
  %v81 = vpack.c.bf16 %v62, %v61
  %v82 = vpack.c.bf16 %v64, %v63
  %v83 = vpack.c.bf16 %v66, %v65
  %v84 = vpack.c.bf16 %v68, %v67
  %v85 = vld [vmem:[#allocation2] sm:$0xff]
  %v86 = vld [vmem:[#allocation2 + $0x8] sm:$0xff]
  %v87 = vld [vmem:[#allocation2 + $0x10] sm:$0xff]
  %v88 = vld [vmem:[#allocation2 + $0x18] sm:$0xff]
  %v89 = vld [vmem:[#allocation2 + $0x20] sm:$0xff]
  %v90 = vld [vmem:[#allocation2 + $0x28] sm:$0xff]
  %v91 = vld [vmem:[#allocation2 + $0x30] sm:$0xff]
  %v92 = vld [vmem:[#allocation2 + $0x38] sm:$0xff]
  %v93 = vld [vmem:[#allocation2 + $0x40] sm:$0xff]
  %v94 = vld [vmem:[#allocation2 + $0x48] sm:$0xff]
  %v95 = vld [vmem:[#allocation2 + $0x50] sm:$0xff]
  %v96 = vld [vmem:[#allocation2 + $0x58] sm:$0xff]
  %v97 = vld [vmem:[#allocation2 + $0x60] sm:$0xff]
  %v98 = vld [vmem:[#allocation2 + $0x68] sm:$0xff]
  %v99 = vld [vmem:[#allocation2 + $0x70] sm:$0xff]
  %v100 = vld [vmem:[#allocation2 + $0x78] sm:$0xff]
  %101 = vmatpush.bf16.msra.mxu0 %v84
  %102 = vmatpush.bf16.msra.mxu0 %v83
  %103 = vmatpush.bf16.msra.mxu0 %v82
  %104 = vmatpush.bf16.msra.mxu0 %v81
  %105 = vmatpush.bf16.msra.mxu0 %v80
  %106 = vmatpush.bf16.msra.mxu0 %v79
  %107 = vmatpush.bf16.msra.mxu0 %v78
  %108 = vmatpush.bf16.msra.mxu0 %v77
  %109 = vmatmul.bf16.gmra.mxu0 %v69
  %v110 = vpop.f32.mrf.mxu0
  %v111 = vadd.f32 0.0, %v110
  %v112 = vpop.f32.mrf.mxu0
  %v113 = vadd.f32 0.0, %v112
  %114 = vmatmul.bf16.gmra.mxu0 %v70
  %v115 = vpop.f32.mrf.mxu0
  %v116 = vadd.f32 0.0, %v115
  %v117 = vpop.f32.mrf.mxu0
  %v118 = vadd.f32 0.0, %v117
  %119 = vmatmul.bf16.gmra.mxu0 %v71
  %v120 = vpop.f32.mrf.mxu0
  %v121 = vadd.f32 0.0, %v120
  %v122 = vpop.f32.mrf.mxu0
  %v123 = vadd.f32 0.0, %v122
  %124 = vmatmul.bf16.gmra.mxu0 %v72
  %v125 = vpop.f32.mrf.mxu0
  %v126 = vadd.f32 0.0, %v125
  %v127 = vpop.f32.mrf.mxu0
  %v128 = vadd.f32 0.0, %v127
  %129 = vmatmul.bf16.gmra.mxu0 %v73
  %v130 = vpop.f32.mrf.mxu0
  %v131 = vadd.f32 0.0, %v130
  %v132 = vpop.f32.mrf.mxu0
  %v133 = vadd.f32 0.0, %v132
  %134 = vmatmul.bf16.gmra.mxu0 %v74
  %v135 = vpop.f32.mrf.mxu0
  %v136 = vadd.f32 0.0, %v135
  %v137 = vpop.f32.mrf.mxu0
  %v138 = vadd.f32 0.0, %v137
  %139 = vmatmul.bf16.gmra.mxu0 %v75
  %v140 = vpop.f32.mrf.mxu0
  %v141 = vadd.f32 0.0, %v140
  %v142 = vpop.f32.mrf.mxu0
  %v143 = vadd.f32 0.0, %v142
  %144 = vmatmul.bf16.gmra.mxu0 %v76
  %v145 = vpop.f32.mrf.mxu0
  %v146 = vadd.f32 0.0, %v145
  %v147 = vpop.f32.mrf.mxu0
  %v148 = vadd.f32 0.0, %v147
  %149 = vdwg.mxu0
  %v150 = vadd.f32 %v85, %v111
  %v151 = vadd.f32 %v86, %v113
  %v152 = vadd.f32 %v87, %v116
  %v153 = vadd.f32 %v88, %v118
  %v154 = vadd.f32 %v89, %v121
  %v155 = vadd.f32 %v90, %v123
  %v156 = vadd.f32 %v91, %v126
  %v157 = vadd.f32 %v92, %v128
  %v158 = vadd.f32 %v93, %v131
  %v159 = vadd.f32 %v94, %v133
  %v160 = vadd.f32 %v95, %v136
  %v161 = vadd.f32 %v96, %v138
  %v162 = vadd.f32 %v97, %v141
  %v163 = vadd.f32 %v98, %v143
  %v164 = vadd.f32 %v99, %v146
  %v165 = vadd.f32 %v100, %v148
  %166 = vst [vmem:[#allocation2] sm:$0xff] %v150
  %167 = vst [vmem:[#allocation2 + $0x8] sm:$0xff] %v151
  %168 = vst [vmem:[#allocation2 + $0x10] sm:$0xff] %v152
  %169 = vst [vmem:[#allocation2 + $0x18] sm:$0xff] %v153
  %170 = vst [vmem:[#allocation2 + $0x20] sm:$0xff] %v154
  %171 = vst [vmem:[#allocation2 + $0x28] sm:$0xff] %v155
  %172 = vst [vmem:[#allocation2 + $0x30] sm:$0xff] %v156
  %173 = vst [vmem:[#allocation2 + $0x38] sm:$0xff] %v157
  %174 = vst [vmem:[#allocation2 + $0x40] sm:$0xff] %v158
  %175 = vst [vmem:[#allocation2 + $0x48] sm:$0xff] %v159
  %176 = vst [vmem:[#allocation2 + $0x50] sm:$0xff] %v160
  %177 = vst [vmem:[#allocation2 + $0x58] sm:$0xff] %v161
  %178 = vst [vmem:[#allocation2 + $0x60] sm:$0xff] %v162
  %179 = vst [vmem:[#allocation2 + $0x68] sm:$0xff] %v163
  %180 = vst [vmem:[#allocation2 + $0x70] sm:$0xff] %v164
  %181 = vst [vmem:[#allocation2 + $0x78] sm:$0xff] %v165
  // Predicated region
  $region22: #{zhugo_forward.43} parent=0 // pred_check
    %p182 = pneg %p17
  $region23: #{zhugo_forward.43} parent=0 // pred_check_branch
    %184 = sbr.rel (%p182) target = $region25
  $region24: #{zhugo_forward.43} parent=0 // pred_region
    %v185 = vld [vmem:[#allocation2] sm:$0xff]
    %v186 = vld [vmem:[#allocation2 + $0x8] sm:$0xff]
    %v187 = vld [vmem:[#allocation2 + $0x10] sm:$0xff]
    %v188 = vld [vmem:[#allocation2 + $0x18] sm:$0xff]
    %v189 = vld [vmem:[#allocation2 + $0x20] sm:$0xff]
    %v190 = vld [vmem:[#allocation2 + $0x28] sm:$0xff]
    %v191 = vld [vmem:[#allocation2 + $0x30] sm:$0xff]
    %v192 = vld [vmem:[#allocation2 + $0x38] sm:$0xff]
    %v193 = vld [vmem:[#allocation2 + $0x40] sm:$0xff]
    %v194 = vld [vmem:[#allocation2 + $0x48] sm:$0xff]
    %v195 = vld [vmem:[#allocation2 + $0x50] sm:$0xff]
    %v196 = vld [vmem:[#allocation2 + $0x58] sm:$0xff]
    %v197 = vld [vmem:[#allocation2 + $0x60] sm:$0xff]
    %v198 = vld [vmem:[#allocation2 + $0x68] sm:$0xff]
    %v199 = vld [vmem:[#allocation2 + $0x70] sm:$0xff]
    %v200 = vld [vmem:[#allocation2 + $0x78] sm:$0xff]
    %v201 = vld [vmem:[%s2] sm:$0x1]
    %v203 = vperm.slane %v201, 0
    %v205 = vmul.f32 %v185, %v203
    %v206 = vmul.f32 %v186, %v203
    %v207 = vmul.f32 %v187, %v203
    %v208 = vmul.f32 %v188, %v203
    %v209 = vmul.f32 %v189, %v203
    %v210 = vmul.f32 %v190, %v203
    %v211 = vmul.f32 %v191, %v203
    %v212 = vmul.f32 %v192, %v203
    %v213 = vmul.f32 %v193, %v203
    %v214 = vmul.f32 %v194, %v203
    %v215 = vmul.f32 %v195, %v203
    %v216 = vmul.f32 %v196, %v203
    %v217 = vmul.f32 %v197, %v203
    %v218 = vmul.f32 %v198, %v203
    %v219 = vmul.f32 %v199, %v203
    %v220 = vmul.f32 %v200, %v203
    %v221 = vld [vmem:[%s3] sm:$0x1]
    %v223 = vperm.slane %v221, 0
    %v225 = vadd.f32 %v205, %v223
    %v226 = vadd.f32 %v206, %v223
    %v227 = vadd.f32 %v207, %v223
    %v228 = vadd.f32 %v208, %v223
    %v229 = vadd.f32 %v209, %v223
    %v230 = vadd.f32 %v210, %v223
    %v231 = vadd.f32 %v211, %v223
    %v232 = vadd.f32 %v212, %v223
    %v233 = vadd.f32 %v213, %v223
    %v234 = vadd.f32 %v214, %v223
    %v235 = vadd.f32 %v215, %v223
    %v236 = vadd.f32 %v216, %v223
    %v237 = vadd.f32 %v217, %v223
    %v238 = vadd.f32 %v218, %v223
    %v239 = vadd.f32 %v219, %v223
    %v240 = vadd.f32 %v220, %v223
    %vm241 = vcmp.ge.f32.partialorder %v225, 0.0
    %vm242 = vcmp.ge.f32.partialorder %v226, 0.0
    %vm243 = vcmp.ge.f32.partialorder %v227, 0.0
    %vm244 = vcmp.ge.f32.partialorder %v228, 0.0
    %vm245 = vcmp.ge.f32.partialorder %v229, 0.0
    %vm246 = vcmp.ge.f32.partialorder %v230, 0.0
    %vm247 = vcmp.ge.f32.partialorder %v231, 0.0
    %vm248 = vcmp.ge.f32.partialorder %v232, 0.0
    %vm249 = vcmp.ge.f32.partialorder %v233, 0.0
    %vm250 = vcmp.ge.f32.partialorder %v234, 0.0
    %vm251 = vcmp.ge.f32.partialorder %v235, 0.0
    %vm252 = vcmp.ge.f32.partialorder %v236, 0.0
    %vm253 = vcmp.ge.f32.partialorder %v237, 0.0
    %vm254 = vcmp.ge.f32.partialorder %v238, 0.0
    %vm255 = vcmp.ge.f32.partialorder %v239, 0.0
    %vm256 = vcmp.ge.f32.partialorder %v240, 0.0
    %v257 = vmul.f32 %v225, 0.01
    %v258 = vmul.f32 %v226, 0.01
    %v259 = vmul.f32 %v227, 0.01
    %v260 = vmul.f32 %v228, 0.01
    %v261 = vmul.f32 %v229, 0.01
    %v262 = vmul.f32 %v230, 0.01
    %v263 = vmul.f32 %v231, 0.01
    %v264 = vmul.f32 %v232, 0.01
    %v265 = vmul.f32 %v233, 0.01
    %v266 = vmul.f32 %v234, 0.01
    %v267 = vmul.f32 %v235, 0.01
    %v268 = vmul.f32 %v236, 0.01
    %v269 = vmul.f32 %v237, 0.01
    %v270 = vmul.f32 %v238, 0.01
    %v271 = vmul.f32 %v239, 0.01
    %v272 = vmul.f32 %v240, 0.01
    %v273 = vsel %vm241, %v225, %v257
    %v274 = vsel %vm242, %v226, %v258
    %v275 = vsel %vm243, %v227, %v259
    %v276 = vsel %vm244, %v228, %v260
    %v277 = vsel %vm245, %v229, %v261
    %v278 = vsel %vm246, %v230, %v262
    %v279 = vsel %vm247, %v231, %v263
    %v280 = vsel %vm248, %v232, %v264
    %v281 = vsel %vm249, %v233, %v265
    %v282 = vsel %vm250, %v234, %v266
    %v283 = vsel %vm251, %v235, %v267
    %v284 = vsel %vm252, %v236, %v268
    %v285 = vsel %vm253, %v237, %v269
    %v286 = vsel %vm254, %v238, %v270
    %v287 = vsel %vm255, %v239, %v271
    %v288 = vsel %vm256, %v240, %v272
    %289 = vst [vmem:[%s4] sm:$0xff] %v273
    %290 = vst [vmem:[%s4 + $0x8] sm:$0xff] %v274
    %291 = vst [vmem:[%s4 + $0x10] sm:$0xff] %v275
    %292 = vst [vmem:[%s4 + $0x18] sm:$0xff] %v276
    %293 = vst [vmem:[%s4 + $0x20] sm:$0xff] %v277
    %294 = vst [vmem:[%s4 + $0x28] sm:$0xff] %v278
    %295 = vst [vmem:[%s4 + $0x30] sm:$0xff] %v279
    %296 = vst [vmem:[%s4 + $0x38] sm:$0xff] %v280
    %297 = vst [vmem:[%s4 + $0x40] sm:$0xff] %v281
    %298 = vst [vmem:[%s4 + $0x48] sm:$0xff] %v282
    %299 = vst [vmem:[%s4 + $0x50] sm:$0xff] %v283
    %300 = vst [vmem:[%s4 + $0x58] sm:$0xff] %v284
    %301 = vst [vmem:[%s4 + $0x60] sm:$0xff] %v285
    %302 = vst [vmem:[%s4 + $0x68] sm:$0xff] %v286
    %303 = vst [vmem:[%s4 + $0x70] sm:$0xff] %v287
    %304 = vst [vmem:[%s4 + $0x78] sm:$0xff] %v288
  $region25: #{zhugo_forward.43} parent=0 // pred_fallthru
    _
  // Predicated region
  $region26: #{zhugo_forward.43} parent=0 // pred_check
    _
  $region27: #{zhugo_forward.43} parent=0 // pred_check_branch
    %306 = sbr.rel (0) target = $region29
  $region28: #{zhugo_forward.43} parent=0 // pred_region
    _
  $region29: #{zhugo_forward.43} parent=0 // pred_fallthru
    _
  // Predicated region
  $region30: #{zhugo_forward.43} parent=0 // pred_check
    _
  $region31: #{zhugo_forward.43} parent=0 // pred_check_branch
    %308 = sbr.rel (0) target = $region33
  $region32: #{zhugo_forward.43} parent=0 // pred_region
    _
  $region33: #{zhugo_forward.43} parent=0 // pred_fallthru
    _

// kernel: zhugo_forward.44
$region0: #{zhugo_forward.44}
  #allocation0 [shape = 'u32[]', space=smem, size = 0x4, offset = 0x4, fixed_abs, tag = 'smem constant byte address 0x4 - core index']
  #allocation1 [shape = 'u32[72,128]{1,0:T(1,128)}', space=vmem, size = 0x9000, scoped, tag = 'internal scratch']
  #allocation2 [shape = 'f32[128,128]{1,0:T(8,128)}', space=vmem, size = 0x10000, scoped, tag = 'scratch operand']
  %s0 = inlined_call_operand.vmem [shape: f32[128,128], index: 0, kind: input, shape index: {}]
  %s1 = inlined_call_operand.vmem [shape: f32[128,128], index: 1, kind: input, shape index: {}]
  %s2 = inlined_call_operand.vmem [shape: f32[128,128], index: 2, kind: input, shape index: {}]
  %s3 = inlined_call_operand.vmem [shape: f32[128,128], index: 3, kind: output, shape index: {}]
  %s4 = sld [smem:[#allocation0]]
  $region30: #{zhugo_forward.44} parent=0
    _
  %s6 = ssub.s32 1, %s4
  %s7 = scalar_select 0, %s6, %s4
  // Predicated region
  $region2: #{zhugo_forward.44} parent=0 // pred_check
    _
  $region3: #{zhugo_forward.44} parent=0 // pred_check_branch
    %9 = sbr.rel (0) target = $region5
  $region4: #{zhugo_forward.44} parent=0 // pred_region
    _
  $region5: #{zhugo_forward.44} parent=0 // pred_fallthru
    _
  // Predicated region
  $region6: #{zhugo_forward.44} parent=0 // pred_check
    _
  $region7: #{zhugo_forward.44} parent=0 // pred_check_branch
    %11 = sbr.rel (0) target = $region9
  $region8: #{zhugo_forward.44} parent=0 // pred_region
    _
  $region9: #{zhugo_forward.44} parent=0 // pred_fallthru
    _
  // Predicated region
  $region10: #{zhugo_forward.44} parent=0 // pred_check
    _
  $region11: #{zhugo_forward.44} parent=0 // pred_check_branch
    %13 = sbr.rel (0) target = $region13
  $region12: #{zhugo_forward.44} parent=0 // pred_region
    _
  $region13: #{zhugo_forward.44} parent=0 // pred_fallthru
    _
  %p14 = scmp.eq.s32.totalorder 0, 0
  // Predicated region
  $region14: #{zhugo_forward.44} parent=0 // pred_check
    %p15 = pneg %p14
  $region15: #{zhugo_forward.44} parent=0 // pred_check_branch
    %17 = sbr.rel (%p15) target = $region17
  $region16: #{zhugo_forward.44} parent=0 // pred_region
    %18 = vst [vmem:[#allocation2] sm:$0xff] 0.0
    %19 = vst [vmem:[#allocation2 + $0x8] sm:$0xff] 0.0
    %20 = vst [vmem:[#allocation2 + $0x10] sm:$0xff] 0.0
    %21 = vst [vmem:[#allocation2 + $0x18] sm:$0xff] 0.0
    %22 = vst [vmem:[#allocation2 + $0x20] sm:$0xff] 0.0
    %23 = vst [vmem:[#allocation2 + $0x28] sm:$0xff] 0.0
    %24 = vst [vmem:[#allocation2 + $0x30] sm:$0xff] 0.0
    %25 = vst [vmem:[#allocation2 + $0x38] sm:$0xff] 0.0
    %26 = vst [vmem:[#allocation2 + $0x40] sm:$0xff] 0.0
    %27 = vst [vmem:[#allocation2 + $0x48] sm:$0xff] 0.0
    %28 = vst [vmem:[#allocation2 + $0x50] sm:$0xff] 0.0
    %29 = vst [vmem:[#allocation2 + $0x58] sm:$0xff] 0.0
    %30 = vst [vmem:[#allocation2 + $0x60] sm:$0xff] 0.0
    %31 = vst [vmem:[#allocation2 + $0x68] sm:$0xff] 0.0
    %32 = vst [vmem:[#allocation2 + $0x70] sm:$0xff] 0.0
    %33 = vst [vmem:[#allocation2 + $0x78] sm:$0xff] 0.0
  $region17: #{zhugo_forward.44} parent=0 // pred_fallthru
    _
  %v34 = vld [vmem:[%s0] sm:$0xff]
  %v35 = vld [vmem:[%s0 + $0x8] sm:$0xff]
  %v36 = vld [vmem:[%s0 + $0x10] sm:$0xff]
  %v37 = vld [vmem:[%s0 + $0x18] sm:$0xff]
  %v38 = vld [vmem:[%s0 + $0x20] sm:$0xff]
  %v39 = vld [vmem:[%s0 + $0x28] sm:$0xff]
  %v40 = vld [vmem:[%s0 + $0x30] sm:$0xff]
  %v41 = vld [vmem:[%s0 + $0x38] sm:$0xff]
  %v42 = vld [vmem:[%s0 + $0x40] sm:$0xff]
  %v43 = vld [vmem:[%s0 + $0x48] sm:$0xff]
  %v44 = vld [vmem:[%s0 + $0x50] sm:$0xff]
  %v45 = vld [vmem:[%s0 + $0x58] sm:$0xff]
  %v46 = vld [vmem:[%s0 + $0x60] sm:$0xff]
  %v47 = vld [vmem:[%s0 + $0x68] sm:$0xff]
  %v48 = vld [vmem:[%s0 + $0x70] sm:$0xff]
  %v49 = vld [vmem:[%s0 + $0x78] sm:$0xff]
  %v50 = vld [vmem:[%s1] sm:$0xff]
  %v51 = vld [vmem:[%s1 + $0x8] sm:$0xff]
  %v52 = vld [vmem:[%s1 + $0x10] sm:$0xff]
  %v53 = vld [vmem:[%s1 + $0x18] sm:$0xff]
  %v54 = vld [vmem:[%s1 + $0x20] sm:$0xff]
  %v55 = vld [vmem:[%s1 + $0x28] sm:$0xff]
  %v56 = vld [vmem:[%s1 + $0x30] sm:$0xff]
  %v57 = vld [vmem:[%s1 + $0x38] sm:$0xff]
  %v58 = vld [vmem:[%s1 + $0x40] sm:$0xff]
  %v59 = vld [vmem:[%s1 + $0x48] sm:$0xff]
  %v60 = vld [vmem:[%s1 + $0x50] sm:$0xff]
  %v61 = vld [vmem:[%s1 + $0x58] sm:$0xff]
  %v62 = vld [vmem:[%s1 + $0x60] sm:$0xff]
  %v63 = vld [vmem:[%s1 + $0x68] sm:$0xff]
  %v64 = vld [vmem:[%s1 + $0x70] sm:$0xff]
  %v65 = vld [vmem:[%s1 + $0x78] sm:$0xff]
  %v66 = vpack.c.bf16 %v35, %v34
  %v67 = vpack.c.bf16 %v37, %v36
  %v68 = vpack.c.bf16 %v39, %v38
  %v69 = vpack.c.bf16 %v41, %v40
  %v70 = vpack.c.bf16 %v43, %v42
  %v71 = vpack.c.bf16 %v45, %v44
  %v72 = vpack.c.bf16 %v47, %v46
  %v73 = vpack.c.bf16 %v49, %v48
  %v74 = vpack.c.bf16 %v51, %v50
  %v75 = vpack.c.bf16 %v53, %v52
  %v76 = vpack.c.bf16 %v55, %v54
  %v77 = vpack.c.bf16 %v57, %v56
  %v78 = vpack.c.bf16 %v59, %v58
  %v79 = vpack.c.bf16 %v61, %v60
  %v80 = vpack.c.bf16 %v63, %v62
  %v81 = vpack.c.bf16 %v65, %v64
  %v82 = vld [vmem:[#allocation2] sm:$0xff]
  %v83 = vld [vmem:[#allocation2 + $0x8] sm:$0xff]
  %v84 = vld [vmem:[#allocation2 + $0x10] sm:$0xff]
  %v85 = vld [vmem:[#allocation2 + $0x18] sm:$0xff]
  %v86 = vld [vmem:[#allocation2 + $0x20] sm:$0xff]
  %v87 = vld [vmem:[#allocation2 + $0x28] sm:$0xff]
  %v88 = vld [vmem:[#allocation2 + $0x30] sm:$0xff]
  %v89 = vld [vmem:[#allocation2 + $0x38] sm:$0xff]
  %v90 = vld [vmem:[#allocation2 + $0x40] sm:$0xff]
  %v91 = vld [vmem:[#allocation2 + $0x48] sm:$0xff]
  %v92 = vld [vmem:[#allocation2 + $0x50] sm:$0xff]
  %v93 = vld [vmem:[#allocation2 + $0x58] sm:$0xff]
  %v94 = vld [vmem:[#allocation2 + $0x60] sm:$0xff]
  %v95 = vld [vmem:[#allocation2 + $0x68] sm:$0xff]
  %v96 = vld [vmem:[#allocation2 + $0x70] sm:$0xff]
  %v97 = vld [vmem:[#allocation2 + $0x78] sm:$0xff]
  %98 = vmatpush.bf16.msra.mxu0 %v81
  %99 = vmatpush.bf16.msra.mxu0 %v80
  %100 = vmatpush.bf16.msra.mxu0 %v79
  %101 = vmatpush.bf16.msra.mxu0 %v78
  %102 = vmatpush.bf16.msra.mxu0 %v77
  %103 = vmatpush.bf16.msra.mxu0 %v76
  %104 = vmatpush.bf16.msra.mxu0 %v75
  %105 = vmatpush.bf16.msra.mxu0 %v74
  %106 = vmatmul.bf16.gmra.mxu0 %v66
  %v107 = vpop.f32.mrf.mxu0
  %v108 = vadd.f32 0.0, %v107
  %v109 = vpop.f32.mrf.mxu0
  %v110 = vadd.f32 0.0, %v109
  %111 = vmatmul.bf16.gmra.mxu0 %v67
  %v112 = vpop.f32.mrf.mxu0
  %v113 = vadd.f32 0.0, %v112
  %v114 = vpop.f32.mrf.mxu0
  %v115 = vadd.f32 0.0, %v114
  %116 = vmatmul.bf16.gmra.mxu0 %v68
  %v117 = vpop.f32.mrf.mxu0
  %v118 = vadd.f32 0.0, %v117
  %v119 = vpop.f32.mrf.mxu0
  %v120 = vadd.f32 0.0, %v119
  %121 = vmatmul.bf16.gmra.mxu0 %v69
  %v122 = vpop.f32.mrf.mxu0
  %v123 = vadd.f32 0.0, %v122
  %v124 = vpop.f32.mrf.mxu0
  %v125 = vadd.f32 0.0, %v124
  %126 = vmatmul.bf16.gmra.mxu0 %v70
  %v127 = vpop.f32.mrf.mxu0
  %v128 = vadd.f32 0.0, %v127
  %v129 = vpop.f32.mrf.mxu0
  %v130 = vadd.f32 0.0, %v129
  %131 = vmatmul.bf16.gmra.mxu0 %v71
  %v132 = vpop.f32.mrf.mxu0
  %v133 = vadd.f32 0.0, %v132
  %v134 = vpop.f32.mrf.mxu0
  %v135 = vadd.f32 0.0, %v134
  %136 = vmatmul.bf16.gmra.mxu0 %v72
  %v137 = vpop.f32.mrf.mxu0
  %v138 = vadd.f32 0.0, %v137
  %v139 = vpop.f32.mrf.mxu0
  %v140 = vadd.f32 0.0, %v139
  %141 = vmatmul.bf16.gmra.mxu0 %v73
  %v142 = vpop.f32.mrf.mxu0
  %v143 = vadd.f32 0.0, %v142
  %v144 = vpop.f32.mrf.mxu0
  %v145 = vadd.f32 0.0, %v144
  %146 = vdwg.mxu0
  %v147 = vadd.f32 %v82, %v108
  %v148 = vadd.f32 %v83, %v110
  %v149 = vadd.f32 %v84, %v113
  %v150 = vadd.f32 %v85, %v115
  %v151 = vadd.f32 %v86, %v118
  %v152 = vadd.f32 %v87, %v120
  %v153 = vadd.f32 %v88, %v123
  %v154 = vadd.f32 %v89, %v125
  %v155 = vadd.f32 %v90, %v128
  %v156 = vadd.f32 %v91, %v130
  %v157 = vadd.f32 %v92, %v133
  %v158 = vadd.f32 %v93, %v135
  %v159 = vadd.f32 %v94, %v138
  %v160 = vadd.f32 %v95, %v140
  %v161 = vadd.f32 %v96, %v143
  %v162 = vadd.f32 %v97, %v145
  %163 = vst [vmem:[#allocation2] sm:$0xff] %v147
  %164 = vst [vmem:[#allocation2 + $0x8] sm:$0xff] %v148
  %165 = vst [vmem:[#allocation2 + $0x10] sm:$0xff] %v149
  %166 = vst [vmem:[#allocation2 + $0x18] sm:$0xff] %v150
  %167 = vst [vmem:[#allocation2 + $0x20] sm:$0xff] %v151
  %168 = vst [vmem:[#allocation2 + $0x28] sm:$0xff] %v152
  %169 = vst [vmem:[#allocation2 + $0x30] sm:$0xff] %v153
  %170 = vst [vmem:[#allocation2 + $0x38] sm:$0xff] %v154
  %171 = vst [vmem:[#allocation2 + $0x40] sm:$0xff] %v155
  %172 = vst [vmem:[#allocation2 + $0x48] sm:$0xff] %v156
  %173 = vst [vmem:[#allocation2 + $0x50] sm:$0xff] %v157
  %174 = vst [vmem:[#allocation2 + $0x58] sm:$0xff] %v158
  %175 = vst [vmem:[#allocation2 + $0x60] sm:$0xff] %v159
  %176 = vst [vmem:[#allocation2 + $0x68] sm:$0xff] %v160
  %177 = vst [vmem:[#allocation2 + $0x70] sm:$0xff] %v161
  %178 = vst [vmem:[#allocation2 + $0x78] sm:$0xff] %v162
  // Predicated region
  $region18: #{zhugo_forward.44} parent=0 // pred_check
    %p179 = pneg %p14
  $region19: #{zhugo_forward.44} parent=0 // pred_check_branch
    %181 = sbr.rel (%p179) target = $region21
  $region20: #{zhugo_forward.44} parent=0 // pred_region
    %v182 = vld [vmem:[#allocation2] sm:$0xff]
    %v183 = vld [vmem:[#allocation2 + $0x8] sm:$0xff]
    %v184 = vld [vmem:[#allocation2 + $0x10] sm:$0xff]
    %v185 = vld [vmem:[#allocation2 + $0x18] sm:$0xff]
    %v186 = vld [vmem:[#allocation2 + $0x20] sm:$0xff]
    %v187 = vld [vmem:[#allocation2 + $0x28] sm:$0xff]
    %v188 = vld [vmem:[#allocation2 + $0x30] sm:$0xff]
    %v189 = vld [vmem:[#allocation2 + $0x38] sm:$0xff]
    %v190 = vld [vmem:[#allocation2 + $0x40] sm:$0xff]
    %v191 = vld [vmem:[#allocation2 + $0x48] sm:$0xff]
    %v192 = vld [vmem:[#allocation2 + $0x50] sm:$0xff]
    %v193 = vld [vmem:[#allocation2 + $0x58] sm:$0xff]
    %v194 = vld [vmem:[#allocation2 + $0x60] sm:$0xff]
    %v195 = vld [vmem:[#allocation2 + $0x68] sm:$0xff]
    %v196 = vld [vmem:[#allocation2 + $0x70] sm:$0xff]
    %v197 = vld [vmem:[#allocation2 + $0x78] sm:$0xff]
    %v198 = vld [vmem:[%s2] sm:$0xff]
    %v199 = vld [vmem:[%s2 + $0x8] sm:$0xff]
    %v200 = vld [vmem:[%s2 + $0x10] sm:$0xff]
    %v201 = vld [vmem:[%s2 + $0x18] sm:$0xff]
    %v202 = vld [vmem:[%s2 + $0x20] sm:$0xff]
    %v203 = vld [vmem:[%s2 + $0x28] sm:$0xff]
    %v204 = vld [vmem:[%s2 + $0x30] sm:$0xff]
    %v205 = vld [vmem:[%s2 + $0x38] sm:$0xff]
    %v206 = vld [vmem:[%s2 + $0x40] sm:$0xff]
    %v207 = vld [vmem:[%s2 + $0x48] sm:$0xff]
    %v208 = vld [vmem:[%s2 + $0x50] sm:$0xff]
    %v209 = vld [vmem:[%s2 + $0x58] sm:$0xff]
    %v210 = vld [vmem:[%s2 + $0x60] sm:$0xff]
    %v211 = vld [vmem:[%s2 + $0x68] sm:$0xff]
    %v212 = vld [vmem:[%s2 + $0x70] sm:$0xff]
    %v213 = vld [vmem:[%s2 + $0x78] sm:$0xff]
    %v214 = vmul.f32 %v198, 2.0
    %v215 = vmul.f32 %v199, 2.0
    %v216 = vmul.f32 %v200, 2.0
    %v217 = vmul.f32 %v201, 2.0
    %v218 = vmul.f32 %v202, 2.0
    %v219 = vmul.f32 %v203, 2.0
    %v220 = vmul.f32 %v204, 2.0
    %v221 = vmul.f32 %v205, 2.0
    %v222 = vmul.f32 %v206, 2.0
    %v223 = vmul.f32 %v207, 2.0
    %v224 = vmul.f32 %v208, 2.0
    %v225 = vmul.f32 %v209, 2.0
    %v226 = vmul.f32 %v210, 2.0
    %v227 = vmul.f32 %v211, 2.0
    %v228 = vmul.f32 %v212, 2.0
    %v229 = vmul.f32 %v213, 2.0
    %v230 = vadd.f32 %v182, %v214
    %v231 = vadd.f32 %v183, %v215
    %v232 = vadd.f32 %v184, %v216
    %v233 = vadd.f32 %v185, %v217
    %v234 = vadd.f32 %v186, %v218
    %v235 = vadd.f32 %v187, %v219
    %v236 = vadd.f32 %v188, %v220
    %v237 = vadd.f32 %v189, %v221
    %v238 = vadd.f32 %v190, %v222
    %v239 = vadd.f32 %v191, %v223
    %v240 = vadd.f32 %v192, %v224
    %v241 = vadd.f32 %v193, %v225
    %v242 = vadd.f32 %v194, %v226
    %v243 = vadd.f32 %v195, %v227
    %v244 = vadd.f32 %v196, %v228
    %v245 = vadd.f32 %v197, %v229
    %246 = vst [vmem:[%s3] sm:$0xff] %v230
    %247 = vst [vmem:[%s3 + $0x8] sm:$0xff] %v231
    %248 = vst [vmem:[%s3 + $0x10] sm:$0xff] %v232
    %249 = vst [vmem:[%s3 + $0x18] sm:$0xff] %v233
    %250 = vst [vmem:[%s3 + $0x20] sm:$0xff] %v234
    %251 = vst [vmem:[%s3 + $0x28] sm:$0xff] %v235
    %252 = vst [vmem:[%s3 + $0x30] sm:$0xff] %v236
    %253 = vst [vmem:[%s3 + $0x38] sm:$0xff] %v237
    %254 = vst [vmem:[%s3 + $0x40] sm:$0xff] %v238
    %255 = vst [vmem:[%s3 + $0x48] sm:$0xff] %v239
    %256 = vst [vmem:[%s3 + $0x50] sm:$0xff] %v240
    %257 = vst [vmem:[%s3 + $0x58] sm:$0xff] %v241
    %258 = vst [vmem:[%s3 + $0x60] sm:$0xff] %v242
    %259 = vst [vmem:[%s3 + $0x68] sm:$0xff] %v243
    %260 = vst [vmem:[%s3 + $0x70] sm:$0xff] %v244
    %261 = vst [vmem:[%s3 + $0x78] sm:$0xff] %v245
  $region21: #{zhugo_forward.44} parent=0 // pred_fallthru
    _
  // Predicated region
  $region22: #{zhugo_forward.44} parent=0 // pred_check
    _
  $region23: #{zhugo_forward.44} parent=0 // pred_check_branch
    %263 = sbr.rel (0) target = $region25
  $region24: #{zhugo_forward.44} parent=0 // pred_region
    _
  $region25: #{zhugo_forward.44} parent=0 // pred_fallthru
    _
  // Predicated region
  $region26: #{zhugo_forward.44} parent=0 // pred_check
    _
  $region27: #{zhugo_forward.44} parent=0 // pred_check_branch
    %265 = sbr.rel (0) target = $region29
  $region28: #{zhugo_forward.44} parent=0 // pred_region
    _
  $region29: #{zhugo_forward.44} parent=0 // pred_fallthru
    _

// kernel: zhugo_forward.49
$region0: #{zhugo_forward.49}
  #allocation0 [shape = 'u32[]', space=smem, size = 0x4, offset = 0x4, fixed_abs, tag = 'smem constant byte address 0x4 - core index']
  #allocation1 [shape = 'u32[72,128]{1,0:T(1,128)}', space=vmem, size = 0x9000, scoped, tag = 'internal scratch']
  %s0 = inlined_call_operand.vmem [shape: f32[16,128], index: 0, kind: input, shape index: {}]
  %s1 = inlined_call_operand.vmem [shape: f32[1,128], index: 1, kind: input, shape index: {}]
  %s2 = inlined_call_operand.vmem [shape: f32[1,128], index: 2, kind: input, shape index: {}]
  %s3 = inlined_call_operand.vmem [shape: f32[16,128], index: 3, kind: output, shape index: {}]
  %s4 = sld [smem:[#allocation0]]
  $region22: #{zhugo_forward.49} parent=0
    _
  %s6 = ssub.s32 1, %s4
  %s7 = scalar_select 0, %s6, %s4
  // Predicated region
  $region2: #{zhugo_forward.49} parent=0 // pred_check
    _
  $region3: #{zhugo_forward.49} parent=0 // pred_check_branch
    %9 = sbr.rel (0) target = $region5
  $region4: #{zhugo_forward.49} parent=0 // pred_region
    _
  $region5: #{zhugo_forward.49} parent=0 // pred_fallthru
    _
  // Predicated region
  $region6: #{zhugo_forward.49} parent=0 // pred_check
    _
  $region7: #{zhugo_forward.49} parent=0 // pred_check_branch
    %11 = sbr.rel (0) target = $region9
  $region8: #{zhugo_forward.49} parent=0 // pred_region
    _
  $region9: #{zhugo_forward.49} parent=0 // pred_fallthru
    _
  // Predicated region
  $region10: #{zhugo_forward.49} parent=0 // pred_check
    _
  $region11: #{zhugo_forward.49} parent=0 // pred_check_branch
    %13 = sbr.rel (0) target = $region13
  $region12: #{zhugo_forward.49} parent=0 // pred_region
    _
  $region13: #{zhugo_forward.49} parent=0 // pred_fallthru
    _
  %v14 = vld [vmem:[%s0] sm:$0xff]
  %v15 = vld [vmem:[%s0 + $0x8] sm:$0xff]
  %v16 = vld [vmem:[%s1] sm:$0x1]
  %v18 = vperm.slane %v16, 0
  %v20 = vmul.f32 %v14, %v18
  %v21 = vmul.f32 %v15, %v18
  %v22 = vld [vmem:[%s2] sm:$0x1]
  %v24 = vperm.slane %v22, 0
  %v26 = vadd.f32 %v20, %v24
  %v27 = vadd.f32 %v21, %v24
  %vm28 = vcmp.ge.f32.partialorder %v26, 0.0
  %vm29 = vcmp.ge.f32.partialorder %v27, 0.0
  %v30 = vmul.f32 %v26, 0.01
  %v31 = vmul.f32 %v27, 0.01
  %v32 = vsel %vm28, %v26, %v30
  %v33 = vsel %vm29, %v27, %v31
  %34 = vst [vmem:[%s3] sm:$0xff] %v32
  %35 = vst [vmem:[%s3 + $0x8] sm:$0xff] %v33
  // Predicated region
  $region14: #{zhugo_forward.49} parent=0 // pred_check
    _
  $region15: #{zhugo_forward.49} parent=0 // pred_check_branch
    %37 = sbr.rel (0) target = $region17
  $region16: #{zhugo_forward.49} parent=0 // pred_region
    _
  $region17: #{zhugo_forward.49} parent=0 // pred_fallthru
    _
  // Predicated region
  $region18: #{zhugo_forward.49} parent=0 // pred_check
    _
  $region19: #{zhugo_forward.49} parent=0 // pred_check_branch
    %39 = sbr.rel (0) target = $region21
  $region20: #{zhugo_forward.49} parent=0 // pred_region
    _
  $region21: #{zhugo_forward.49} parent=0 // pred_fallthru
    _

// kernel: zhugo_forward.50
$region0: #{zhugo_forward.50}
  #allocation0 [shape = 'u32[]', space=smem, size = 0x4, offset = 0x4, fixed_abs, tag = 'smem constant byte address 0x4 - core index']
  #allocation1 [shape = 'u32[72,128]{1,0:T(1,128)}', space=vmem, size = 0x9000, scoped, tag = 'internal scratch']
  #allocation2 [shape = 'f32[128,128]{1,0:T(8,128)}', space=vmem, size = 0x10000, scoped, tag = 'scratch operand']
  %s0 = inlined_call_operand.vmem [shape: f32[128,256], index: 0, kind: input, shape index: {}]
  %s1 = inlined_call_operand.vmem [shape: f32[256,128], index: 1, kind: input, shape index: {}]
  %s2 = inlined_call_operand.vmem [shape: f32[128,128], index: 2, kind: output, shape index: {}]
  %s3 = sld [smem:[#allocation0]]
  $region26: #{zhugo_forward.50} parent=0
    _
  %s5 = ssub.s32 1, %s3
  %s6 = scalar_select 0, %s5, %s3
  // Predicated region
  $region2: #{zhugo_forward.50} parent=0 // pred_check
    _
  $region3: #{zhugo_forward.50} parent=0 // pred_check_branch
    %8 = sbr.rel (0) target = $region5
  $region4: #{zhugo_forward.50} parent=0 // pred_region
    _
  $region5: #{zhugo_forward.50} parent=0 // pred_fallthru
    _
  // Predicated region
  $region6: #{zhugo_forward.50} parent=0 // pred_check
    _
  $region7: #{zhugo_forward.50} parent=0 // pred_check_branch
    %10 = sbr.rel (0) target = $region9
  $region8: #{zhugo_forward.50} parent=0 // pred_region
    _
  $region9: #{zhugo_forward.50} parent=0 // pred_fallthru
    _
  %p11 = scmp.eq.s32.totalorder 0, 0
  // Predicated region
  $region10: #{zhugo_forward.50} parent=0 // pred_check
    %p12 = pneg %p11
  $region11: #{zhugo_forward.50} parent=0 // pred_check_branch
    %14 = sbr.rel (%p12) target = $region13
  $region12: #{zhugo_forward.50} parent=0 // pred_region
    %15 = vst [vmem:[#allocation2] sm:$0xff] 0.0
    %16 = vst [vmem:[#allocation2 + $0x8] sm:$0xff] 0.0
    %17 = vst [vmem:[#allocation2 + $0x10] sm:$0xff] 0.0
    %18 = vst [vmem:[#allocation2 + $0x18] sm:$0xff] 0.0
    %19 = vst [vmem:[#allocation2 + $0x20] sm:$0xff] 0.0
    %20 = vst [vmem:[#allocation2 + $0x28] sm:$0xff] 0.0
    %21 = vst [vmem:[#allocation2 + $0x30] sm:$0xff] 0.0
    %22 = vst [vmem:[#allocation2 + $0x38] sm:$0xff] 0.0
    %23 = vst [vmem:[#allocation2 + $0x40] sm:$0xff] 0.0
    %24 = vst [vmem:[#allocation2 + $0x48] sm:$0xff] 0.0
    %25 = vst [vmem:[#allocation2 + $0x50] sm:$0xff] 0.0
    %26 = vst [vmem:[#allocation2 + $0x58] sm:$0xff] 0.0
    %27 = vst [vmem:[#allocation2 + $0x60] sm:$0xff] 0.0
    %28 = vst [vmem:[#allocation2 + $0x68] sm:$0xff] 0.0
    %29 = vst [vmem:[#allocation2 + $0x70] sm:$0xff] 0.0
    %30 = vst [vmem:[#allocation2 + $0x78] sm:$0xff] 0.0
  $region13: #{zhugo_forward.50} parent=0 // pred_fallthru
    _
  %v31 = vld [vmem:[%s0] sm:$0xff]
  %v32 = vld [vmem:[%s0 + $0x8] sm:$0xff]
  %v33 = vld [vmem:[%s0 + $0x10] sm:$0xff]
  %v34 = vld [vmem:[%s0 + $0x18] sm:$0xff]
  %v35 = vld [vmem:[%s0 + $0x20] sm:$0xff]
  %v36 = vld [vmem:[%s0 + $0x28] sm:$0xff]
  %v37 = vld [vmem:[%s0 + $0x30] sm:$0xff]
  %v38 = vld [vmem:[%s0 + $0x38] sm:$0xff]
  %v39 = vld [vmem:[%s0 + $0x40] sm:$0xff]
  %v40 = vld [vmem:[%s0 + $0x48] sm:$0xff]
  %v41 = vld [vmem:[%s0 + $0x50] sm:$0xff]
  %v42 = vld [vmem:[%s0 + $0x58] sm:$0xff]
  %v43 = vld [vmem:[%s0 + $0x60] sm:$0xff]
  %v44 = vld [vmem:[%s0 + $0x68] sm:$0xff]
  %v45 = vld [vmem:[%s0 + $0x70] sm:$0xff]
  %v46 = vld [vmem:[%s0 + $0x78] sm:$0xff]
  %v47 = vld [vmem:[%s0 + $0x80] sm:$0xff]
  %v48 = vld [vmem:[%s0 + $0x88] sm:$0xff]
  %v49 = vld [vmem:[%s0 + $0x90] sm:$0xff]
  %v50 = vld [vmem:[%s0 + $0x98] sm:$0xff]
  %v51 = vld [vmem:[%s0 + $0xa0] sm:$0xff]
  %v52 = vld [vmem:[%s0 + $0xa8] sm:$0xff]
  %v53 = vld [vmem:[%s0 + $0xb0] sm:$0xff]
  %v54 = vld [vmem:[%s0 + $0xb8] sm:$0xff]
  %v55 = vld [vmem:[%s0 + $0xc0] sm:$0xff]
  %v56 = vld [vmem:[%s0 + $0xc8] sm:$0xff]
  %v57 = vld [vmem:[%s0 + $0xd0] sm:$0xff]
  %v58 = vld [vmem:[%s0 + $0xd8] sm:$0xff]
  %v59 = vld [vmem:[%s0 + $0xe0] sm:$0xff]
  %v60 = vld [vmem:[%s0 + $0xe8] sm:$0xff]
  %v61 = vld [vmem:[%s0 + $0xf0] sm:$0xff]
  %v62 = vld [vmem:[%s0 + $0xf8] sm:$0xff]
  %v63 = vld [vmem:[%s1] sm:$0xff]
  %v64 = vld [vmem:[%s1 + $0x8] sm:$0xff]
  %v65 = vld [vmem:[%s1 + $0x10] sm:$0xff]
  %v66 = vld [vmem:[%s1 + $0x18] sm:$0xff]
  %v67 = vld [vmem:[%s1 + $0x20] sm:$0xff]
  %v68 = vld [vmem:[%s1 + $0x28] sm:$0xff]
  %v69 = vld [vmem:[%s1 + $0x30] sm:$0xff]
  %v70 = vld [vmem:[%s1 + $0x38] sm:$0xff]
  %v71 = vld [vmem:[%s1 + $0x40] sm:$0xff]
  %v72 = vld [vmem:[%s1 + $0x48] sm:$0xff]
  %v73 = vld [vmem:[%s1 + $0x50] sm:$0xff]
  %v74 = vld [vmem:[%s1 + $0x58] sm:$0xff]
  %v75 = vld [vmem:[%s1 + $0x60] sm:$0xff]
  %v76 = vld [vmem:[%s1 + $0x68] sm:$0xff]
  %v77 = vld [vmem:[%s1 + $0x70] sm:$0xff]
  %v78 = vld [vmem:[%s1 + $0x78] sm:$0xff]
  %v79 = vld [vmem:[%s1 + $0x80] sm:$0xff]
  %v80 = vld [vmem:[%s1 + $0x88] sm:$0xff]
  %v81 = vld [vmem:[%s1 + $0x90] sm:$0xff]
  %v82 = vld [vmem:[%s1 + $0x98] sm:$0xff]
  %v83 = vld [vmem:[%s1 + $0xa0] sm:$0xff]
  %v84 = vld [vmem:[%s1 + $0xa8] sm:$0xff]
  %v85 = vld [vmem:[%s1 + $0xb0] sm:$0xff]
  %v86 = vld [vmem:[%s1 + $0xb8] sm:$0xff]
  %v87 = vld [vmem:[%s1 + $0xc0] sm:$0xff]
  %v88 = vld [vmem:[%s1 + $0xc8] sm:$0xff]
  %v89 = vld [vmem:[%s1 + $0xd0] sm:$0xff]
  %v90 = vld [vmem:[%s1 + $0xd8] sm:$0xff]
  %v91 = vld [vmem:[%s1 + $0xe0] sm:$0xff]
  %v92 = vld [vmem:[%s1 + $0xe8] sm:$0xff]
  %v93 = vld [vmem:[%s1 + $0xf0] sm:$0xff]
  %v94 = vld [vmem:[%s1 + $0xf8] sm:$0xff]
  %v95 = vpack.c.bf16 %v33, %v31
  %v96 = vpack.c.bf16 %v34, %v32
  %v97 = vpack.c.bf16 %v37, %v35
  %v98 = vpack.c.bf16 %v38, %v36
  %v99 = vpack.c.bf16 %v41, %v39
  %v100 = vpack.c.bf16 %v42, %v40
  %v101 = vpack.c.bf16 %v45, %v43
  %v102 = vpack.c.bf16 %v46, %v44
  %v103 = vpack.c.bf16 %v49, %v47
  %v104 = vpack.c.bf16 %v50, %v48
  %v105 = vpack.c.bf16 %v53, %v51
  %v106 = vpack.c.bf16 %v54, %v52
  %v107 = vpack.c.bf16 %v57, %v55
  %v108 = vpack.c.bf16 %v58, %v56
  %v109 = vpack.c.bf16 %v61, %v59
  %v110 = vpack.c.bf16 %v62, %v60
  %v111 = vpack.c.bf16 %v64, %v63
  %v112 = vpack.c.bf16 %v66, %v65
  %v113 = vpack.c.bf16 %v68, %v67
  %v114 = vpack.c.bf16 %v70, %v69
  %v115 = vpack.c.bf16 %v72, %v71
  %v116 = vpack.c.bf16 %v74, %v73
  %v117 = vpack.c.bf16 %v76, %v75
  %v118 = vpack.c.bf16 %v78, %v77
  %v119 = vpack.c.bf16 %v80, %v79
  %v120 = vpack.c.bf16 %v82, %v81
  %v121 = vpack.c.bf16 %v84, %v83
  %v122 = vpack.c.bf16 %v86, %v85
  %v123 = vpack.c.bf16 %v88, %v87
  %v124 = vpack.c.bf16 %v90, %v89
  %v125 = vpack.c.bf16 %v92, %v91
  %v126 = vpack.c.bf16 %v94, %v93
  %v127 = vld [vmem:[#allocation2] sm:$0xff]
  %v128 = vld [vmem:[#allocation2 + $0x8] sm:$0xff]
  %v129 = vld [vmem:[#allocation2 + $0x10] sm:$0xff]
  %v130 = vld [vmem:[#allocation2 + $0x18] sm:$0xff]
  %v131 = vld [vmem:[#allocation2 + $0x20] sm:$0xff]
  %v132 = vld [vmem:[#allocation2 + $0x28] sm:$0xff]
  %v133 = vld [vmem:[#allocation2 + $0x30] sm:$0xff]
  %v134 = vld [vmem:[#allocation2 + $0x38] sm:$0xff]
  %v135 = vld [vmem:[#allocation2 + $0x40] sm:$0xff]
  %v136 = vld [vmem:[#allocation2 + $0x48] sm:$0xff]
  %v137 = vld [vmem:[#allocation2 + $0x50] sm:$0xff]
  %v138 = vld [vmem:[#allocation2 + $0x58] sm:$0xff]
  %v139 = vld [vmem:[#allocation2 + $0x60] sm:$0xff]
  %v140 = vld [vmem:[#allocation2 + $0x68] sm:$0xff]
  %v141 = vld [vmem:[#allocation2 + $0x70] sm:$0xff]
  %v142 = vld [vmem:[#allocation2 + $0x78] sm:$0xff]
  %143 = vmatpush.bf16.msra.mxu0 %v118
  %144 = vmatpush.bf16.msra.mxu0 %v117
  %145 = vmatpush.bf16.msra.mxu0 %v116
  %146 = vmatpush.bf16.msra.mxu0 %v115
  %147 = vmatpush.bf16.msra.mxu0 %v114
  %148 = vmatpush.bf16.msra.mxu0 %v113
  %149 = vmatpush.bf16.msra.mxu0 %v112
  %150 = vmatpush.bf16.msra.mxu0 %v111
  %151 = vmatmul.bf16.gmra.mxu0 %v95
  %v152 = vpop.f32.mrf.mxu0
  %v153 = vadd.f32 0.0, %v152
  %v154 = vpop.f32.mrf.mxu0
  %v155 = vadd.f32 0.0, %v154
  %156 = vmatmul.bf16.gmra.mxu0 %v97
  %v157 = vpop.f32.mrf.mxu0
  %v158 = vadd.f32 0.0, %v157
  %v159 = vpop.f32.mrf.mxu0
  %v160 = vadd.f32 0.0, %v159
  %161 = vmatmul.bf16.gmra.mxu0 %v99
  %v162 = vpop.f32.mrf.mxu0
  %v163 = vadd.f32 0.0, %v162
  %v164 = vpop.f32.mrf.mxu0
  %v165 = vadd.f32 0.0, %v164
  %166 = vmatmul.bf16.gmra.mxu0 %v101
  %v167 = vpop.f32.mrf.mxu0
  %v168 = vadd.f32 0.0, %v167
  %v169 = vpop.f32.mrf.mxu0
  %v170 = vadd.f32 0.0, %v169
  %171 = vmatmul.bf16.gmra.mxu0 %v103
  %v172 = vpop.f32.mrf.mxu0
  %v173 = vadd.f32 0.0, %v172
  %v174 = vpop.f32.mrf.mxu0
  %v175 = vadd.f32 0.0, %v174
  %176 = vmatmul.bf16.gmra.mxu0 %v105
  %v177 = vpop.f32.mrf.mxu0
  %v178 = vadd.f32 0.0, %v177
  %v179 = vpop.f32.mrf.mxu0
  %v180 = vadd.f32 0.0, %v179
  %181 = vmatmul.bf16.gmra.mxu0 %v107
  %v182 = vpop.f32.mrf.mxu0
  %v183 = vadd.f32 0.0, %v182
  %v184 = vpop.f32.mrf.mxu0
  %v185 = vadd.f32 0.0, %v184
  %186 = vmatmul.bf16.gmra.mxu0 %v109
  %v187 = vpop.f32.mrf.mxu0
  %v188 = vadd.f32 0.0, %v187
  %v189 = vpop.f32.mrf.mxu0
  %v190 = vadd.f32 0.0, %v189
  %191 = vdwg.mxu0
  %192 = vmatpush.bf16.msra.mxu0 %v126
  %193 = vmatpush.bf16.msra.mxu0 %v125
  %194 = vmatpush.bf16.msra.mxu0 %v124
  %195 = vmatpush.bf16.msra.mxu0 %v123
  %196 = vmatpush.bf16.msra.mxu0 %v122
  %197 = vmatpush.bf16.msra.mxu0 %v121
  %198 = vmatpush.bf16.msra.mxu0 %v120
  %199 = vmatpush.bf16.msra.mxu0 %v119
  %200 = vmatmul.bf16.gmra.mxu0 %v96
  %v201 = vpop.f32.mrf.mxu0
  %v202 = vadd.f32 %v153, %v201
  %v203 = vpop.f32.mrf.mxu0
  %v204 = vadd.f32 %v155, %v203
  %205 = vmatmul.bf16.gmra.mxu0 %v98
  %v206 = vpop.f32.mrf.mxu0
  %v207 = vadd.f32 %v158, %v206
  %v208 = vpop.f32.mrf.mxu0
  %v209 = vadd.f32 %v160, %v208
  %210 = vmatmul.bf16.gmra.mxu0 %v100
  %v211 = vpop.f32.mrf.mxu0
  %v212 = vadd.f32 %v163, %v211
  %v213 = vpop.f32.mrf.mxu0
  %v214 = vadd.f32 %v165, %v213
  %215 = vmatmul.bf16.gmra.mxu0 %v102
  %v216 = vpop.f32.mrf.mxu0
  %v217 = vadd.f32 %v168, %v216
  %v218 = vpop.f32.mrf.mxu0
  %v219 = vadd.f32 %v170, %v218
  %220 = vmatmul.bf16.gmra.mxu0 %v104
  %v221 = vpop.f32.mrf.mxu0
  %v222 = vadd.f32 %v173, %v221
  %v223 = vpop.f32.mrf.mxu0
  %v224 = vadd.f32 %v175, %v223
  %225 = vmatmul.bf16.gmra.mxu0 %v106
  %v226 = vpop.f32.mrf.mxu0
  %v227 = vadd.f32 %v178, %v226
  %v228 = vpop.f32.mrf.mxu0
  %v229 = vadd.f32 %v180, %v228
  %230 = vmatmul.bf16.gmra.mxu0 %v108
  %v231 = vpop.f32.mrf.mxu0
  %v232 = vadd.f32 %v183, %v231
  %v233 = vpop.f32.mrf.mxu0
  %v234 = vadd.f32 %v185, %v233
  %235 = vmatmul.bf16.gmra.mxu0 %v110
  %v236 = vpop.f32.mrf.mxu0
  %v237 = vadd.f32 %v188, %v236
  %v238 = vpop.f32.mrf.mxu0
  %v239 = vadd.f32 %v190, %v238
  %240 = vdwg.mxu0
  %v241 = vadd.f32 %v127, %v202
  %v242 = vadd.f32 %v128, %v204
  %v243 = vadd.f32 %v129, %v207
  %v244 = vadd.f32 %v130, %v209
  %v245 = vadd.f32 %v131, %v212
  %v246 = vadd.f32 %v132, %v214
  %v247 = vadd.f32 %v133, %v217
  %v248 = vadd.f32 %v134, %v219
  %v249 = vadd.f32 %v135, %v222
  %v250 = vadd.f32 %v136, %v224
  %v251 = vadd.f32 %v137, %v227
  %v252 = vadd.f32 %v138, %v229
  %v253 = vadd.f32 %v139, %v232
  %v254 = vadd.f32 %v140, %v234
  %v255 = vadd.f32 %v141, %v237
  %v256 = vadd.f32 %v142, %v239
  %257 = vst [vmem:[#allocation2] sm:$0xff] %v241
  %258 = vst [vmem:[#allocation2 + $0x8] sm:$0xff] %v242
  %259 = vst [vmem:[#allocation2 + $0x10] sm:$0xff] %v243
  %260 = vst [vmem:[#allocation2 + $0x18] sm:$0xff] %v244
  %261 = vst [vmem:[#allocation2 + $0x20] sm:$0xff] %v245
  %262 = vst [vmem:[#allocation2 + $0x28] sm:$0xff] %v246
  %263 = vst [vmem:[#allocation2 + $0x30] sm:$0xff] %v247
  %264 = vst [vmem:[#allocation2 + $0x38] sm:$0xff] %v248
  %265 = vst [vmem:[#allocation2 + $0x40] sm:$0xff] %v249
  %266 = vst [vmem:[#allocation2 + $0x48] sm:$0xff] %v250
  %267 = vst [vmem:[#allocation2 + $0x50] sm:$0xff] %v251
  %268 = vst [vmem:[#allocation2 + $0x58] sm:$0xff] %v252
  %269 = vst [vmem:[#allocation2 + $0x60] sm:$0xff] %v253
  %270 = vst [vmem:[#allocation2 + $0x68] sm:$0xff] %v254
  %271 = vst [vmem:[#allocation2 + $0x70] sm:$0xff] %v255
  %272 = vst [vmem:[#allocation2 + $0x78] sm:$0xff] %v256
  // Predicated region
  $region14: #{zhugo_forward.50} parent=0 // pred_check
    %p273 = pneg %p11
  $region15: #{zhugo_forward.50} parent=0 // pred_check_branch
    %275 = sbr.rel (%p273) target = $region17
  $region16: #{zhugo_forward.50} parent=0 // pred_region
    %v276 = vld [vmem:[#allocation2] sm:$0xff]
    %v277 = vld [vmem:[#allocation2 + $0x8] sm:$0xff]
    %v278 = vld [vmem:[#allocation2 + $0x10] sm:$0xff]
    %v279 = vld [vmem:[#allocation2 + $0x18] sm:$0xff]
    %v280 = vld [vmem:[#allocation2 + $0x20] sm:$0xff]
    %v281 = vld [vmem:[#allocation2 + $0x28] sm:$0xff]
    %v282 = vld [vmem:[#allocation2 + $0x30] sm:$0xff]
    %v283 = vld [vmem:[#allocation2 + $0x38] sm:$0xff]
    %v284 = vld [vmem:[#allocation2 + $0x40] sm:$0xff]
    %v285 = vld [vmem:[#allocation2 + $0x48] sm:$0xff]
    %v286 = vld [vmem:[#allocation2 + $0x50] sm:$0xff]
    %v287 = vld [vmem:[#allocation2 + $0x58] sm:$0xff]
    %v288 = vld [vmem:[#allocation2 + $0x60] sm:$0xff]
    %v289 = vld [vmem:[#allocation2 + $0x68] sm:$0xff]
    %v290 = vld [vmem:[#allocation2 + $0x70] sm:$0xff]
    %v291 = vld [vmem:[#allocation2 + $0x78] sm:$0xff]
    %292 = vst [vmem:[%s2] sm:$0xff] %v276
    %293 = vst [vmem:[%s2 + $0x8] sm:$0xff] %v277
    %294 = vst [vmem:[%s2 + $0x10] sm:$0xff] %v278
    %295 = vst [vmem:[%s2 + $0x18] sm:$0xff] %v279
    %296 = vst [vmem:[%s2 + $0x20] sm:$0xff] %v280
    %297 = vst [vmem:[%s2 + $0x28] sm:$0xff] %v281
    %298 = vst [vmem:[%s2 + $0x30] sm:$0xff] %v282
    %299 = vst [vmem:[%s2 + $0x38] sm:$0xff] %v283
    %300 = vst [vmem:[%s2 + $0x40] sm:$0xff] %v284
    %301 = vst [vmem:[%s2 + $0x48] sm:$0xff] %v285
    %302 = vst [vmem:[%s2 + $0x50] sm:$0xff] %v286
    %303 = vst [vmem:[%s2 + $0x58] sm:$0xff] %v287
    %304 = vst [vmem:[%s2 + $0x60] sm:$0xff] %v288
    %305 = vst [vmem:[%s2 + $0x68] sm:$0xff] %v289
    %306 = vst [vmem:[%s2 + $0x70] sm:$0xff] %v290
    %307 = vst [vmem:[%s2 + $0x78] sm:$0xff] %v291
  $region17: #{zhugo_forward.50} parent=0 // pred_fallthru
    _
  // Predicated region
  $region18: #{zhugo_forward.50} parent=0 // pred_check
    _
  $region19: #{zhugo_forward.50} parent=0 // pred_check_branch
    %309 = sbr.rel (0) target = $region21
  $region20: #{zhugo_forward.50} parent=0 // pred_region
    _
  $region21: #{zhugo_forward.50} parent=0 // pred_fallthru
    _
  // Predicated region
  $region22: #{zhugo_forward.50} parent=0 // pred_check
    _
  $region23: #{zhugo_forward.50} parent=0 // pred_check_branch
    %311 = sbr.rel (0) target = $region25
  $region24: #{zhugo_forward.50} parent=0 // pred_region
    _
  $region25: #{zhugo_forward.50} parent=0 // pred_fallthru
    _

// kernel: zhugo_forward.54
$region0: #{zhugo_forward.54}
  #allocation0 [shape = 'u32[]', space=smem, size = 0x4, offset = 0x4, fixed_abs, tag = 'smem constant byte address 0x4 - core index']
  #allocation1 [shape = 'u32[72,128]{1,0:T(1,128)}', space=vmem, size = 0x9000, scoped, tag = 'internal scratch']
  #allocation2 [shape = 'f32[128,128]{1,0:T(8,128)}', space=vmem, size = 0x10000, scoped, tag = 'scratch operand']
  %s0 = inlined_call_operand.vmem [shape: f32[128,256], index: 0, kind: input, shape index: {}]
  %s1 = inlined_call_operand.vmem [shape: f32[256,128], index: 1, kind: input, shape index: {}]
  %s2 = inlined_call_operand.vmem [shape: f32[128,128], index: 2, kind: input, shape index: {}]
  %s3 = inlined_call_operand.vmem [shape: f32[128,128], index: 3, kind: output, shape index: {}]
  %s4 = sld [smem:[#allocation0]]
  $region30: #{zhugo_forward.54} parent=0
    _
  %s6 = ssub.s32 1, %s4
  %s7 = scalar_select 0, %s6, %s4
  // Predicated region
  $region2: #{zhugo_forward.54} parent=0 // pred_check
    _
  $region3: #{zhugo_forward.54} parent=0 // pred_check_branch
    %9 = sbr.rel (0) target = $region5
  $region4: #{zhugo_forward.54} parent=0 // pred_region
    _
  $region5: #{zhugo_forward.54} parent=0 // pred_fallthru
    _
  // Predicated region
  $region6: #{zhugo_forward.54} parent=0 // pred_check
    _
  $region7: #{zhugo_forward.54} parent=0 // pred_check_branch
    %11 = sbr.rel (0) target = $region9
  $region8: #{zhugo_forward.54} parent=0 // pred_region
    _
  $region9: #{zhugo_forward.54} parent=0 // pred_fallthru
    _
  // Predicated region
  $region10: #{zhugo_forward.54} parent=0 // pred_check
    _
  $region11: #{zhugo_forward.54} parent=0 // pred_check_branch
    %13 = sbr.rel (0) target = $region13
  $region12: #{zhugo_forward.54} parent=0 // pred_region
    _
  $region13: #{zhugo_forward.54} parent=0 // pred_fallthru
    _
  %p14 = scmp.eq.s32.totalorder 0, 0
  // Predicated region
  $region14: #{zhugo_forward.54} parent=0 // pred_check
    %p15 = pneg %p14
  $region15: #{zhugo_forward.54} parent=0 // pred_check_branch
    %17 = sbr.rel (%p15) target = $region17
  $region16: #{zhugo_forward.54} parent=0 // pred_region
    %18 = vst [vmem:[#allocation2] sm:$0xff] 0.0
    %19 = vst [vmem:[#allocation2 + $0x8] sm:$0xff] 0.0
    %20 = vst [vmem:[#allocation2 + $0x10] sm:$0xff] 0.0
    %21 = vst [vmem:[#allocation2 + $0x18] sm:$0xff] 0.0
    %22 = vst [vmem:[#allocation2 + $0x20] sm:$0xff] 0.0
    %23 = vst [vmem:[#allocation2 + $0x28] sm:$0xff] 0.0
    %24 = vst [vmem:[#allocation2 + $0x30] sm:$0xff] 0.0
    %25 = vst [vmem:[#allocation2 + $0x38] sm:$0xff] 0.0
    %26 = vst [vmem:[#allocation2 + $0x40] sm:$0xff] 0.0
    %27 = vst [vmem:[#allocation2 + $0x48] sm:$0xff] 0.0
    %28 = vst [vmem:[#allocation2 + $0x50] sm:$0xff] 0.0
    %29 = vst [vmem:[#allocation2 + $0x58] sm:$0xff] 0.0
    %30 = vst [vmem:[#allocation2 + $0x60] sm:$0xff] 0.0
    %31 = vst [vmem:[#allocation2 + $0x68] sm:$0xff] 0.0
    %32 = vst [vmem:[#allocation2 + $0x70] sm:$0xff] 0.0
    %33 = vst [vmem:[#allocation2 + $0x78] sm:$0xff] 0.0
  $region17: #{zhugo_forward.54} parent=0 // pred_fallthru
    _
  %v34 = vld [vmem:[%s0] sm:$0xff]
  %v35 = vld [vmem:[%s0 + $0x8] sm:$0xff]
  %v36 = vld [vmem:[%s0 + $0x10] sm:$0xff]
  %v37 = vld [vmem:[%s0 + $0x18] sm:$0xff]
  %v38 = vld [vmem:[%s0 + $0x20] sm:$0xff]
  %v39 = vld [vmem:[%s0 + $0x28] sm:$0xff]
  %v40 = vld [vmem:[%s0 + $0x30] sm:$0xff]
  %v41 = vld [vmem:[%s0 + $0x38] sm:$0xff]
  %v42 = vld [vmem:[%s0 + $0x40] sm:$0xff]
  %v43 = vld [vmem:[%s0 + $0x48] sm:$0xff]
  %v44 = vld [vmem:[%s0 + $0x50] sm:$0xff]
  %v45 = vld [vmem:[%s0 + $0x58] sm:$0xff]
  %v46 = vld [vmem:[%s0 + $0x60] sm:$0xff]
  %v47 = vld [vmem:[%s0 + $0x68] sm:$0xff]
  %v48 = vld [vmem:[%s0 + $0x70] sm:$0xff]
  %v49 = vld [vmem:[%s0 + $0x78] sm:$0xff]
  %v50 = vld [vmem:[%s0 + $0x80] sm:$0xff]
  %v51 = vld [vmem:[%s0 + $0x88] sm:$0xff]
  %v52 = vld [vmem:[%s0 + $0x90] sm:$0xff]
  %v53 = vld [vmem:[%s0 + $0x98] sm:$0xff]
  %v54 = vld [vmem:[%s0 + $0xa0] sm:$0xff]
  %v55 = vld [vmem:[%s0 + $0xa8] sm:$0xff]
  %v56 = vld [vmem:[%s0 + $0xb0] sm:$0xff]
  %v57 = vld [vmem:[%s0 + $0xb8] sm:$0xff]
  %v58 = vld [vmem:[%s0 + $0xc0] sm:$0xff]
  %v59 = vld [vmem:[%s0 + $0xc8] sm:$0xff]
  %v60 = vld [vmem:[%s0 + $0xd0] sm:$0xff]
  %v61 = vld [vmem:[%s0 + $0xd8] sm:$0xff]
  %v62 = vld [vmem:[%s0 + $0xe0] sm:$0xff]
  %v63 = vld [vmem:[%s0 + $0xe8] sm:$0xff]
  %v64 = vld [vmem:[%s0 + $0xf0] sm:$0xff]
  %v65 = vld [vmem:[%s0 + $0xf8] sm:$0xff]
  %v66 = vld [vmem:[%s1] sm:$0xff]
  %v67 = vld [vmem:[%s1 + $0x8] sm:$0xff]
  %v68 = vld [vmem:[%s1 + $0x10] sm:$0xff]
  %v69 = vld [vmem:[%s1 + $0x18] sm:$0xff]
  %v70 = vld [vmem:[%s1 + $0x20] sm:$0xff]
  %v71 = vld [vmem:[%s1 + $0x28] sm:$0xff]
  %v72 = vld [vmem:[%s1 + $0x30] sm:$0xff]
  %v73 = vld [vmem:[%s1 + $0x38] sm:$0xff]
  %v74 = vld [vmem:[%s1 + $0x40] sm:$0xff]
  %v75 = vld [vmem:[%s1 + $0x48] sm:$0xff]
  %v76 = vld [vmem:[%s1 + $0x50] sm:$0xff]
  %v77 = vld [vmem:[%s1 + $0x58] sm:$0xff]
  %v78 = vld [vmem:[%s1 + $0x60] sm:$0xff]
  %v79 = vld [vmem:[%s1 + $0x68] sm:$0xff]
  %v80 = vld [vmem:[%s1 + $0x70] sm:$0xff]
  %v81 = vld [vmem:[%s1 + $0x78] sm:$0xff]
  %v82 = vld [vmem:[%s1 + $0x80] sm:$0xff]
  %v83 = vld [vmem:[%s1 + $0x88] sm:$0xff]
  %v84 = vld [vmem:[%s1 + $0x90] sm:$0xff]
  %v85 = vld [vmem:[%s1 + $0x98] sm:$0xff]
  %v86 = vld [vmem:[%s1 + $0xa0] sm:$0xff]
  %v87 = vld [vmem:[%s1 + $0xa8] sm:$0xff]
  %v88 = vld [vmem:[%s1 + $0xb0] sm:$0xff]
  %v89 = vld [vmem:[%s1 + $0xb8] sm:$0xff]
  %v90 = vld [vmem:[%s1 + $0xc0] sm:$0xff]
  %v91 = vld [vmem:[%s1 + $0xc8] sm:$0xff]
  %v92 = vld [vmem:[%s1 + $0xd0] sm:$0xff]
  %v93 = vld [vmem:[%s1 + $0xd8] sm:$0xff]
  %v94 = vld [vmem:[%s1 + $0xe0] sm:$0xff]
  %v95 = vld [vmem:[%s1 + $0xe8] sm:$0xff]
  %v96 = vld [vmem:[%s1 + $0xf0] sm:$0xff]
  %v97 = vld [vmem:[%s1 + $0xf8] sm:$0xff]
  %v98 = vpack.c.bf16 %v36, %v34
  %v99 = vpack.c.bf16 %v37, %v35
  %v100 = vpack.c.bf16 %v40, %v38
  %v101 = vpack.c.bf16 %v41, %v39
  %v102 = vpack.c.bf16 %v44, %v42
  %v103 = vpack.c.bf16 %v45, %v43
  %v104 = vpack.c.bf16 %v48, %v46
  %v105 = vpack.c.bf16 %v49, %v47
  %v106 = vpack.c.bf16 %v52, %v50
  %v107 = vpack.c.bf16 %v53, %v51
  %v108 = vpack.c.bf16 %v56, %v54
  %v109 = vpack.c.bf16 %v57, %v55
  %v110 = vpack.c.bf16 %v60, %v58
  %v111 = vpack.c.bf16 %v61, %v59
  %v112 = vpack.c.bf16 %v64, %v62
  %v113 = vpack.c.bf16 %v65, %v63
  %v114 = vpack.c.bf16 %v67, %v66
  %v115 = vpack.c.bf16 %v69, %v68
  %v116 = vpack.c.bf16 %v71, %v70
  %v117 = vpack.c.bf16 %v73, %v72
  %v118 = vpack.c.bf16 %v75, %v74
  %v119 = vpack.c.bf16 %v77, %v76
  %v120 = vpack.c.bf16 %v79, %v78
  %v121 = vpack.c.bf16 %v81, %v80
  %v122 = vpack.c.bf16 %v83, %v82
  %v123 = vpack.c.bf16 %v85, %v84
  %v124 = vpack.c.bf16 %v87, %v86
  %v125 = vpack.c.bf16 %v89, %v88
  %v126 = vpack.c.bf16 %v91, %v90
  %v127 = vpack.c.bf16 %v93, %v92
  %v128 = vpack.c.bf16 %v95, %v94
  %v129 = vpack.c.bf16 %v97, %v96
  %v130 = vld [vmem:[#allocation2] sm:$0xff]
  %v131 = vld [vmem:[#allocation2 + $0x8] sm:$0xff]
  %v132 = vld [vmem:[#allocation2 + $0x10] sm:$0xff]
  %v133 = vld [vmem:[#allocation2 + $0x18] sm:$0xff]
  %v134 = vld [vmem:[#allocation2 + $0x20] sm:$0xff]
  %v135 = vld [vmem:[#allocation2 + $0x28] sm:$0xff]
  %v136 = vld [vmem:[#allocation2 + $0x30] sm:$0xff]
  %v137 = vld [vmem:[#allocation2 + $0x38] sm:$0xff]
  %v138 = vld [vmem:[#allocation2 + $0x40] sm:$0xff]
  %v139 = vld [vmem:[#allocation2 + $0x48] sm:$0xff]
  %v140 = vld [vmem:[#allocation2 + $0x50] sm:$0xff]
  %v141 = vld [vmem:[#allocation2 + $0x58] sm:$0xff]
  %v142 = vld [vmem:[#allocation2 + $0x60] sm:$0xff]
  %v143 = vld [vmem:[#allocation2 + $0x68] sm:$0xff]
  %v144 = vld [vmem:[#allocation2 + $0x70] sm:$0xff]
  %v145 = vld [vmem:[#allocation2 + $0x78] sm:$0xff]
  %146 = vmatpush.bf16.msra.mxu0 %v121
  %147 = vmatpush.bf16.msra.mxu0 %v120
  %148 = vmatpush.bf16.msra.mxu0 %v119
  %149 = vmatpush.bf16.msra.mxu0 %v118
  %150 = vmatpush.bf16.msra.mxu0 %v117
  %151 = vmatpush.bf16.msra.mxu0 %v116
  %152 = vmatpush.bf16.msra.mxu0 %v115
  %153 = vmatpush.bf16.msra.mxu0 %v114
  %154 = vmatmul.bf16.gmra.mxu0 %v98
  %v155 = vpop.f32.mrf.mxu0
  %v156 = vadd.f32 0.0, %v155
  %v157 = vpop.f32.mrf.mxu0
  %v158 = vadd.f32 0.0, %v157
  %159 = vmatmul.bf16.gmra.mxu0 %v100
  %v160 = vpop.f32.mrf.mxu0
  %v161 = vadd.f32 0.0, %v160
  %v162 = vpop.f32.mrf.mxu0
  %v163 = vadd.f32 0.0, %v162
  %164 = vmatmul.bf16.gmra.mxu0 %v102
  %v165 = vpop.f32.mrf.mxu0
  %v166 = vadd.f32 0.0, %v165
  %v167 = vpop.f32.mrf.mxu0
  %v168 = vadd.f32 0.0, %v167
  %169 = vmatmul.bf16.gmra.mxu0 %v104
  %v170 = vpop.f32.mrf.mxu0
  %v171 = vadd.f32 0.0, %v170
  %v172 = vpop.f32.mrf.mxu0
  %v173 = vadd.f32 0.0, %v172
  %174 = vmatmul.bf16.gmra.mxu0 %v106
  %v175 = vpop.f32.mrf.mxu0
  %v176 = vadd.f32 0.0, %v175
  %v177 = vpop.f32.mrf.mxu0
  %v178 = vadd.f32 0.0, %v177
  %179 = vmatmul.bf16.gmra.mxu0 %v108
  %v180 = vpop.f32.mrf.mxu0
  %v181 = vadd.f32 0.0, %v180
  %v182 = vpop.f32.mrf.mxu0
  %v183 = vadd.f32 0.0, %v182
  %184 = vmatmul.bf16.gmra.mxu0 %v110
  %v185 = vpop.f32.mrf.mxu0
  %v186 = vadd.f32 0.0, %v185
  %v187 = vpop.f32.mrf.mxu0
  %v188 = vadd.f32 0.0, %v187
  %189 = vmatmul.bf16.gmra.mxu0 %v112
  %v190 = vpop.f32.mrf.mxu0
  %v191 = vadd.f32 0.0, %v190
  %v192 = vpop.f32.mrf.mxu0
  %v193 = vadd.f32 0.0, %v192
  %194 = vdwg.mxu0
  %195 = vmatpush.bf16.msra.mxu0 %v129
  %196 = vmatpush.bf16.msra.mxu0 %v128
  %197 = vmatpush.bf16.msra.mxu0 %v127
  %198 = vmatpush.bf16.msra.mxu0 %v126
  %199 = vmatpush.bf16.msra.mxu0 %v125
  %200 = vmatpush.bf16.msra.mxu0 %v124
  %201 = vmatpush.bf16.msra.mxu0 %v123
  %202 = vmatpush.bf16.msra.mxu0 %v122
  %203 = vmatmul.bf16.gmra.mxu0 %v99
  %v204 = vpop.f32.mrf.mxu0
  %v205 = vadd.f32 %v156, %v204
  %v206 = vpop.f32.mrf.mxu0
  %v207 = vadd.f32 %v158, %v206
  %208 = vmatmul.bf16.gmra.mxu0 %v101
  %v209 = vpop.f32.mrf.mxu0
  %v210 = vadd.f32 %v161, %v209
  %v211 = vpop.f32.mrf.mxu0
  %v212 = vadd.f32 %v163, %v211
  %213 = vmatmul.bf16.gmra.mxu0 %v103
  %v214 = vpop.f32.mrf.mxu0
  %v215 = vadd.f32 %v166, %v214
  %v216 = vpop.f32.mrf.mxu0
  %v217 = vadd.f32 %v168, %v216
  %218 = vmatmul.bf16.gmra.mxu0 %v105
  %v219 = vpop.f32.mrf.mxu0
  %v220 = vadd.f32 %v171, %v219
  %v221 = vpop.f32.mrf.mxu0
  %v222 = vadd.f32 %v173, %v221
  %223 = vmatmul.bf16.gmra.mxu0 %v107
  %v224 = vpop.f32.mrf.mxu0
  %v225 = vadd.f32 %v176, %v224
  %v226 = vpop.f32.mrf.mxu0
  %v227 = vadd.f32 %v178, %v226
  %228 = vmatmul.bf16.gmra.mxu0 %v109
  %v229 = vpop.f32.mrf.mxu0
  %v230 = vadd.f32 %v181, %v229
  %v231 = vpop.f32.mrf.mxu0
  %v232 = vadd.f32 %v183, %v231
  %233 = vmatmul.bf16.gmra.mxu0 %v111
  %v234 = vpop.f32.mrf.mxu0
  %v235 = vadd.f32 %v186, %v234
  %v236 = vpop.f32.mrf.mxu0
  %v237 = vadd.f32 %v188, %v236
  %238 = vmatmul.bf16.gmra.mxu0 %v113
  %v239 = vpop.f32.mrf.mxu0
  %v240 = vadd.f32 %v191, %v239
  %v241 = vpop.f32.mrf.mxu0
  %v242 = vadd.f32 %v193, %v241
  %243 = vdwg.mxu0
  %v244 = vadd.f32 %v130, %v205
  %v245 = vadd.f32 %v131, %v207
  %v246 = vadd.f32 %v132, %v210
  %v247 = vadd.f32 %v133, %v212
  %v248 = vadd.f32 %v134, %v215
  %v249 = vadd.f32 %v135, %v217
  %v250 = vadd.f32 %v136, %v220
  %v251 = vadd.f32 %v137, %v222
  %v252 = vadd.f32 %v138, %v225
  %v253 = vadd.f32 %v139, %v227
  %v254 = vadd.f32 %v140, %v230
  %v255 = vadd.f32 %v141, %v232
  %v256 = vadd.f32 %v142, %v235
  %v257 = vadd.f32 %v143, %v237
  %v258 = vadd.f32 %v144, %v240
  %v259 = vadd.f32 %v145, %v242
  %260 = vst [vmem:[#allocation2] sm:$0xff] %v244
  %261 = vst [vmem:[#allocation2 + $0x8] sm:$0xff] %v245
  %262 = vst [vmem:[#allocation2 + $0x10] sm:$0xff] %v246
  %263 = vst [vmem:[#allocation2 + $0x18] sm:$0xff] %v247
  %264 = vst [vmem:[#allocation2 + $0x20] sm:$0xff] %v248
  %265 = vst [vmem:[#allocation2 + $0x28] sm:$0xff] %v249
  %266 = vst [vmem:[#allocation2 + $0x30] sm:$0xff] %v250
  %267 = vst [vmem:[#allocation2 + $0x38] sm:$0xff] %v251
  %268 = vst [vmem:[#allocation2 + $0x40] sm:$0xff] %v252
  %269 = vst [vmem:[#allocation2 + $0x48] sm:$0xff] %v253
  %270 = vst [vmem:[#allocation2 + $0x50] sm:$0xff] %v254
  %271 = vst [vmem:[#allocation2 + $0x58] sm:$0xff] %v255
  %272 = vst [vmem:[#allocation2 + $0x60] sm:$0xff] %v256
  %273 = vst [vmem:[#allocation2 + $0x68] sm:$0xff] %v257
  %274 = vst [vmem:[#allocation2 + $0x70] sm:$0xff] %v258
  %275 = vst [vmem:[#allocation2 + $0x78] sm:$0xff] %v259
  // Predicated region
  $region18: #{zhugo_forward.54} parent=0 // pred_check
    %p276 = pneg %p14
  $region19: #{zhugo_forward.54} parent=0 // pred_check_branch
    %278 = sbr.rel (%p276) target = $region21
  $region20: #{zhugo_forward.54} parent=0 // pred_region
    %v279 = vld [vmem:[#allocation2] sm:$0xff]
    %v280 = vld [vmem:[#allocation2 + $0x8] sm:$0xff]
    %v281 = vld [vmem:[#allocation2 + $0x10] sm:$0xff]
    %v282 = vld [vmem:[#allocation2 + $0x18] sm:$0xff]
    %v283 = vld [vmem:[#allocation2 + $0x20] sm:$0xff]
    %v284 = vld [vmem:[#allocation2 + $0x28] sm:$0xff]
    %v285 = vld [vmem:[#allocation2 + $0x30] sm:$0xff]
    %v286 = vld [vmem:[#allocation2 + $0x38] sm:$0xff]
    %v287 = vld [vmem:[#allocation2 + $0x40] sm:$0xff]
    %v288 = vld [vmem:[#allocation2 + $0x48] sm:$0xff]
    %v289 = vld [vmem:[#allocation2 + $0x50] sm:$0xff]
    %v290 = vld [vmem:[#allocation2 + $0x58] sm:$0xff]
    %v291 = vld [vmem:[#allocation2 + $0x60] sm:$0xff]
    %v292 = vld [vmem:[#allocation2 + $0x68] sm:$0xff]
    %v293 = vld [vmem:[#allocation2 + $0x70] sm:$0xff]
    %v294 = vld [vmem:[#allocation2 + $0x78] sm:$0xff]
    %v295 = vld [vmem:[%s2] sm:$0xff]
    %v296 = vld [vmem:[%s2 + $0x8] sm:$0xff]
    %v297 = vld [vmem:[%s2 + $0x10] sm:$0xff]
    %v298 = vld [vmem:[%s2 + $0x18] sm:$0xff]
    %v299 = vld [vmem:[%s2 + $0x20] sm:$0xff]
    %v300 = vld [vmem:[%s2 + $0x28] sm:$0xff]
    %v301 = vld [vmem:[%s2 + $0x30] sm:$0xff]
    %v302 = vld [vmem:[%s2 + $0x38] sm:$0xff]
    %v303 = vld [vmem:[%s2 + $0x40] sm:$0xff]
    %v304 = vld [vmem:[%s2 + $0x48] sm:$0xff]
    %v305 = vld [vmem:[%s2 + $0x50] sm:$0xff]
    %v306 = vld [vmem:[%s2 + $0x58] sm:$0xff]
    %v307 = vld [vmem:[%s2 + $0x60] sm:$0xff]
    %v308 = vld [vmem:[%s2 + $0x68] sm:$0xff]
    %v309 = vld [vmem:[%s2 + $0x70] sm:$0xff]
    %v310 = vld [vmem:[%s2 + $0x78] sm:$0xff]
    %v311 = vmul.f32 %v295, 2.0
    %v312 = vmul.f32 %v296, 2.0
    %v313 = vmul.f32 %v297, 2.0
    %v314 = vmul.f32 %v298, 2.0
    %v315 = vmul.f32 %v299, 2.0
    %v316 = vmul.f32 %v300, 2.0
    %v317 = vmul.f32 %v301, 2.0
    %v318 = vmul.f32 %v302, 2.0
    %v319 = vmul.f32 %v303, 2.0
    %v320 = vmul.f32 %v304, 2.0
    %v321 = vmul.f32 %v305, 2.0
    %v322 = vmul.f32 %v306, 2.0
    %v323 = vmul.f32 %v307, 2.0
    %v324 = vmul.f32 %v308, 2.0
    %v325 = vmul.f32 %v309, 2.0
    %v326 = vmul.f32 %v310, 2.0
    %v327 = vadd.f32 %v279, %v311
    %v328 = vadd.f32 %v280, %v312
    %v329 = vadd.f32 %v281, %v313
    %v330 = vadd.f32 %v282, %v314
    %v331 = vadd.f32 %v283, %v315
    %v332 = vadd.f32 %v284, %v316
    %v333 = vadd.f32 %v285, %v317
    %v334 = vadd.f32 %v286, %v318
    %v335 = vadd.f32 %v287, %v319
    %v336 = vadd.f32 %v288, %v320
    %v337 = vadd.f32 %v289, %v321
    %v338 = vadd.f32 %v290, %v322
    %v339 = vadd.f32 %v291, %v323
    %v340 = vadd.f32 %v292, %v324
    %v341 = vadd.f32 %v293, %v325
    %v342 = vadd.f32 %v294, %v326
    %343 = vst [vmem:[%s3] sm:$0xff] %v327
    %344 = vst [vmem:[%s3 + $0x8] sm:$0xff] %v328
    %345 = vst [vmem:[%s3 + $0x10] sm:$0xff] %v329
    %346 = vst [vmem:[%s3 + $0x18] sm:$0xff] %v330
    %347 = vst [vmem:[%s3 + $0x20] sm:$0xff] %v331
    %348 = vst [vmem:[%s3 + $0x28] sm:$0xff] %v332
    %349 = vst [vmem:[%s3 + $0x30] sm:$0xff] %v333
    %350 = vst [vmem:[%s3 + $0x38] sm:$0xff] %v334
    %351 = vst [vmem:[%s3 + $0x40] sm:$0xff] %v335
    %352 = vst [vmem:[%s3 + $0x48] sm:$0xff] %v336
    %353 = vst [vmem:[%s3 + $0x50] sm:$0xff] %v337
    %354 = vst [vmem:[%s3 + $0x58] sm:$0xff] %v338
    %355 = vst [vmem:[%s3 + $0x60] sm:$0xff] %v339
    %356 = vst [vmem:[%s3 + $0x68] sm:$0xff] %v340
    %357 = vst [vmem:[%s3 + $0x70] sm:$0xff] %v341
    %358 = vst [vmem:[%s3 + $0x78] sm:$0xff] %v342
  $region21: #{zhugo_forward.54} parent=0 // pred_fallthru
    _
  // Predicated region
  $region22: #{zhugo_forward.54} parent=0 // pred_check
    _
  $region23: #{zhugo_forward.54} parent=0 // pred_check_branch
    %360 = sbr.rel (0) target = $region25
  $region24: #{zhugo_forward.54} parent=0 // pred_region
    _
  $region25: #{zhugo_forward.54} parent=0 // pred_fallthru
    _
  // Predicated region
  $region26: #{zhugo_forward.54} parent=0 // pred_check
    _
  $region27: #{zhugo_forward.54} parent=0 // pred_check_branch
    %362 = sbr.rel (0) target = $region29
  $region28: #{zhugo_forward.54} parent=0 // pred_region
    _
  $region29: #{zhugo_forward.54} parent=0 // pred_fallthru
    _

// kernel: zhugo_forward.53
$region0: #{zhugo_forward.53}
  #allocation0 [shape = 'u32[]', space=smem, size = 0x4, offset = 0x4, fixed_abs, tag = 'smem constant byte address 0x4 - core index']
  #allocation1 [shape = 'u32[72,128]{1,0:T(1,128)}', space=vmem, size = 0x9000, scoped, tag = 'internal scratch']
  #allocation2 [shape = 'f32[128,128]{1,0:T(8,128)}', space=vmem, size = 0x10000, scoped, tag = 'scratch operand']
  %s0 = inlined_call_operand.vmem [shape: f32[128,256], index: 0, kind: input, shape index: {}]
  %s1 = inlined_call_operand.vmem [shape: f32[256,128], index: 1, kind: input, shape index: {}]
  %s2 = inlined_call_operand.vmem [shape: f32[1,128], index: 2, kind: input, shape index: {}]
  %s3 = inlined_call_operand.vmem [shape: f32[1,128], index: 3, kind: input, shape index: {}]
  %s4 = inlined_call_operand.vmem [shape: f32[128,128], index: 4, kind: output, shape index: {}]
  %s5 = sld [smem:[#allocation0]]
  $region34: #{zhugo_forward.53} parent=0
    _
  %s7 = ssub.s32 1, %s5
  %s8 = scalar_select 0, %s7, %s5
  // Predicated region
  $region2: #{zhugo_forward.53} parent=0 // pred_check
    _
  $region3: #{zhugo_forward.53} parent=0 // pred_check_branch
    %10 = sbr.rel (0) target = $region5
  $region4: #{zhugo_forward.53} parent=0 // pred_region
    _
  $region5: #{zhugo_forward.53} parent=0 // pred_fallthru
    _
  // Predicated region
  $region6: #{zhugo_forward.53} parent=0 // pred_check
    _
  $region7: #{zhugo_forward.53} parent=0 // pred_check_branch
    %12 = sbr.rel (0) target = $region9
  $region8: #{zhugo_forward.53} parent=0 // pred_region
    _
  $region9: #{zhugo_forward.53} parent=0 // pred_fallthru
    _
  // Predicated region
  $region10: #{zhugo_forward.53} parent=0 // pred_check
    _
  $region11: #{zhugo_forward.53} parent=0 // pred_check_branch
    %14 = sbr.rel (0) target = $region13
  $region12: #{zhugo_forward.53} parent=0 // pred_region
    _
  $region13: #{zhugo_forward.53} parent=0 // pred_fallthru
    _
  // Predicated region
  $region14: #{zhugo_forward.53} parent=0 // pred_check
    _
  $region15: #{zhugo_forward.53} parent=0 // pred_check_branch
    %16 = sbr.rel (0) target = $region17
  $region16: #{zhugo_forward.53} parent=0 // pred_region
    _
  $region17: #{zhugo_forward.53} parent=0 // pred_fallthru
    _
  %p17 = scmp.eq.s32.totalorder 0, 0
  // Predicated region
  $region18: #{zhugo_forward.53} parent=0 // pred_check
    %p18 = pneg %p17
  $region19: #{zhugo_forward.53} parent=0 // pred_check_branch
    %20 = sbr.rel (%p18) target = $region21
  $region20: #{zhugo_forward.53} parent=0 // pred_region
    %21 = vst [vmem:[#allocation2] sm:$0xff] 0.0
    %22 = vst [vmem:[#allocation2 + $0x8] sm:$0xff] 0.0
    %23 = vst [vmem:[#allocation2 + $0x10] sm:$0xff] 0.0
    %24 = vst [vmem:[#allocation2 + $0x18] sm:$0xff] 0.0
    %25 = vst [vmem:[#allocation2 + $0x20] sm:$0xff] 0.0
    %26 = vst [vmem:[#allocation2 + $0x28] sm:$0xff] 0.0
    %27 = vst [vmem:[#allocation2 + $0x30] sm:$0xff] 0.0
    %28 = vst [vmem:[#allocation2 + $0x38] sm:$0xff] 0.0
    %29 = vst [vmem:[#allocation2 + $0x40] sm:$0xff] 0.0
    %30 = vst [vmem:[#allocation2 + $0x48] sm:$0xff] 0.0
    %31 = vst [vmem:[#allocation2 + $0x50] sm:$0xff] 0.0
    %32 = vst [vmem:[#allocation2 + $0x58] sm:$0xff] 0.0
    %33 = vst [vmem:[#allocation2 + $0x60] sm:$0xff] 0.0
    %34 = vst [vmem:[#allocation2 + $0x68] sm:$0xff] 0.0
    %35 = vst [vmem:[#allocation2 + $0x70] sm:$0xff] 0.0
    %36 = vst [vmem:[#allocation2 + $0x78] sm:$0xff] 0.0
  $region21: #{zhugo_forward.53} parent=0 // pred_fallthru
    _
  %v37 = vld [vmem:[%s0] sm:$0xff]
  %v38 = vld [vmem:[%s0 + $0x8] sm:$0xff]
  %v39 = vld [vmem:[%s0 + $0x10] sm:$0xff]
  %v40 = vld [vmem:[%s0 + $0x18] sm:$0xff]
  %v41 = vld [vmem:[%s0 + $0x20] sm:$0xff]
  %v42 = vld [vmem:[%s0 + $0x28] sm:$0xff]
  %v43 = vld [vmem:[%s0 + $0x30] sm:$0xff]
  %v44 = vld [vmem:[%s0 + $0x38] sm:$0xff]
  %v45 = vld [vmem:[%s0 + $0x40] sm:$0xff]
  %v46 = vld [vmem:[%s0 + $0x48] sm:$0xff]
  %v47 = vld [vmem:[%s0 + $0x50] sm:$0xff]
  %v48 = vld [vmem:[%s0 + $0x58] sm:$0xff]
  %v49 = vld [vmem:[%s0 + $0x60] sm:$0xff]
  %v50 = vld [vmem:[%s0 + $0x68] sm:$0xff]
  %v51 = vld [vmem:[%s0 + $0x70] sm:$0xff]
  %v52 = vld [vmem:[%s0 + $0x78] sm:$0xff]
  %v53 = vld [vmem:[%s0 + $0x80] sm:$0xff]
  %v54 = vld [vmem:[%s0 + $0x88] sm:$0xff]
  %v55 = vld [vmem:[%s0 + $0x90] sm:$0xff]
  %v56 = vld [vmem:[%s0 + $0x98] sm:$0xff]
  %v57 = vld [vmem:[%s0 + $0xa0] sm:$0xff]
  %v58 = vld [vmem:[%s0 + $0xa8] sm:$0xff]
  %v59 = vld [vmem:[%s0 + $0xb0] sm:$0xff]
  %v60 = vld [vmem:[%s0 + $0xb8] sm:$0xff]
  %v61 = vld [vmem:[%s0 + $0xc0] sm:$0xff]
  %v62 = vld [vmem:[%s0 + $0xc8] sm:$0xff]
  %v63 = vld [vmem:[%s0 + $0xd0] sm:$0xff]
  %v64 = vld [vmem:[%s0 + $0xd8] sm:$0xff]
  %v65 = vld [vmem:[%s0 + $0xe0] sm:$0xff]
  %v66 = vld [vmem:[%s0 + $0xe8] sm:$0xff]
  %v67 = vld [vmem:[%s0 + $0xf0] sm:$0xff]
  %v68 = vld [vmem:[%s0 + $0xf8] sm:$0xff]
  %v69 = vld [vmem:[%s1] sm:$0xff]
  %v70 = vld [vmem:[%s1 + $0x8] sm:$0xff]
  %v71 = vld [vmem:[%s1 + $0x10] sm:$0xff]
  %v72 = vld [vmem:[%s1 + $0x18] sm:$0xff]
  %v73 = vld [vmem:[%s1 + $0x20] sm:$0xff]
  %v74 = vld [vmem:[%s1 + $0x28] sm:$0xff]
  %v75 = vld [vmem:[%s1 + $0x30] sm:$0xff]
  %v76 = vld [vmem:[%s1 + $0x38] sm:$0xff]
  %v77 = vld [vmem:[%s1 + $0x40] sm:$0xff]
  %v78 = vld [vmem:[%s1 + $0x48] sm:$0xff]
  %v79 = vld [vmem:[%s1 + $0x50] sm:$0xff]
  %v80 = vld [vmem:[%s1 + $0x58] sm:$0xff]
  %v81 = vld [vmem:[%s1 + $0x60] sm:$0xff]
  %v82 = vld [vmem:[%s1 + $0x68] sm:$0xff]
  %v83 = vld [vmem:[%s1 + $0x70] sm:$0xff]
  %v84 = vld [vmem:[%s1 + $0x78] sm:$0xff]
  %v85 = vld [vmem:[%s1 + $0x80] sm:$0xff]
  %v86 = vld [vmem:[%s1 + $0x88] sm:$0xff]
  %v87 = vld [vmem:[%s1 + $0x90] sm:$0xff]
  %v88 = vld [vmem:[%s1 + $0x98] sm:$0xff]
  %v89 = vld [vmem:[%s1 + $0xa0] sm:$0xff]
  %v90 = vld [vmem:[%s1 + $0xa8] sm:$0xff]
  %v91 = vld [vmem:[%s1 + $0xb0] sm:$0xff]
  %v92 = vld [vmem:[%s1 + $0xb8] sm:$0xff]
  %v93 = vld [vmem:[%s1 + $0xc0] sm:$0xff]
  %v94 = vld [vmem:[%s1 + $0xc8] sm:$0xff]
  %v95 = vld [vmem:[%s1 + $0xd0] sm:$0xff]
  %v96 = vld [vmem:[%s1 + $0xd8] sm:$0xff]
  %v97 = vld [vmem:[%s1 + $0xe0] sm:$0xff]
  %v98 = vld [vmem:[%s1 + $0xe8] sm:$0xff]
  %v99 = vld [vmem:[%s1 + $0xf0] sm:$0xff]
  %v100 = vld [vmem:[%s1 + $0xf8] sm:$0xff]
  %v101 = vpack.c.bf16 %v39, %v37
  %v102 = vpack.c.bf16 %v40, %v38
  %v103 = vpack.c.bf16 %v43, %v41
  %v104 = vpack.c.bf16 %v44, %v42
  %v105 = vpack.c.bf16 %v47, %v45
  %v106 = vpack.c.bf16 %v48, %v46
  %v107 = vpack.c.bf16 %v51, %v49
  %v108 = vpack.c.bf16 %v52, %v50
  %v109 = vpack.c.bf16 %v55, %v53
  %v110 = vpack.c.bf16 %v56, %v54
  %v111 = vpack.c.bf16 %v59, %v57
  %v112 = vpack.c.bf16 %v60, %v58
  %v113 = vpack.c.bf16 %v63, %v61
  %v114 = vpack.c.bf16 %v64, %v62
  %v115 = vpack.c.bf16 %v67, %v65
  %v116 = vpack.c.bf16 %v68, %v66
  %v117 = vpack.c.bf16 %v70, %v69
  %v118 = vpack.c.bf16 %v72, %v71
  %v119 = vpack.c.bf16 %v74, %v73
  %v120 = vpack.c.bf16 %v76, %v75
  %v121 = vpack.c.bf16 %v78, %v77
  %v122 = vpack.c.bf16 %v80, %v79
  %v123 = vpack.c.bf16 %v82, %v81
  %v124 = vpack.c.bf16 %v84, %v83
  %v125 = vpack.c.bf16 %v86, %v85
  %v126 = vpack.c.bf16 %v88, %v87
  %v127 = vpack.c.bf16 %v90, %v89
  %v128 = vpack.c.bf16 %v92, %v91
  %v129 = vpack.c.bf16 %v94, %v93
  %v130 = vpack.c.bf16 %v96, %v95
  %v131 = vpack.c.bf16 %v98, %v97
  %v132 = vpack.c.bf16 %v100, %v99
  %v133 = vld [vmem:[#allocation2] sm:$0xff]
  %v134 = vld [vmem:[#allocation2 + $0x8] sm:$0xff]
  %v135 = vld [vmem:[#allocation2 + $0x10] sm:$0xff]
  %v136 = vld [vmem:[#allocation2 + $0x18] sm:$0xff]
  %v137 = vld [vmem:[#allocation2 + $0x20] sm:$0xff]
  %v138 = vld [vmem:[#allocation2 + $0x28] sm:$0xff]
  %v139 = vld [vmem:[#allocation2 + $0x30] sm:$0xff]
  %v140 = vld [vmem:[#allocation2 + $0x38] sm:$0xff]
  %v141 = vld [vmem:[#allocation2 + $0x40] sm:$0xff]
  %v142 = vld [vmem:[#allocation2 + $0x48] sm:$0xff]
  %v143 = vld [vmem:[#allocation2 + $0x50] sm:$0xff]
  %v144 = vld [vmem:[#allocation2 + $0x58] sm:$0xff]
  %v145 = vld [vmem:[#allocation2 + $0x60] sm:$0xff]
  %v146 = vld [vmem:[#allocation2 + $0x68] sm:$0xff]
  %v147 = vld [vmem:[#allocation2 + $0x70] sm:$0xff]
  %v148 = vld [vmem:[#allocation2 + $0x78] sm:$0xff]
  %149 = vmatpush.bf16.msra.mxu0 %v124
  %150 = vmatpush.bf16.msra.mxu0 %v123
  %151 = vmatpush.bf16.msra.mxu0 %v122
  %152 = vmatpush.bf16.msra.mxu0 %v121
  %153 = vmatpush.bf16.msra.mxu0 %v120
  %154 = vmatpush.bf16.msra.mxu0 %v119
  %155 = vmatpush.bf16.msra.mxu0 %v118
  %156 = vmatpush.bf16.msra.mxu0 %v117
  %157 = vmatmul.bf16.gmra.mxu0 %v101
  %v158 = vpop.f32.mrf.mxu0
  %v159 = vadd.f32 0.0, %v158
  %v160 = vpop.f32.mrf.mxu0
  %v161 = vadd.f32 0.0, %v160
  %162 = vmatmul.bf16.gmra.mxu0 %v103
  %v163 = vpop.f32.mrf.mxu0
  %v164 = vadd.f32 0.0, %v163
  %v165 = vpop.f32.mrf.mxu0
  %v166 = vadd.f32 0.0, %v165
  %167 = vmatmul.bf16.gmra.mxu0 %v105
  %v168 = vpop.f32.mrf.mxu0
  %v169 = vadd.f32 0.0, %v168
  %v170 = vpop.f32.mrf.mxu0
  %v171 = vadd.f32 0.0, %v170
  %172 = vmatmul.bf16.gmra.mxu0 %v107
  %v173 = vpop.f32.mrf.mxu0
  %v174 = vadd.f32 0.0, %v173
  %v175 = vpop.f32.mrf.mxu0
  %v176 = vadd.f32 0.0, %v175
  %177 = vmatmul.bf16.gmra.mxu0 %v109
  %v178 = vpop.f32.mrf.mxu0
  %v179 = vadd.f32 0.0, %v178
  %v180 = vpop.f32.mrf.mxu0
  %v181 = vadd.f32 0.0, %v180
  %182 = vmatmul.bf16.gmra.mxu0 %v111
  %v183 = vpop.f32.mrf.mxu0
  %v184 = vadd.f32 0.0, %v183
  %v185 = vpop.f32.mrf.mxu0
  %v186 = vadd.f32 0.0, %v185
  %187 = vmatmul.bf16.gmra.mxu0 %v113
  %v188 = vpop.f32.mrf.mxu0
  %v189 = vadd.f32 0.0, %v188
  %v190 = vpop.f32.mrf.mxu0
  %v191 = vadd.f32 0.0, %v190
  %192 = vmatmul.bf16.gmra.mxu0 %v115
  %v193 = vpop.f32.mrf.mxu0
  %v194 = vadd.f32 0.0, %v193
  %v195 = vpop.f32.mrf.mxu0
  %v196 = vadd.f32 0.0, %v195
  %197 = vdwg.mxu0
  %198 = vmatpush.bf16.msra.mxu0 %v132
  %199 = vmatpush.bf16.msra.mxu0 %v131
  %200 = vmatpush.bf16.msra.mxu0 %v130
  %201 = vmatpush.bf16.msra.mxu0 %v129
  %202 = vmatpush.bf16.msra.mxu0 %v128
  %203 = vmatpush.bf16.msra.mxu0 %v127
  %204 = vmatpush.bf16.msra.mxu0 %v126
  %205 = vmatpush.bf16.msra.mxu0 %v125
  %206 = vmatmul.bf16.gmra.mxu0 %v102
  %v207 = vpop.f32.mrf.mxu0
  %v208 = vadd.f32 %v159, %v207
  %v209 = vpop.f32.mrf.mxu0
  %v210 = vadd.f32 %v161, %v209
  %211 = vmatmul.bf16.gmra.mxu0 %v104
  %v212 = vpop.f32.mrf.mxu0
  %v213 = vadd.f32 %v164, %v212
  %v214 = vpop.f32.mrf.mxu0
  %v215 = vadd.f32 %v166, %v214
  %216 = vmatmul.bf16.gmra.mxu0 %v106
  %v217 = vpop.f32.mrf.mxu0
  %v218 = vadd.f32 %v169, %v217
  %v219 = vpop.f32.mrf.mxu0
  %v220 = vadd.f32 %v171, %v219
  %221 = vmatmul.bf16.gmra.mxu0 %v108
  %v222 = vpop.f32.mrf.mxu0
  %v223 = vadd.f32 %v174, %v222
  %v224 = vpop.f32.mrf.mxu0
  %v225 = vadd.f32 %v176, %v224
  %226 = vmatmul.bf16.gmra.mxu0 %v110
  %v227 = vpop.f32.mrf.mxu0
  %v228 = vadd.f32 %v179, %v227
  %v229 = vpop.f32.mrf.mxu0
  %v230 = vadd.f32 %v181, %v229
  %231 = vmatmul.bf16.gmra.mxu0 %v112
  %v232 = vpop.f32.mrf.mxu0
  %v233 = vadd.f32 %v184, %v232
  %v234 = vpop.f32.mrf.mxu0
  %v235 = vadd.f32 %v186, %v234
  %236 = vmatmul.bf16.gmra.mxu0 %v114
  %v237 = vpop.f32.mrf.mxu0
  %v238 = vadd.f32 %v189, %v237
  %v239 = vpop.f32.mrf.mxu0
  %v240 = vadd.f32 %v191, %v239
  %241 = vmatmul.bf16.gmra.mxu0 %v116
  %v242 = vpop.f32.mrf.mxu0
  %v243 = vadd.f32 %v194, %v242
  %v244 = vpop.f32.mrf.mxu0
  %v245 = vadd.f32 %v196, %v244
  %246 = vdwg.mxu0
  %v247 = vadd.f32 %v133, %v208
  %v248 = vadd.f32 %v134, %v210
  %v249 = vadd.f32 %v135, %v213
  %v250 = vadd.f32 %v136, %v215
  %v251 = vadd.f32 %v137, %v218
  %v252 = vadd.f32 %v138, %v220
  %v253 = vadd.f32 %v139, %v223
  %v254 = vadd.f32 %v140, %v225
  %v255 = vadd.f32 %v141, %v228
  %v256 = vadd.f32 %v142, %v230
  %v257 = vadd.f32 %v143, %v233
  %v258 = vadd.f32 %v144, %v235
  %v259 = vadd.f32 %v145, %v238
  %v260 = vadd.f32 %v146, %v240
  %v261 = vadd.f32 %v147, %v243
  %v262 = vadd.f32 %v148, %v245
  %263 = vst [vmem:[#allocation2] sm:$0xff] %v247
  %264 = vst [vmem:[#allocation2 + $0x8] sm:$0xff] %v248
  %265 = vst [vmem:[#allocation2 + $0x10] sm:$0xff] %v249
  %266 = vst [vmem:[#allocation2 + $0x18] sm:$0xff] %v250
  %267 = vst [vmem:[#allocation2 + $0x20] sm:$0xff] %v251
  %268 = vst [vmem:[#allocation2 + $0x28] sm:$0xff] %v252
  %269 = vst [vmem:[#allocation2 + $0x30] sm:$0xff] %v253
  %270 = vst [vmem:[#allocation2 + $0x38] sm:$0xff] %v254
  %271 = vst [vmem:[#allocation2 + $0x40] sm:$0xff] %v255
  %272 = vst [vmem:[#allocation2 + $0x48] sm:$0xff] %v256
  %273 = vst [vmem:[#allocation2 + $0x50] sm:$0xff] %v257
  %274 = vst [vmem:[#allocation2 + $0x58] sm:$0xff] %v258
  %275 = vst [vmem:[#allocation2 + $0x60] sm:$0xff] %v259
  %276 = vst [vmem:[#allocation2 + $0x68] sm:$0xff] %v260
  %277 = vst [vmem:[#allocation2 + $0x70] sm:$0xff] %v261
  %278 = vst [vmem:[#allocation2 + $0x78] sm:$0xff] %v262
  // Predicated region
  $region22: #{zhugo_forward.53} parent=0 // pred_check
    %p279 = pneg %p17
  $region23: #{zhugo_forward.53} parent=0 // pred_check_branch
    %281 = sbr.rel (%p279) target = $region25
  $region24: #{zhugo_forward.53} parent=0 // pred_region
    %v282 = vld [vmem:[#allocation2] sm:$0xff]
    %v283 = vld [vmem:[#allocation2 + $0x8] sm:$0xff]
    %v284 = vld [vmem:[#allocation2 + $0x10] sm:$0xff]
    %v285 = vld [vmem:[#allocation2 + $0x18] sm:$0xff]
    %v286 = vld [vmem:[#allocation2 + $0x20] sm:$0xff]
    %v287 = vld [vmem:[#allocation2 + $0x28] sm:$0xff]
    %v288 = vld [vmem:[#allocation2 + $0x30] sm:$0xff]
    %v289 = vld [vmem:[#allocation2 + $0x38] sm:$0xff]
    %v290 = vld [vmem:[#allocation2 + $0x40] sm:$0xff]
    %v291 = vld [vmem:[#allocation2 + $0x48] sm:$0xff]
    %v292 = vld [vmem:[#allocation2 + $0x50] sm:$0xff]
    %v293 = vld [vmem:[#allocation2 + $0x58] sm:$0xff]
    %v294 = vld [vmem:[#allocation2 + $0x60] sm:$0xff]
    %v295 = vld [vmem:[#allocation2 + $0x68] sm:$0xff]
    %v296 = vld [vmem:[#allocation2 + $0x70] sm:$0xff]
    %v297 = vld [vmem:[#allocation2 + $0x78] sm:$0xff]
    %v298 = vld [vmem:[%s2] sm:$0x1]
    %v300 = vperm.slane %v298, 0
    %v302 = vmul.f32 %v282, %v300
    %v303 = vmul.f32 %v283, %v300
    %v304 = vmul.f32 %v284, %v300
    %v305 = vmul.f32 %v285, %v300
    %v306 = vmul.f32 %v286, %v300
    %v307 = vmul.f32 %v287, %v300
    %v308 = vmul.f32 %v288, %v300
    %v309 = vmul.f32 %v289, %v300
    %v310 = vmul.f32 %v290, %v300
    %v311 = vmul.f32 %v291, %v300
    %v312 = vmul.f32 %v292, %v300
    %v313 = vmul.f32 %v293, %v300
    %v314 = vmul.f32 %v294, %v300
    %v315 = vmul.f32 %v295, %v300
    %v316 = vmul.f32 %v296, %v300
    %v317 = vmul.f32 %v297, %v300
    %v318 = vld [vmem:[%s3] sm:$0x1]
    %v320 = vperm.slane %v318, 0
    %v322 = vadd.f32 %v302, %v320
    %v323 = vadd.f32 %v303, %v320
    %v324 = vadd.f32 %v304, %v320
    %v325 = vadd.f32 %v305, %v320
    %v326 = vadd.f32 %v306, %v320
    %v327 = vadd.f32 %v307, %v320
    %v328 = vadd.f32 %v308, %v320
    %v329 = vadd.f32 %v309, %v320
    %v330 = vadd.f32 %v310, %v320
    %v331 = vadd.f32 %v311, %v320
    %v332 = vadd.f32 %v312, %v320
    %v333 = vadd.f32 %v313, %v320
    %v334 = vadd.f32 %v314, %v320
    %v335 = vadd.f32 %v315, %v320
    %v336 = vadd.f32 %v316, %v320
    %v337 = vadd.f32 %v317, %v320
    %vm338 = vcmp.ge.f32.partialorder %v322, 0.0
    %vm339 = vcmp.ge.f32.partialorder %v323, 0.0
    %vm340 = vcmp.ge.f32.partialorder %v324, 0.0
    %vm341 = vcmp.ge.f32.partialorder %v325, 0.0
    %vm342 = vcmp.ge.f32.partialorder %v326, 0.0
    %vm343 = vcmp.ge.f32.partialorder %v327, 0.0
    %vm344 = vcmp.ge.f32.partialorder %v328, 0.0
    %vm345 = vcmp.ge.f32.partialorder %v329, 0.0
    %vm346 = vcmp.ge.f32.partialorder %v330, 0.0
    %vm347 = vcmp.ge.f32.partialorder %v331, 0.0
    %vm348 = vcmp.ge.f32.partialorder %v332, 0.0
    %vm349 = vcmp.ge.f32.partialorder %v333, 0.0
    %vm350 = vcmp.ge.f32.partialorder %v334, 0.0
    %vm351 = vcmp.ge.f32.partialorder %v335, 0.0
    %vm352 = vcmp.ge.f32.partialorder %v336, 0.0
    %vm353 = vcmp.ge.f32.partialorder %v337, 0.0
    %v354 = vmul.f32 %v322, 0.01
    %v355 = vmul.f32 %v323, 0.01
    %v356 = vmul.f32 %v324, 0.01
    %v357 = vmul.f32 %v325, 0.01
    %v358 = vmul.f32 %v326, 0.01
    %v359 = vmul.f32 %v327, 0.01
    %v360 = vmul.f32 %v328, 0.01
    %v361 = vmul.f32 %v329, 0.01
    %v362 = vmul.f32 %v330, 0.01
    %v363 = vmul.f32 %v331, 0.01
    %v364 = vmul.f32 %v332, 0.01
    %v365 = vmul.f32 %v333, 0.01
    %v366 = vmul.f32 %v334, 0.01
    %v367 = vmul.f32 %v335, 0.01
    %v368 = vmul.f32 %v336, 0.01
    %v369 = vmul.f32 %v337, 0.01
    %v370 = vsel %vm338, %v322, %v354
    %v371 = vsel %vm339, %v323, %v355
    %v372 = vsel %vm340, %v324, %v356
    %v373 = vsel %vm341, %v325, %v357
    %v374 = vsel %vm342, %v326, %v358
    %v375 = vsel %vm343, %v327, %v359
    %v376 = vsel %vm344, %v328, %v360
    %v377 = vsel %vm345, %v329, %v361
    %v378 = vsel %vm346, %v330, %v362
    %v379 = vsel %vm347, %v331, %v363
    %v380 = vsel %vm348, %v332, %v364
    %v381 = vsel %vm349, %v333, %v365
    %v382 = vsel %vm350, %v334, %v366
    %v383 = vsel %vm351, %v335, %v367
    %v384 = vsel %vm352, %v336, %v368
    %v385 = vsel %vm353, %v337, %v369
    %386 = vst [vmem:[%s4] sm:$0xff] %v370
    %387 = vst [vmem:[%s4 + $0x8] sm:$0xff] %v371
    %388 = vst [vmem:[%s4 + $0x10] sm:$0xff] %v372
    %389 = vst [vmem:[%s4 + $0x18] sm:$0xff] %v373
    %390 = vst [vmem:[%s4 + $0x20] sm:$0xff] %v374
    %391 = vst [vmem:[%s4 + $0x28] sm:$0xff] %v375
    %392 = vst [vmem:[%s4 + $0x30] sm:$0xff] %v376
    %393 = vst [vmem:[%s4 + $0x38] sm:$0xff] %v377
    %394 = vst [vmem:[%s4 + $0x40] sm:$0xff] %v378
    %395 = vst [vmem:[%s4 + $0x48] sm:$0xff] %v379
    %396 = vst [vmem:[%s4 + $0x50] sm:$0xff] %v380
    %397 = vst [vmem:[%s4 + $0x58] sm:$0xff] %v381
    %398 = vst [vmem:[%s4 + $0x60] sm:$0xff] %v382
    %399 = vst [vmem:[%s4 + $0x68] sm:$0xff] %v383
    %400 = vst [vmem:[%s4 + $0x70] sm:$0xff] %v384
    %401 = vst [vmem:[%s4 + $0x78] sm:$0xff] %v385
  $region25: #{zhugo_forward.53} parent=0 // pred_fallthru
    _
  // Predicated region
  $region26: #{zhugo_forward.53} parent=0 // pred_check
    _
  $region27: #{zhugo_forward.53} parent=0 // pred_check_branch
    %403 = sbr.rel (0) target = $region29
  $region28: #{zhugo_forward.53} parent=0 // pred_region
    _
  $region29: #{zhugo_forward.53} parent=0 // pred_fallthru
    _
  // Predicated region
  $region30: #{zhugo_forward.53} parent=0 // pred_check
    _
  $region31: #{zhugo_forward.53} parent=0 // pred_check_branch
    %405 = sbr.rel (0) target = $region33
  $region32: #{zhugo_forward.53} parent=0 // pred_region
    _
  $region33: #{zhugo_forward.53} parent=0 // pred_fallthru
    _

// kernel: zhugo_forward.78
$region0: #{zhugo_forward.78}
  #allocation0 [shape = 'u32[]', space=smem, size = 0x4, offset = 0x4, fixed_abs, tag = 'smem constant byte address 0x4 - core index']
  #allocation1 [shape = 'u32[72,128]{1,0:T(1,128)}', space=vmem, size = 0x9000, scoped, tag = 'internal scratch']
  #allocation2 [shape = 'f32[8,128]{1,0:T(8,128)}', space=vmem, size = 0x1000, scoped, tag = 'scratch operand']
  %s0 = inlined_call_operand.vmem [shape: f32[8,128], index: 0, kind: input, shape index: {}]
  %s1 = inlined_call_operand.vmem [shape: f32[128,128], index: 1, kind: input, shape index: {}]
  %s2 = inlined_call_operand.vmem [shape: f32[1,128], index: 2, kind: input, shape index: {}]
  %s3 = inlined_call_operand.vmem [shape: f32[1,128], index: 3, kind: input, shape index: {}]
  %s4 = inlined_call_operand.vmem [shape: f32[1,128], index: 4, kind: input, shape index: {}]
  %s5 = inlined_call_operand.vmem [shape: f32[8,128], index: 5, kind: output, shape index: {}]
  %s6 = sld [smem:[#allocation0]]
  $region38: #{zhugo_forward.78} parent=0
    _
  %s8 = ssub.s32 1, %s6
  %s9 = scalar_select 0, %s8, %s6
  // Predicated region
  $region2: #{zhugo_forward.78} parent=0 // pred_check
    _
  $region3: #{zhugo_forward.78} parent=0 // pred_check_branch
    %11 = sbr.rel (0) target = $region5
  $region4: #{zhugo_forward.78} parent=0 // pred_region
    _
  $region5: #{zhugo_forward.78} parent=0 // pred_fallthru
    _
  // Predicated region
  $region6: #{zhugo_forward.78} parent=0 // pred_check
    _
  $region7: #{zhugo_forward.78} parent=0 // pred_check_branch
    %13 = sbr.rel (0) target = $region9
  $region8: #{zhugo_forward.78} parent=0 // pred_region
    _
  $region9: #{zhugo_forward.78} parent=0 // pred_fallthru
    _
  // Predicated region
  $region10: #{zhugo_forward.78} parent=0 // pred_check
    _
  $region11: #{zhugo_forward.78} parent=0 // pred_check_branch
    %15 = sbr.rel (0) target = $region13
  $region12: #{zhugo_forward.78} parent=0 // pred_region
    _
  $region13: #{zhugo_forward.78} parent=0 // pred_fallthru
    _
  // Predicated region
  $region14: #{zhugo_forward.78} parent=0 // pred_check
    _
  $region15: #{zhugo_forward.78} parent=0 // pred_check_branch
    %17 = sbr.rel (0) target = $region17
  $region16: #{zhugo_forward.78} parent=0 // pred_region
    _
  $region17: #{zhugo_forward.78} parent=0 // pred_fallthru
    _
  // Predicated region
  $region18: #{zhugo_forward.78} parent=0 // pred_check
    _
  $region19: #{zhugo_forward.78} parent=0 // pred_check_branch
    %19 = sbr.rel (0) target = $region21
  $region20: #{zhugo_forward.78} parent=0 // pred_region
    _
  $region21: #{zhugo_forward.78} parent=0 // pred_fallthru
    _
  %p20 = scmp.eq.s32.totalorder 0, 0
  // Predicated region
  $region22: #{zhugo_forward.78} parent=0 // pred_check
    %p21 = pneg %p20
  $region23: #{zhugo_forward.78} parent=0 // pred_check_branch
    %23 = sbr.rel (%p21) target = $region25
  $region24: #{zhugo_forward.78} parent=0 // pred_region
    %24 = vst [vmem:[#allocation2] sm:$0xff] 0.0
  $region25: #{zhugo_forward.78} parent=0 // pred_fallthru
    _
  %v25 = vld [vmem:[%s0] sm:$0xff]
  %v26 = vld [vmem:[%s2] sm:$0x1]
  %v28 = vperm.slane %v26, 0
  %v30 = vmul.f32 %v25, %v28
  %v31 = vld [vmem:[%s3] sm:$0x1]
  %v33 = vperm.slane %v31, 0
  %v35 = vadd.f32 %v30, %v33
  %vm36 = vcmp.ge.f32.partialorder %v35, 0.0
  %v37 = vmul.f32 %v35, 0.01
  %v38 = vsel %vm36, %v35, %v37
  %v39 = vld [vmem:[%s1] sm:$0xff]
  %v40 = vld [vmem:[%s1 + $0x8] sm:$0xff]
  %v41 = vld [vmem:[%s1 + $0x10] sm:$0xff]
  %v42 = vld [vmem:[%s1 + $0x18] sm:$0xff]
  %v43 = vld [vmem:[%s1 + $0x20] sm:$0xff]
  %v44 = vld [vmem:[%s1 + $0x28] sm:$0xff]
  %v45 = vld [vmem:[%s1 + $0x30] sm:$0xff]
  %v46 = vld [vmem:[%s1 + $0x38] sm:$0xff]
  %v47 = vld [vmem:[%s1 + $0x40] sm:$0xff]
  %v48 = vld [vmem:[%s1 + $0x48] sm:$0xff]
  %v49 = vld [vmem:[%s1 + $0x50] sm:$0xff]
  %v50 = vld [vmem:[%s1 + $0x58] sm:$0xff]
  %v51 = vld [vmem:[%s1 + $0x60] sm:$0xff]
  %v52 = vld [vmem:[%s1 + $0x68] sm:$0xff]
  %v53 = vld [vmem:[%s1 + $0x70] sm:$0xff]
  %v54 = vld [vmem:[%s1 + $0x78] sm:$0xff]
  %v55 = vpack.c.bf16 %v38, %v38
  %v56 = vpack.c.bf16 %v40, %v39
  %v57 = vpack.c.bf16 %v42, %v41
  %v58 = vpack.c.bf16 %v44, %v43
  %v59 = vpack.c.bf16 %v46, %v45
  %v60 = vpack.c.bf16 %v48, %v47
  %v61 = vpack.c.bf16 %v50, %v49
  %v62 = vpack.c.bf16 %v52, %v51
  %v63 = vpack.c.bf16 %v54, %v53
  %v64 = vld [vmem:[#allocation2] sm:$0xff]
  %65 = vmatpush.bf16.msra.mxu0 %v63
  %66 = vmatpush.bf16.msra.mxu0 %v62
  %67 = vmatpush.bf16.msra.mxu0 %v61
  %68 = vmatpush.bf16.msra.mxu0 %v60
  %69 = vmatpush.bf16.msra.mxu0 %v59
  %70 = vmatpush.bf16.msra.mxu0 %v58
  %71 = vmatpush.bf16.msra.mxu0 %v57
  %72 = vmatpush.bf16.msra.mxu0 %v56
  %73 = vmatmul.bf16.gmra.mxu0 %v55
  %v74 = vpop.f32.mrf.mxu0
  %v75 = vadd.f32 0.0, %v74
  %v76 = vpop.f32.mrf.mxu0
  %77 = vdwg.mxu0
  %v78 = vadd.f32 %v64, %v75
  %79 = vst [vmem:[#allocation2] sm:$0xff] %v78
  // Predicated region
  $region26: #{zhugo_forward.78} parent=0 // pred_check
    %p80 = pneg %p20
  $region27: #{zhugo_forward.78} parent=0 // pred_check_branch
    %82 = sbr.rel (%p80) target = $region29
  $region28: #{zhugo_forward.78} parent=0 // pred_region
    %v83 = vld [vmem:[#allocation2] sm:$0xff]
    %v84 = vld [vmem:[%s4] sm:$0x1]
    %v86 = vperm.slane %v84, 0
    %v88 = vadd.f32 %v83, %v86
    %vm89 = vcmp.ge.f32.partialorder %v88, 0.0
    %v90 = vmul.f32 %v88, 0.01
    %v91 = vsel %vm89, %v88, %v90
    %92 = vst [vmem:[%s5] sm:$0xff] %v91
  $region29: #{zhugo_forward.78} parent=0 // pred_fallthru
    _
  // Predicated region
  $region30: #{zhugo_forward.78} parent=0 // pred_check
    _
  $region31: #{zhugo_forward.78} parent=0 // pred_check_branch
    %94 = sbr.rel (0) target = $region33
  $region32: #{zhugo_forward.78} parent=0 // pred_region
    _
  $region33: #{zhugo_forward.78} parent=0 // pred_fallthru
    _
  // Predicated region
  $region34: #{zhugo_forward.78} parent=0 // pred_check
    _
  $region35: #{zhugo_forward.78} parent=0 // pred_check_branch
    %96 = sbr.rel (0) target = $region37
  $region36: #{zhugo_forward.78} parent=0 // pred_region
    _
  $region37: #{zhugo_forward.78} parent=0 // pred_fallthru
    _

// kernel: zhugo_forward.79
$region0: #{zhugo_forward.79}
  #allocation0 [shape = 'u32[]', space=smem, size = 0x4, offset = 0x4, fixed_abs, tag = 'smem constant byte address 0x4 - core index']
  #allocation1 [shape = 'u32[72,128]{1,0:T(1,128)}', space=vmem, size = 0x9000, scoped, tag = 'internal scratch']
  #allocation2 [shape = 'f32[8,128]{1,0:T(8,128)}', space=vmem, size = 0x1000, scoped, tag = 'scratch operand']
  %s0 = inlined_call_operand.vmem [shape: f32[8,128], index: 0, kind: input, shape index: {}]
  %s1 = inlined_call_operand.vmem [shape: f32[128,128], index: 1, kind: input, shape index: {}]
  %s2 = inlined_call_operand.vmem [shape: f32[1,128], index: 2, kind: input, shape index: {}]
  %s3 = inlined_call_operand.vmem [shape: f32[8,128], index: 3, kind: output, shape index: {}]
  %s4 = sld [smem:[#allocation0]]
  $region30: #{zhugo_forward.79} parent=0
    _
  %s6 = ssub.s32 1, %s4
  %s7 = scalar_select 0, %s6, %s4
  // Predicated region
  $region2: #{zhugo_forward.79} parent=0 // pred_check
    _
  $region3: #{zhugo_forward.79} parent=0 // pred_check_branch
    %9 = sbr.rel (0) target = $region5
  $region4: #{zhugo_forward.79} parent=0 // pred_region
    _
  $region5: #{zhugo_forward.79} parent=0 // pred_fallthru
    _
  // Predicated region
  $region6: #{zhugo_forward.79} parent=0 // pred_check
    _
  $region7: #{zhugo_forward.79} parent=0 // pred_check_branch
    %11 = sbr.rel (0) target = $region9
  $region8: #{zhugo_forward.79} parent=0 // pred_region
    _
  $region9: #{zhugo_forward.79} parent=0 // pred_fallthru
    _
  // Predicated region
  $region10: #{zhugo_forward.79} parent=0 // pred_check
    _
  $region11: #{zhugo_forward.79} parent=0 // pred_check_branch
    %13 = sbr.rel (0) target = $region13
  $region12: #{zhugo_forward.79} parent=0 // pred_region
    _
  $region13: #{zhugo_forward.79} parent=0 // pred_fallthru
    _
  %p14 = scmp.eq.s32.totalorder 0, 0
  // Predicated region
  $region14: #{zhugo_forward.79} parent=0 // pred_check
    %p15 = pneg %p14
  $region15: #{zhugo_forward.79} parent=0 // pred_check_branch
    %17 = sbr.rel (%p15) target = $region17
  $region16: #{zhugo_forward.79} parent=0 // pred_region
    %18 = vst [vmem:[#allocation2] sm:$0xff] 0.0
  $region17: #{zhugo_forward.79} parent=0 // pred_fallthru
    _
  %v19 = vld [vmem:[%s0] sm:$0xff]
  %v20 = vld [vmem:[%s1] sm:$0xff]
  %v21 = vld [vmem:[%s1 + $0x8] sm:$0xff]
  %v22 = vld [vmem:[%s1 + $0x10] sm:$0xff]
  %v23 = vld [vmem:[%s1 + $0x18] sm:$0xff]
  %v24 = vld [vmem:[%s1 + $0x20] sm:$0xff]
  %v25 = vld [vmem:[%s1 + $0x28] sm:$0xff]
  %v26 = vld [vmem:[%s1 + $0x30] sm:$0xff]
  %v27 = vld [vmem:[%s1 + $0x38] sm:$0xff]
  %v28 = vld [vmem:[%s1 + $0x40] sm:$0xff]
  %v29 = vld [vmem:[%s1 + $0x48] sm:$0xff]
  %v30 = vld [vmem:[%s1 + $0x50] sm:$0xff]
  %v31 = vld [vmem:[%s1 + $0x58] sm:$0xff]
  %v32 = vld [vmem:[%s1 + $0x60] sm:$0xff]
  %v33 = vld [vmem:[%s1 + $0x68] sm:$0xff]
  %v34 = vld [vmem:[%s1 + $0x70] sm:$0xff]
  %v35 = vld [vmem:[%s1 + $0x78] sm:$0xff]
  %v36 = vld [vmem:[#allocation2] sm:$0xff]
  %37 = vmatpush.msra.mxu0 %v35
  %38 = vmatpush.msra.mxu0 %v34
  %39 = vmatpush.msra.mxu0 %v33
  %40 = vmatpush.msra.mxu0 %v32
  %41 = vmatpush.msra.mxu0 %v31
  %42 = vmatpush.msra.mxu0 %v30
  %43 = vmatpush.msra.mxu0 %v29
  %44 = vmatpush.msra.mxu0 %v28
  %45 = vmatpush.msra.mxu0 %v27
  %46 = vmatpush.msra.mxu0 %v26
  %47 = vmatpush.msra.mxu0 %v25
  %48 = vmatpush.msra.mxu0 %v24
  %49 = vmatpush.msra.mxu0 %v23
  %50 = vmatpush.msra.mxu0 %v22
  %51 = vmatpush.msra.mxu0 %v21
  %52 = vmatpush.msra.mxu0 %v20
  %53 = vmatmul.f32.gmra.mxu0 %v19
  %v54 = vpop.f32.mrf.mxu0
  %v55 = vadd.f32 0.0, %v54
  %56 = vdwg.mxu0
  %v57 = vadd.f32 %v36, %v55
  %58 = vst [vmem:[#allocation2] sm:$0xff] %v57
  // Predicated region
  $region18: #{zhugo_forward.79} parent=0 // pred_check
    %p59 = pneg %p14
  $region19: #{zhugo_forward.79} parent=0 // pred_check_branch
    %61 = sbr.rel (%p59) target = $region21
  $region20: #{zhugo_forward.79} parent=0 // pred_region
    %v62 = vld [vmem:[#allocation2] sm:$0xff]
    %v63 = vld [vmem:[%s2] sm:$0x1]
    %v65 = vperm.slane %v63, 0
    %v67 = vadd.f32 %v62, %v65
    %68 = vst [vmem:[%s3] sm:$0xff] %v67
  $region21: #{zhugo_forward.79} parent=0 // pred_fallthru
    _
  // Predicated region
  $region22: #{zhugo_forward.79} parent=0 // pred_check
    _
  $region23: #{zhugo_forward.79} parent=0 // pred_check_branch
    %70 = sbr.rel (0) target = $region25
  $region24: #{zhugo_forward.79} parent=0 // pred_region
    _
  $region25: #{zhugo_forward.79} parent=0 // pred_fallthru
    _
  // Predicated region
  $region26: #{zhugo_forward.79} parent=0 // pred_check
    _
  $region27: #{zhugo_forward.79} parent=0 // pred_check_branch
    %72 = sbr.rel (0) target = $region29
  $region28: #{zhugo_forward.79} parent=0 // pred_region
    _
  $region29: #{zhugo_forward.79} parent=0 // pred_fallthru
    _

// kernel: zhugo_forward.68
$region0: #{zhugo_forward.68}
  #allocation0 [shape = 'u32[]', space=smem, size = 0x4, offset = 0x4, fixed_abs, tag = 'smem constant byte address 0x4 - core index']
  #allocation1 [shape = 'u32[72,128]{1,0:T(1,128)}', space=vmem, size = 0x9000, scoped, tag = 'internal scratch']
  #allocation2 [shape = 'f32[128,128]{1,0:T(8,128)}', space=vmem, size = 0x10000, scoped, tag = 'scratch operand']
  %s0 = inlined_call_operand.vmem [shape: f32[128,128], index: 0, kind: input, shape index: {}]
  %s1 = inlined_call_operand.vmem [shape: f32[128,128], index: 1, kind: input, shape index: {}]
  %s2 = inlined_call_operand.vmem [shape: f32[1,128], index: 2, kind: input, shape index: {}]
  %s3 = inlined_call_operand.vmem [shape: f32[1,128], index: 3, kind: input, shape index: {}]
  %s4 = inlined_call_operand.vmem [shape: f32[1,128], index: 4, kind: input, shape index: {}]
  %s5 = inlined_call_operand.vmem [shape: f32[128,128], index: 5, kind: output, shape index: {}]
  %s6 = sld [smem:[#allocation0]]
  $region38: #{zhugo_forward.68} parent=0
    _
  %s8 = ssub.s32 1, %s6
  %s9 = scalar_select 0, %s8, %s6
  // Predicated region
  $region2: #{zhugo_forward.68} parent=0 // pred_check
    _
  $region3: #{zhugo_forward.68} parent=0 // pred_check_branch
    %11 = sbr.rel (0) target = $region5
  $region4: #{zhugo_forward.68} parent=0 // pred_region
    _
  $region5: #{zhugo_forward.68} parent=0 // pred_fallthru
    _
  // Predicated region
  $region6: #{zhugo_forward.68} parent=0 // pred_check
    _
  $region7: #{zhugo_forward.68} parent=0 // pred_check_branch
    %13 = sbr.rel (0) target = $region9
  $region8: #{zhugo_forward.68} parent=0 // pred_region
    _
  $region9: #{zhugo_forward.68} parent=0 // pred_fallthru
    _
  // Predicated region
  $region10: #{zhugo_forward.68} parent=0 // pred_check
    _
  $region11: #{zhugo_forward.68} parent=0 // pred_check_branch
    %15 = sbr.rel (0) target = $region13
  $region12: #{zhugo_forward.68} parent=0 // pred_region
    _
  $region13: #{zhugo_forward.68} parent=0 // pred_fallthru
    _
  // Predicated region
  $region14: #{zhugo_forward.68} parent=0 // pred_check
    _
  $region15: #{zhugo_forward.68} parent=0 // pred_check_branch
    %17 = sbr.rel (0) target = $region17
  $region16: #{zhugo_forward.68} parent=0 // pred_region
    _
  $region17: #{zhugo_forward.68} parent=0 // pred_fallthru
    _
  // Predicated region
  $region18: #{zhugo_forward.68} parent=0 // pred_check
    _
  $region19: #{zhugo_forward.68} parent=0 // pred_check_branch
    %19 = sbr.rel (0) target = $region21
  $region20: #{zhugo_forward.68} parent=0 // pred_region
    _
  $region21: #{zhugo_forward.68} parent=0 // pred_fallthru
    _
  %p20 = scmp.eq.s32.totalorder 0, 0
  // Predicated region
  $region22: #{zhugo_forward.68} parent=0 // pred_check
    %p21 = pneg %p20
  $region23: #{zhugo_forward.68} parent=0 // pred_check_branch
    %23 = sbr.rel (%p21) target = $region25
  $region24: #{zhugo_forward.68} parent=0 // pred_region
    %24 = vst [vmem:[#allocation2] sm:$0xff] 0.0
    %25 = vst [vmem:[#allocation2 + $0x8] sm:$0xff] 0.0
    %26 = vst [vmem:[#allocation2 + $0x10] sm:$0xff] 0.0
    %27 = vst [vmem:[#allocation2 + $0x18] sm:$0xff] 0.0
    %28 = vst [vmem:[#allocation2 + $0x20] sm:$0xff] 0.0
    %29 = vst [vmem:[#allocation2 + $0x28] sm:$0xff] 0.0
    %30 = vst [vmem:[#allocation2 + $0x30] sm:$0xff] 0.0
    %31 = vst [vmem:[#allocation2 + $0x38] sm:$0xff] 0.0
    %32 = vst [vmem:[#allocation2 + $0x40] sm:$0xff] 0.0
    %33 = vst [vmem:[#allocation2 + $0x48] sm:$0xff] 0.0
    %34 = vst [vmem:[#allocation2 + $0x50] sm:$0xff] 0.0
    %35 = vst [vmem:[#allocation2 + $0x58] sm:$0xff] 0.0
    %36 = vst [vmem:[#allocation2 + $0x60] sm:$0xff] 0.0
    %37 = vst [vmem:[#allocation2 + $0x68] sm:$0xff] 0.0
    %38 = vst [vmem:[#allocation2 + $0x70] sm:$0xff] 0.0
    %39 = vst [vmem:[#allocation2 + $0x78] sm:$0xff] 0.0
  $region25: #{zhugo_forward.68} parent=0 // pred_fallthru
    _
  %v40 = vld [vmem:[%s0] sm:$0xff]
  %v41 = vld [vmem:[%s0 + $0x8] sm:$0xff]
  %v42 = vld [vmem:[%s0 + $0x10] sm:$0xff]
  %v43 = vld [vmem:[%s0 + $0x18] sm:$0xff]
  %v44 = vld [vmem:[%s0 + $0x20] sm:$0xff]
  %v45 = vld [vmem:[%s0 + $0x28] sm:$0xff]
  %v46 = vld [vmem:[%s0 + $0x30] sm:$0xff]
  %v47 = vld [vmem:[%s0 + $0x38] sm:$0xff]
  %v48 = vld [vmem:[%s0 + $0x40] sm:$0xff]
  %v49 = vld [vmem:[%s0 + $0x48] sm:$0xff]
  %v50 = vld [vmem:[%s0 + $0x50] sm:$0xff]
  %v51 = vld [vmem:[%s0 + $0x58] sm:$0xff]
  %v52 = vld [vmem:[%s0 + $0x60] sm:$0xff]
  %v53 = vld [vmem:[%s0 + $0x68] sm:$0xff]
  %v54 = vld [vmem:[%s0 + $0x70] sm:$0xff]
  %v55 = vld [vmem:[%s0 + $0x78] sm:$0xff]
  %v56 = vld [vmem:[%s2] sm:$0x1]
  %v58 = vperm.slane %v56, 0
  %v60 = vmul.f32 %v40, %v58
  %v61 = vmul.f32 %v41, %v58
  %v62 = vmul.f32 %v42, %v58
  %v63 = vmul.f32 %v43, %v58
  %v64 = vmul.f32 %v44, %v58
  %v65 = vmul.f32 %v45, %v58
  %v66 = vmul.f32 %v46, %v58
  %v67 = vmul.f32 %v47, %v58
  %v68 = vmul.f32 %v48, %v58
  %v69 = vmul.f32 %v49, %v58
  %v70 = vmul.f32 %v50, %v58
  %v71 = vmul.f32 %v51, %v58
  %v72 = vmul.f32 %v52, %v58
  %v73 = vmul.f32 %v53, %v58
  %v74 = vmul.f32 %v54, %v58
  %v75 = vmul.f32 %v55, %v58
  %v76 = vld [vmem:[%s3] sm:$0x1]
  %v78 = vperm.slane %v76, 0
  %v80 = vadd.f32 %v60, %v78
  %v81 = vadd.f32 %v61, %v78
  %v82 = vadd.f32 %v62, %v78
  %v83 = vadd.f32 %v63, %v78
  %v84 = vadd.f32 %v64, %v78
  %v85 = vadd.f32 %v65, %v78
  %v86 = vadd.f32 %v66, %v78
  %v87 = vadd.f32 %v67, %v78
  %v88 = vadd.f32 %v68, %v78
  %v89 = vadd.f32 %v69, %v78
  %v90 = vadd.f32 %v70, %v78
  %v91 = vadd.f32 %v71, %v78
  %v92 = vadd.f32 %v72, %v78
  %v93 = vadd.f32 %v73, %v78
  %v94 = vadd.f32 %v74, %v78
  %v95 = vadd.f32 %v75, %v78
  %vm96 = vcmp.ge.f32.partialorder %v80, 0.0
  %vm97 = vcmp.ge.f32.partialorder %v81, 0.0
  %vm98 = vcmp.ge.f32.partialorder %v82, 0.0
  %vm99 = vcmp.ge.f32.partialorder %v83, 0.0
  %vm100 = vcmp.ge.f32.partialorder %v84, 0.0
  %vm101 = vcmp.ge.f32.partialorder %v85, 0.0
  %vm102 = vcmp.ge.f32.partialorder %v86, 0.0
  %vm103 = vcmp.ge.f32.partialorder %v87, 0.0
  %vm104 = vcmp.ge.f32.partialorder %v88, 0.0
  %vm105 = vcmp.ge.f32.partialorder %v89, 0.0
  %vm106 = vcmp.ge.f32.partialorder %v90, 0.0
  %vm107 = vcmp.ge.f32.partialorder %v91, 0.0
  %vm108 = vcmp.ge.f32.partialorder %v92, 0.0
  %vm109 = vcmp.ge.f32.partialorder %v93, 0.0
  %vm110 = vcmp.ge.f32.partialorder %v94, 0.0
  %vm111 = vcmp.ge.f32.partialorder %v95, 0.0
  %v112 = vmul.f32 %v80, 0.01
  %v113 = vmul.f32 %v81, 0.01
  %v114 = vmul.f32 %v82, 0.01
  %v115 = vmul.f32 %v83, 0.01
  %v116 = vmul.f32 %v84, 0.01
  %v117 = vmul.f32 %v85, 0.01
  %v118 = vmul.f32 %v86, 0.01
  %v119 = vmul.f32 %v87, 0.01
  %v120 = vmul.f32 %v88, 0.01
  %v121 = vmul.f32 %v89, 0.01
  %v122 = vmul.f32 %v90, 0.01
  %v123 = vmul.f32 %v91, 0.01
  %v124 = vmul.f32 %v92, 0.01
  %v125 = vmul.f32 %v93, 0.01
  %v126 = vmul.f32 %v94, 0.01
  %v127 = vmul.f32 %v95, 0.01
  %v128 = vsel %vm96, %v80, %v112
  %v129 = vsel %vm97, %v81, %v113
  %v130 = vsel %vm98, %v82, %v114
  %v131 = vsel %vm99, %v83, %v115
  %v132 = vsel %vm100, %v84, %v116
  %v133 = vsel %vm101, %v85, %v117
  %v134 = vsel %vm102, %v86, %v118
  %v135 = vsel %vm103, %v87, %v119
  %v136 = vsel %vm104, %v88, %v120
  %v137 = vsel %vm105, %v89, %v121
  %v138 = vsel %vm106, %v90, %v122
  %v139 = vsel %vm107, %v91, %v123
  %v140 = vsel %vm108, %v92, %v124
  %v141 = vsel %vm109, %v93, %v125
  %v142 = vsel %vm110, %v94, %v126
  %v143 = vsel %vm111, %v95, %v127
  %v144 = vld [vmem:[%s1] sm:$0xff]
  %v145 = vld [vmem:[%s1 + $0x8] sm:$0xff]
  %v146 = vld [vmem:[%s1 + $0x10] sm:$0xff]
  %v147 = vld [vmem:[%s1 + $0x18] sm:$0xff]
  %v148 = vld [vmem:[%s1 + $0x20] sm:$0xff]
  %v149 = vld [vmem:[%s1 + $0x28] sm:$0xff]
  %v150 = vld [vmem:[%s1 + $0x30] sm:$0xff]
  %v151 = vld [vmem:[%s1 + $0x38] sm:$0xff]
  %v152 = vld [vmem:[%s1 + $0x40] sm:$0xff]
  %v153 = vld [vmem:[%s1 + $0x48] sm:$0xff]
  %v154 = vld [vmem:[%s1 + $0x50] sm:$0xff]
  %v155 = vld [vmem:[%s1 + $0x58] sm:$0xff]
  %v156 = vld [vmem:[%s1 + $0x60] sm:$0xff]
  %v157 = vld [vmem:[%s1 + $0x68] sm:$0xff]
  %v158 = vld [vmem:[%s1 + $0x70] sm:$0xff]
  %v159 = vld [vmem:[%s1 + $0x78] sm:$0xff]
  %v160 = vpack.c.bf16 %v129, %v128
  %v161 = vpack.c.bf16 %v131, %v130
  %v162 = vpack.c.bf16 %v133, %v132
  %v163 = vpack.c.bf16 %v135, %v134
  %v164 = vpack.c.bf16 %v137, %v136
  %v165 = vpack.c.bf16 %v139, %v138
  %v166 = vpack.c.bf16 %v141, %v140
  %v167 = vpack.c.bf16 %v143, %v142
  %v168 = vpack.c.bf16 %v145, %v144
  %v169 = vpack.c.bf16 %v147, %v146
  %v170 = vpack.c.bf16 %v149, %v148
  %v171 = vpack.c.bf16 %v151, %v150
  %v172 = vpack.c.bf16 %v153, %v152
  %v173 = vpack.c.bf16 %v155, %v154
  %v174 = vpack.c.bf16 %v157, %v156
  %v175 = vpack.c.bf16 %v159, %v158
  %v176 = vld [vmem:[#allocation2] sm:$0xff]
  %v177 = vld [vmem:[#allocation2 + $0x8] sm:$0xff]
  %v178 = vld [vmem:[#allocation2 + $0x10] sm:$0xff]
  %v179 = vld [vmem:[#allocation2 + $0x18] sm:$0xff]
  %v180 = vld [vmem:[#allocation2 + $0x20] sm:$0xff]
  %v181 = vld [vmem:[#allocation2 + $0x28] sm:$0xff]
  %v182 = vld [vmem:[#allocation2 + $0x30] sm:$0xff]
  %v183 = vld [vmem:[#allocation2 + $0x38] sm:$0xff]
  %v184 = vld [vmem:[#allocation2 + $0x40] sm:$0xff]
  %v185 = vld [vmem:[#allocation2 + $0x48] sm:$0xff]
  %v186 = vld [vmem:[#allocation2 + $0x50] sm:$0xff]
  %v187 = vld [vmem:[#allocation2 + $0x58] sm:$0xff]
  %v188 = vld [vmem:[#allocation2 + $0x60] sm:$0xff]
  %v189 = vld [vmem:[#allocation2 + $0x68] sm:$0xff]
  %v190 = vld [vmem:[#allocation2 + $0x70] sm:$0xff]
  %v191 = vld [vmem:[#allocation2 + $0x78] sm:$0xff]
  %192 = vmatpush.bf16.msra.mxu0 %v175
  %193 = vmatpush.bf16.msra.mxu0 %v174
  %194 = vmatpush.bf16.msra.mxu0 %v173
  %195 = vmatpush.bf16.msra.mxu0 %v172
  %196 = vmatpush.bf16.msra.mxu0 %v171
  %197 = vmatpush.bf16.msra.mxu0 %v170
  %198 = vmatpush.bf16.msra.mxu0 %v169
  %199 = vmatpush.bf16.msra.mxu0 %v168
  %200 = vmatmul.bf16.gmra.mxu0 %v160
  %v201 = vpop.f32.mrf.mxu0
  %v202 = vadd.f32 0.0, %v201
  %v203 = vpop.f32.mrf.mxu0
  %v204 = vadd.f32 0.0, %v203
  %205 = vmatmul.bf16.gmra.mxu0 %v161
  %v206 = vpop.f32.mrf.mxu0
  %v207 = vadd.f32 0.0, %v206
  %v208 = vpop.f32.mrf.mxu0
  %v209 = vadd.f32 0.0, %v208
  %210 = vmatmul.bf16.gmra.mxu0 %v162
  %v211 = vpop.f32.mrf.mxu0
  %v212 = vadd.f32 0.0, %v211
  %v213 = vpop.f32.mrf.mxu0
  %v214 = vadd.f32 0.0, %v213
  %215 = vmatmul.bf16.gmra.mxu0 %v163
  %v216 = vpop.f32.mrf.mxu0
  %v217 = vadd.f32 0.0, %v216
  %v218 = vpop.f32.mrf.mxu0
  %v219 = vadd.f32 0.0, %v218
  %220 = vmatmul.bf16.gmra.mxu0 %v164
  %v221 = vpop.f32.mrf.mxu0
  %v222 = vadd.f32 0.0, %v221
  %v223 = vpop.f32.mrf.mxu0
  %v224 = vadd.f32 0.0, %v223
  %225 = vmatmul.bf16.gmra.mxu0 %v165
  %v226 = vpop.f32.mrf.mxu0
  %v227 = vadd.f32 0.0, %v226
  %v228 = vpop.f32.mrf.mxu0
  %v229 = vadd.f32 0.0, %v228
  %230 = vmatmul.bf16.gmra.mxu0 %v166
  %v231 = vpop.f32.mrf.mxu0
  %v232 = vadd.f32 0.0, %v231
  %v233 = vpop.f32.mrf.mxu0
  %v234 = vadd.f32 0.0, %v233
  %235 = vmatmul.bf16.gmra.mxu0 %v167
  %v236 = vpop.f32.mrf.mxu0
  %v237 = vadd.f32 0.0, %v236
  %v238 = vpop.f32.mrf.mxu0
  %v239 = vadd.f32 0.0, %v238
  %240 = vdwg.mxu0
  %v241 = vadd.f32 %v176, %v202
  %v242 = vadd.f32 %v177, %v204
  %v243 = vadd.f32 %v178, %v207
  %v244 = vadd.f32 %v179, %v209
  %v245 = vadd.f32 %v180, %v212
  %v246 = vadd.f32 %v181, %v214
  %v247 = vadd.f32 %v182, %v217
  %v248 = vadd.f32 %v183, %v219
  %v249 = vadd.f32 %v184, %v222
  %v250 = vadd.f32 %v185, %v224
  %v251 = vadd.f32 %v186, %v227
  %v252 = vadd.f32 %v187, %v229
  %v253 = vadd.f32 %v188, %v232
  %v254 = vadd.f32 %v189, %v234
  %v255 = vadd.f32 %v190, %v237
  %v256 = vadd.f32 %v191, %v239
  %257 = vst [vmem:[#allocation2] sm:$0xff] %v241
  %258 = vst [vmem:[#allocation2 + $0x8] sm:$0xff] %v242
  %259 = vst [vmem:[#allocation2 + $0x10] sm:$0xff] %v243
  %260 = vst [vmem:[#allocation2 + $0x18] sm:$0xff] %v244
  %261 = vst [vmem:[#allocation2 + $0x20] sm:$0xff] %v245
  %262 = vst [vmem:[#allocation2 + $0x28] sm:$0xff] %v246
  %263 = vst [vmem:[#allocation2 + $0x30] sm:$0xff] %v247
  %264 = vst [vmem:[#allocation2 + $0x38] sm:$0xff] %v248
  %265 = vst [vmem:[#allocation2 + $0x40] sm:$0xff] %v249
  %266 = vst [vmem:[#allocation2 + $0x48] sm:$0xff] %v250
  %267 = vst [vmem:[#allocation2 + $0x50] sm:$0xff] %v251
  %268 = vst [vmem:[#allocation2 + $0x58] sm:$0xff] %v252
  %269 = vst [vmem:[#allocation2 + $0x60] sm:$0xff] %v253
  %270 = vst [vmem:[#allocation2 + $0x68] sm:$0xff] %v254
  %271 = vst [vmem:[#allocation2 + $0x70] sm:$0xff] %v255
  %272 = vst [vmem:[#allocation2 + $0x78] sm:$0xff] %v256
  // Predicated region
  $region26: #{zhugo_forward.68} parent=0 // pred_check
    %p273 = pneg %p20
  $region27: #{zhugo_forward.68} parent=0 // pred_check_branch
    %275 = sbr.rel (%p273) target = $region29
  $region28: #{zhugo_forward.68} parent=0 // pred_region
    %v276 = vld [vmem:[#allocation2] sm:$0xff]
    %v277 = vld [vmem:[#allocation2 + $0x8] sm:$0xff]
    %v278 = vld [vmem:[#allocation2 + $0x10] sm:$0xff]
    %v279 = vld [vmem:[#allocation2 + $0x18] sm:$0xff]
    %v280 = vld [vmem:[#allocation2 + $0x20] sm:$0xff]
    %v281 = vld [vmem:[#allocation2 + $0x28] sm:$0xff]
    %v282 = vld [vmem:[#allocation2 + $0x30] sm:$0xff]
    %v283 = vld [vmem:[#allocation2 + $0x38] sm:$0xff]
    %v284 = vld [vmem:[#allocation2 + $0x40] sm:$0xff]
    %v285 = vld [vmem:[#allocation2 + $0x48] sm:$0xff]
    %v286 = vld [vmem:[#allocation2 + $0x50] sm:$0xff]
    %v287 = vld [vmem:[#allocation2 + $0x58] sm:$0xff]
    %v288 = vld [vmem:[#allocation2 + $0x60] sm:$0xff]
    %v289 = vld [vmem:[#allocation2 + $0x68] sm:$0xff]
    %v290 = vld [vmem:[#allocation2 + $0x70] sm:$0xff]
    %v291 = vld [vmem:[#allocation2 + $0x78] sm:$0xff]
    %v292 = vld [vmem:[%s4] sm:$0x1]
    %v294 = vperm.slane %v292, 0
    %v296 = vadd.f32 %v276, %v294
    %v297 = vadd.f32 %v277, %v294
    %v298 = vadd.f32 %v278, %v294
    %v299 = vadd.f32 %v279, %v294
    %v300 = vadd.f32 %v280, %v294
    %v301 = vadd.f32 %v281, %v294
    %v302 = vadd.f32 %v282, %v294
    %v303 = vadd.f32 %v283, %v294
    %v304 = vadd.f32 %v284, %v294
    %v305 = vadd.f32 %v285, %v294
    %v306 = vadd.f32 %v286, %v294
    %v307 = vadd.f32 %v287, %v294
    %v308 = vadd.f32 %v288, %v294
    %v309 = vadd.f32 %v289, %v294
    %v310 = vadd.f32 %v290, %v294
    %v311 = vadd.f32 %v291, %v294
    %312 = vst [vmem:[%s5] sm:$0xff] %v296
    %313 = vst [vmem:[%s5 + $0x8] sm:$0xff] %v297
    %314 = vst [vmem:[%s5 + $0x10] sm:$0xff] %v298
    %315 = vst [vmem:[%s5 + $0x18] sm:$0xff] %v299
    %316 = vst [vmem:[%s5 + $0x20] sm:$0xff] %v300
    %317 = vst [vmem:[%s5 + $0x28] sm:$0xff] %v301
    %318 = vst [vmem:[%s5 + $0x30] sm:$0xff] %v302
    %319 = vst [vmem:[%s5 + $0x38] sm:$0xff] %v303
    %320 = vst [vmem:[%s5 + $0x40] sm:$0xff] %v304
    %321 = vst [vmem:[%s5 + $0x48] sm:$0xff] %v305
    %322 = vst [vmem:[%s5 + $0x50] sm:$0xff] %v306
    %323 = vst [vmem:[%s5 + $0x58] sm:$0xff] %v307
    %324 = vst [vmem:[%s5 + $0x60] sm:$0xff] %v308
    %325 = vst [vmem:[%s5 + $0x68] sm:$0xff] %v309
    %326 = vst [vmem:[%s5 + $0x70] sm:$0xff] %v310
    %327 = vst [vmem:[%s5 + $0x78] sm:$0xff] %v311
  $region29: #{zhugo_forward.68} parent=0 // pred_fallthru
    _
  // Predicated region
  $region30: #{zhugo_forward.68} parent=0 // pred_check
    _
  $region31: #{zhugo_forward.68} parent=0 // pred_check_branch
    %329 = sbr.rel (0) target = $region33
  $region32: #{zhugo_forward.68} parent=0 // pred_region
    _
  $region33: #{zhugo_forward.68} parent=0 // pred_fallthru
    _
  // Predicated region
  $region34: #{zhugo_forward.68} parent=0 // pred_check
    _
  $region35: #{zhugo_forward.68} parent=0 // pred_check_branch
    %331 = sbr.rel (0) target = $region37
  $region36: #{zhugo_forward.68} parent=0 // pred_region
    _
  $region37: #{zhugo_forward.68} parent=0 // pred_fallthru
    _

</llo_original>
